<compile_context>
chip_gen: v7x
topology: tpu7x:2x2x1
jax: 0.10.0
libtpu: 0.0.40
codegen_flags: <defaults>
</compile_context>

<pallas_src>
import functools

import numpy as np
import jax
import jax.numpy as jnp
from jax.experimental import pallas as pl
from jax.experimental.pallas import tpu as pltpu


HIDDEN = (128, 256, 512, 1024)   # fixed by the Generator definition
BN_EPS = 0.8                     # nn.BatchNorm1d(out_features, 0.8) -> eps = 0.8
NEG_SLOPE = 0.2


def _generator_kernel(z_ref,
                      w1_ref, b1_ref,
                      w2_ref, g2_ref, bt2_ref,
                      w3_ref, g3_ref, bt3_ref,
                      w4_ref, g4_ref, bt4_ref,
                      w5_ref, b5_ref,
                      out_ref, *, eps, negative_slope):
    """Fused forward: 4x GBlock + final Linear + Tanh, all VMEM-resident.

    Matmuls: bf16 operands, f32 accumulation (MXU).  Everything elementwise
    (BN normalize, LeakyReLU, Tanh) stays f32 on the VPU/EUP.
    """

    def matmul(h, w_ref):
        # (B, K)bf16 @ (K, N)bf16 -> (B, N)f32 on the MXU.
        return jnp.dot(h.astype(jnp.bfloat16), w_ref[...],
                       preferred_element_type=jnp.float32)

    def batchnorm(h, g_ref, bt_ref):
        # Training-mode BatchNorm1d: biased batch statistics over the batch
        # axis (f32).  Linear bias is omitted upstream: mean-subtraction
        # cancels it exactly.
        mean = jnp.mean(h, axis=0, keepdims=True)
        var = jnp.mean(jnp.square(h - mean), axis=0, keepdims=True)
        return (h - mean) * jax.lax.rsqrt(var + eps) * g_ref[...] + bt_ref[...]

    def lrelu(h):
        # max(h, a*h) == LeakyReLU(a) for 0 < a < 1; one VPU op.
        return jnp.maximum(h, negative_slope * h)

    h = lrelu(matmul(z_ref[...], w1_ref) + b1_ref[...])                 # (B, 128)
    h = lrelu(batchnorm(matmul(h, w2_ref), g2_ref, bt2_ref))            # (B, 256)
    h = lrelu(batchnorm(matmul(h, w3_ref), g3_ref, bt3_ref))            # (B, 512)
    h = lrelu(batchnorm(matmul(h, w4_ref), g4_ref, bt4_ref))            # (B, 1024)
    h = jnp.tanh(matmul(h, w5_ref) + b5_ref[...])                       # (B, out)
    out_ref[...] = h.astype(out_ref.dtype)


def init_generator_params(key, latent_dim, img_shape):
    """PyTorch nn.Linear / BatchNorm1d init.

    Weights are transposed ONCE to (K, N) and stored in bf16 (the kernel's
    matmul operand dtype).  Biases / gamma / beta stay f32.
    """
    out_dim = int(np.prod(img_shape))
    dims = (latent_dim,) + HIDDEN + (out_dim,)
    params = []
    for i in range(len(dims) - 1):
        k_in, k_out = dims[i], dims[i + 1]
        key, kw, kb = jax.random.split(key, 3)
        bound = float(1.0 / np.sqrt(k_in))
        w = jax.random.uniform(kw, (k_out, k_in), jnp.float32, -bound, bound)
        b = jax.random.uniform(kb, (k_out,), jnp.float32, -bound, bound)
        layer = {"wT": w.T.astype(jnp.bfloat16), "b": b.reshape(1, k_out)}
        if 1 <= i <= 3:                                    # GBlocks 2-4 have BN
            layer["gamma"] = jnp.ones((1, k_out), jnp.float32)
            layer["beta"] = jnp.zeros((1, k_out), jnp.float32)
        params.append(layer)
    return params


@functools.partial(jax.jit, static_argnames=("img_shape",))
def generator_forward(z, params, img_shape):
    B = z.shape[0]
    out_dim = int(np.prod(img_shape))
    p1, p2, p3, p4, p5 = params

    # Biases of BN'd layers (p2/p3/p4) are intentionally NOT passed: training-
    # mode BatchNorm cancels them exactly.
    flat_inputs = [
        z,
        p1["wT"], p1["b"],
        p2["wT"], p2["gamma"], p2["beta"],
        p3["wT"], p3["gamma"], p3["beta"],
        p4["wT"], p4["gamma"], p4["beta"],
        p5["wT"], p5["b"],
    ]

    kernel = functools.partial(
        _generator_kernel, eps=BN_EPS, negative_slope=NEG_SLOPE)

    # No grid: single invocation, every operand is one full VMEM-resident
    # block (no pointless double-buffering of the weights).
    vmem_spec = pl.BlockSpec(memory_space=pltpu.MemorySpace.VMEM)
    flat = pl.pallas_call(
        kernel,
        out_shape=jax.ShapeDtypeStruct((B, out_dim), jnp.float32),
        in_specs=[vmem_spec] * len(flat_inputs),
        out_specs=vmem_spec,
    )(*flat_inputs)

    return flat.reshape(B, *img_shape)


def generator_reference(z, params, img_shape):
    """Pure-JAX f32 reference matching the PyTorch forward (training-mode BN).

    Includes every Linear bias (also for BN'd layers), so the comparison
    validates the in-kernel bias-cancellation as well as the bf16 matmuls.
    """
    h = z
    n_layers = len(params)
    for i, layer in enumerate(params):
        h = jnp.dot(h, layer["wT"].astype(jnp.float32)) + layer["b"]
        if "gamma" in layer:
            mean = jnp.mean(h, axis=0, keepdims=True)
            var = jnp.mean(jnp.square(h - mean), axis=0, keepdims=True)
            h = (h - mean) * jax.lax.rsqrt(var + BN_EPS) * layer["gamma"] + layer["beta"]
        if i < n_layers - 1:
            h = jnp.where(h > 0, h, NEG_SLOPE * h)
        else:
            h = jnp.tanh(h)
    return h.reshape(z.shape[0], *img_shape)


if __name__ == "__main__":
    # NOTE: at production time batch far more latents per call (B >= 128) to
    # amortize the fixed weight fetch; B=8 here only to keep the example small.
    B, latent_dim = 8, 32
    img_shape = (1, 16, 16)      # prod = 256 -> lane-dense (2 x 128) output

    key = jax.random.PRNGKey(0)
    kz, kp = jax.random.split(key)
    z = jax.random.normal(kz, (B, latent_dim), dtype=jnp.float32)
    params = init_generator_params(kp, latent_dim, img_shape)

    img = generator_forward(z, params, img_shape)
    img = jax.block_until_ready(img)
    assert img.shape == (B,) + img_shape

    ref = generator_reference(z, params, img_shape)
    max_err = float(jnp.max(jnp.abs(img - ref)))
    # bf16 matmul operands vs f32 reference -> ~1e-2-scale differences max.
    assert jnp.allclose(img, ref, atol=3e-2, rtol=3e-2), max_err

    print("KERNEL_OK")
</pallas_src>

<mosaic_0001>
module attributes {stable_mosaic.version = 11 : i64} {
  func.func @_generator_kernel(%arg0: memref<8x32xf32, #tpu.memory_space<vmem>>, %arg1: memref<32x128xbf16, #tpu.memory_space<vmem>>, %arg2: memref<1x128xf32, #tpu.memory_space<vmem>>, %arg3: memref<128x256xbf16, #tpu.memory_space<vmem>>, %arg4: memref<1x256xf32, #tpu.memory_space<vmem>>, %arg5: memref<1x256xf32, #tpu.memory_space<vmem>>, %arg6: memref<256x512xbf16, #tpu.memory_space<vmem>>, %arg7: memref<1x512xf32, #tpu.memory_space<vmem>>, %arg8: memref<1x512xf32, #tpu.memory_space<vmem>>, %arg9: memref<512x1024xbf16, #tpu.memory_space<vmem>>, %arg10: memref<1x1024xf32, #tpu.memory_space<vmem>>, %arg11: memref<1x1024xf32, #tpu.memory_space<vmem>>, %arg12: memref<1024x256xbf16, #tpu.memory_space<vmem>>, %arg13: memref<1x256xf32, #tpu.memory_space<vmem>>, %arg14: memref<8x256xf32, #tpu.memory_space<vmem>>) attributes {dimension_semantics = [], scalar_prefetch = 0 : i64, scratch_operands = 0 : i64, tpu.core_type = #tpu.core_type<tc>} {
    %c0 = arith.constant 0 : index
    %c0_0 = arith.constant 0 : index
    %0 = vector.load %arg0[%c0, %c0_0] : memref<8x32xf32, #tpu.memory_space<vmem>>, vector<8x32xf32>
    %1 = arith.truncf %0 : vector<8x32xf32> to vector<8x32xbf16>
    %c0_1 = arith.constant 0 : index
    %c0_2 = arith.constant 0 : index
    %2 = vector.load %arg1[%c0_1, %c0_2] : memref<32x128xbf16, #tpu.memory_space<vmem>>, vector<32x128xbf16>
    %cst = arith.constant dense<0.000000e+00> : vector<8x128xf32>
    %3 = tpu.matmul %1, %2, %cst {dimension_numbers = #tpu.dot_dimension_numbers<[1], [0], [0], [1], [0, 0, 1, 1], [], []>} : vector<8x32xbf16>, vector<32x128xbf16>, vector<8x128xf32> -> vector<8x128xf32>
    %c0_3 = arith.constant 0 : index
    %c0_4 = arith.constant 0 : index
    %4 = vector.load %arg2[%c0_3, %c0_4] : memref<1x128xf32, #tpu.memory_space<vmem>>, vector<1x128xf32>
    %5 = vector.broadcast %4 : vector<1x128xf32> to vector<8x128xf32>
    %6 = arith.addf %3, %5 : vector<8x128xf32>
    %cst_5 = arith.constant 2.000000e-01 : f32
    %7 = vector.broadcast %cst_5 : f32 to vector<8x128xf32>
    %8 = arith.mulf %7, %6 : vector<8x128xf32>
    %9 = arith.maximumf %6, %8 : vector<8x128xf32>
    %10 = arith.truncf %9 : vector<8x128xf32> to vector<8x128xbf16>
    %c0_6 = arith.constant 0 : index
    %c0_7 = arith.constant 0 : index
    %11 = vector.load %arg3[%c0_6, %c0_7] : memref<128x256xbf16, #tpu.memory_space<vmem>>, vector<128x256xbf16>
    %cst_8 = arith.constant dense<0.000000e+00> : vector<8x256xf32>
    %12 = tpu.matmul %10, %11, %cst_8 {dimension_numbers = #tpu.dot_dimension_numbers<[1], [0], [0], [1], [0, 0, 1, 1], [], []>} : vector<8x128xbf16>, vector<128x256xbf16>, vector<8x256xf32> -> vector<8x256xf32>
    %cst_9 = arith.constant dense<0.000000e+00> : vector<256xf32>
    %13 = vector.multi_reduction <add>, %12, %cst_9 [0] : vector<8x256xf32> to vector<256xf32>
    %14 = vector.shape_cast %13 : vector<256xf32> to vector<1x256xf32>
    %cst_10 = arith.constant 8.000000e+00 : f32
    %15 = vector.broadcast %cst_10 : f32 to vector<1x256xf32>
    %16 = arith.divf %14, %15 : vector<1x256xf32>
    %17 = vector.broadcast %16 : vector<1x256xf32> to vector<8x256xf32>
    %18 = arith.subf %12, %17 : vector<8x256xf32>
    %19 = arith.mulf %18, %18 : vector<8x256xf32>
    %cst_11 = arith.constant dense<0.000000e+00> : vector<256xf32>
    %20 = vector.multi_reduction <add>, %19, %cst_11 [0] : vector<8x256xf32> to vector<256xf32>
    %21 = vector.shape_cast %20 : vector<256xf32> to vector<1x256xf32>
    %cst_12 = arith.constant 8.000000e+00 : f32
    %22 = vector.broadcast %cst_12 : f32 to vector<1x256xf32>
    %23 = arith.divf %21, %22 : vector<1x256xf32>
    %24 = vector.broadcast %16 : vector<1x256xf32> to vector<8x256xf32>
    %25 = arith.subf %12, %24 : vector<8x256xf32>
    %cst_13 = arith.constant 8.000000e-01 : f32
    %26 = vector.broadcast %cst_13 : f32 to vector<1x256xf32>
    %27 = arith.addf %23, %26 : vector<1x256xf32>
    %28 = math.rsqrt %27 : vector<1x256xf32>
    %29 = vector.broadcast %28 : vector<1x256xf32> to vector<8x256xf32>
    %30 = arith.mulf %25, %29 : vector<8x256xf32>
    %c0_14 = arith.constant 0 : index
    %c0_15 = arith.constant 0 : index
    %31 = vector.load %arg4[%c0_14, %c0_15] : memref<1x256xf32, #tpu.memory_space<vmem>>, vector<1x256xf32>
    %32 = vector.broadcast %31 : vector<1x256xf32> to vector<8x256xf32>
    %33 = arith.mulf %30, %32 : vector<8x256xf32>
    %c0_16 = arith.constant 0 : index
    %c0_17 = arith.constant 0 : index
    %34 = vector.load %arg5[%c0_16, %c0_17] : memref<1x256xf32, #tpu.memory_space<vmem>>, vector<1x256xf32>
    %35 = vector.broadcast %34 : vector<1x256xf32> to vector<8x256xf32>
    %36 = arith.addf %33, %35 : vector<8x256xf32>
    %cst_18 = arith.constant 2.000000e-01 : f32
    %37 = vector.broadcast %cst_18 : f32 to vector<8x256xf32>
    %38 = arith.mulf %37, %36 : vector<8x256xf32>
    %39 = arith.maximumf %36, %38 : vector<8x256xf32>
    %40 = arith.truncf %39 : vector<8x256xf32> to vector<8x256xbf16>
    %c0_19 = arith.constant 0 : index
    %c0_20 = arith.constant 0 : index
    %41 = vector.load %arg6[%c0_19, %c0_20] : memref<256x512xbf16, #tpu.memory_space<vmem>>, vector<256x512xbf16>
    %cst_21 = arith.constant dense<0.000000e+00> : vector<8x512xf32>
    %42 = tpu.matmul %40, %41, %cst_21 {dimension_numbers = #tpu.dot_dimension_numbers<[1], [0], [0], [1], [0, 0, 1, 1], [], []>} : vector<8x256xbf16>, vector<256x512xbf16>, vector<8x512xf32> -> vector<8x512xf32>
    %cst_22 = arith.constant dense<0.000000e+00> : vector<512xf32>
    %43 = vector.multi_reduction <add>, %42, %cst_22 [0] : vector<8x512xf32> to vector<512xf32>
    %44 = vector.shape_cast %43 : vector<512xf32> to vector<1x512xf32>
    %cst_23 = arith.constant 8.000000e+00 : f32
    %45 = vector.broadcast %cst_23 : f32 to vector<1x512xf32>
    %46 = arith.divf %44, %45 : vector<1x512xf32>
    %47 = vector.broadcast %46 : vector<1x512xf32> to vector<8x512xf32>
    %48 = arith.subf %42, %47 : vector<8x512xf32>
    %49 = arith.mulf %48, %48 : vector<8x512xf32>
    %cst_24 = arith.constant dense<0.000000e+00> : vector<512xf32>
    %50 = vector.multi_reduction <add>, %49, %cst_24 [0] : vector<8x512xf32> to vector<512xf32>
    %51 = vector.shape_cast %50 : vector<512xf32> to vector<1x512xf32>
    %cst_25 = arith.constant 8.000000e+00 : f32
    %52 = vector.broadcast %cst_25 : f32 to vector<1x512xf32>
    %53 = arith.divf %51, %52 : vector<1x512xf32>
    %54 = vector.broadcast %46 : vector<1x512xf32> to vector<8x512xf32>
    %55 = arith.subf %42, %54 : vector<8x512xf32>
    %cst_26 = arith.constant 8.000000e-01 : f32
    %56 = vector.broadcast %cst_26 : f32 to vector<1x512xf32>
    %57 = arith.addf %53, %56 : vector<1x512xf32>
    %58 = math.rsqrt %57 : vector<1x512xf32>
    %59 = vector.broadcast %58 : vector<1x512xf32> to vector<8x512xf32>
    %60 = arith.mulf %55, %59 : vector<8x512xf32>
    %c0_27 = arith.constant 0 : index
    %c0_28 = arith.constant 0 : index
    %61 = vector.load %arg7[%c0_27, %c0_28] : memref<1x512xf32, #tpu.memory_space<vmem>>, vector<1x512xf32>
    %62 = vector.broadcast %61 : vector<1x512xf32> to vector<8x512xf32>
    %63 = arith.mulf %60, %62 : vector<8x512xf32>
    %c0_29 = arith.constant 0 : index
    %c0_30 = arith.constant 0 : index
    %64 = vector.load %arg8[%c0_29, %c0_30] : memref<1x512xf32, #tpu.memory_space<vmem>>, vector<1x512xf32>
    %65 = vector.broadcast %64 : vector<1x512xf32> to vector<8x512xf32>
    %66 = arith.addf %63, %65 : vector<8x512xf32>
    %cst_31 = arith.constant 2.000000e-01 : f32
    %67 = vector.broadcast %cst_31 : f32 to vector<8x512xf32>
    %68 = arith.mulf %67, %66 : vector<8x512xf32>
    %69 = arith.maximumf %66, %68 : vector<8x512xf32>
    %70 = arith.truncf %69 : vector<8x512xf32> to vector<8x512xbf16>
    %c0_32 = arith.constant 0 : index
    %c0_33 = arith.constant 0 : index
    %71 = vector.load %arg9[%c0_32, %c0_33] : memref<512x1024xbf16, #tpu.memory_space<vmem>>, vector<512x1024xbf16>
    %cst_34 = arith.constant dense<0.000000e+00> : vector<8x1024xf32>
    %72 = tpu.matmul %70, %71, %cst_34 {dimension_numbers = #tpu.dot_dimension_numbers<[1], [0], [0], [1], [0, 0, 1, 1], [], []>} : vector<8x512xbf16>, vector<512x1024xbf16>, vector<8x1024xf32> -> vector<8x1024xf32>
    %cst_35 = arith.constant dense<0.000000e+00> : vector<1024xf32>
    %73 = vector.multi_reduction <add>, %72, %cst_35 [0] : vector<8x1024xf32> to vector<1024xf32>
    %74 = vector.shape_cast %73 : vector<1024xf32> to vector<1x1024xf32>
    %cst_36 = arith.constant 8.000000e+00 : f32
    %75 = vector.broadcast %cst_36 : f32 to vector<1x1024xf32>
    %76 = arith.divf %74, %75 : vector<1x1024xf32>
    %77 = vector.broadcast %76 : vector<1x1024xf32> to vector<8x1024xf32>
    %78 = arith.subf %72, %77 : vector<8x1024xf32>
    %79 = arith.mulf %78, %78 : vector<8x1024xf32>
    %cst_37 = arith.constant dense<0.000000e+00> : vector<1024xf32>
    %80 = vector.multi_reduction <add>, %79, %cst_37 [0] : vector<8x1024xf32> to vector<1024xf32>
    %81 = vector.shape_cast %80 : vector<1024xf32> to vector<1x1024xf32>
    %cst_38 = arith.constant 8.000000e+00 : f32
    %82 = vector.broadcast %cst_38 : f32 to vector<1x1024xf32>
    %83 = arith.divf %81, %82 : vector<1x1024xf32>
    %84 = vector.broadcast %76 : vector<1x1024xf32> to vector<8x1024xf32>
    %85 = arith.subf %72, %84 : vector<8x1024xf32>
    %cst_39 = arith.constant 8.000000e-01 : f32
    %86 = vector.broadcast %cst_39 : f32 to vector<1x1024xf32>
    %87 = arith.addf %83, %86 : vector<1x1024xf32>
    %88 = math.rsqrt %87 : vector<1x1024xf32>
    %89 = vector.broadcast %88 : vector<1x1024xf32> to vector<8x1024xf32>
    %90 = arith.mulf %85, %89 : vector<8x1024xf32>
    %c0_40 = arith.constant 0 : index
    %c0_41 = arith.constant 0 : index
    %91 = vector.load %arg10[%c0_40, %c0_41] : memref<1x1024xf32, #tpu.memory_space<vmem>>, vector<1x1024xf32>
    %92 = vector.broadcast %91 : vector<1x1024xf32> to vector<8x1024xf32>
    %93 = arith.mulf %90, %92 : vector<8x1024xf32>
    %c0_42 = arith.constant 0 : index
    %c0_43 = arith.constant 0 : index
    %94 = vector.load %arg11[%c0_42, %c0_43] : memref<1x1024xf32, #tpu.memory_space<vmem>>, vector<1x1024xf32>
    %95 = vector.broadcast %94 : vector<1x1024xf32> to vector<8x1024xf32>
    %96 = arith.addf %93, %95 : vector<8x1024xf32>
    %cst_44 = arith.constant 2.000000e-01 : f32
    %97 = vector.broadcast %cst_44 : f32 to vector<8x1024xf32>
    %98 = arith.mulf %97, %96 : vector<8x1024xf32>
    %99 = arith.maximumf %96, %98 : vector<8x1024xf32>
    %100 = arith.truncf %99 : vector<8x1024xf32> to vector<8x1024xbf16>
    %c0_45 = arith.constant 0 : index
    %c0_46 = arith.constant 0 : index
    %101 = vector.load %arg12[%c0_45, %c0_46] : memref<1024x256xbf16, #tpu.memory_space<vmem>>, vector<1024x256xbf16>
    %cst_47 = arith.constant dense<0.000000e+00> : vector<8x256xf32>
    %102 = tpu.matmul %100, %101, %cst_47 {dimension_numbers = #tpu.dot_dimension_numbers<[1], [0], [0], [1], [0, 0, 1, 1], [], []>} : vector<8x1024xbf16>, vector<1024x256xbf16>, vector<8x256xf32> -> vector<8x256xf32>
    %c0_48 = arith.constant 0 : index
    %c0_49 = arith.constant 0 : index
    %103 = vector.load %arg13[%c0_48, %c0_49] : memref<1x256xf32, #tpu.memory_space<vmem>>, vector<1x256xf32>
    %104 = vector.broadcast %103 : vector<1x256xf32> to vector<8x256xf32>
    %105 = arith.addf %102, %104 : vector<8x256xf32>
    %106 = math.tanh %105 : vector<8x256xf32>
    %c0_50 = arith.constant 0 : index
    %c0_51 = arith.constant 0 : index
    %107 = vector.load %arg14[%c0_50, %c0_51] : memref<8x256xf32, #tpu.memory_space<vmem>>, vector<8x256xf32>
    tpu.vector_store %arg14[%c0_50, %c0_51], %106 {strides = array<i32>} : memref<8x256xf32, #tpu.memory_space<vmem>>, vector<8x256xf32>,
    return
  }
}

</mosaic_0001>

<llo_original>
// kernel: generator_forward.1
$region0: #{generator_forward.1}
  #allocation0 [shape = 'u32[]', space=smem, size = 0x4, offset = 0x4, fixed_abs, tag = 'smem constant byte address 0x4 - core index']
  #allocation1 [shape = 'u32[144,128]{1,0:T(1,128)}', space=vmem, size = 0x12000, scoped, tag = 'internal scratch']
  %s0 = inlined_call_operand.hbm [shape: f32[8,32], index: 0, kind: input, shape index: {}]
  %s1 = inlined_call_operand.hbm [shape: bf16[32,128], index: 1, kind: input, shape index: {}]
  %s2 = inlined_call_operand.hbm [shape: f32[1,128], index: 2, kind: input, shape index: {}]
  %s3 = inlined_call_operand.hbm [shape: bf16[128,256], index: 3, kind: input, shape index: {}]
  %s4 = inlined_call_operand.vmem [shape: f32[1,256], index: 4, kind: input, shape index: {}]
  %s5 = inlined_call_operand.hbm [shape: f32[1,256], index: 5, kind: input, shape index: {}]
  %s6 = inlined_call_operand.hbm [shape: bf16[256,512], index: 6, kind: input, shape index: {}]
  %s7 = inlined_call_operand.vmem [shape: f32[1,512], index: 7, kind: input, shape index: {}]
  %s8 = inlined_call_operand.hbm [shape: f32[1,512], index: 8, kind: input, shape index: {}]
  %s9 = inlined_call_operand.hbm [shape: bf16[512,1024], index: 9, kind: input, shape index: {}]
  %s10 = inlined_call_operand.vmem [shape: f32[1,1024], index: 10, kind: input, shape index: {}]
  %s11 = inlined_call_operand.vmem [shape: f32[1,1024], index: 11, kind: input, shape index: {}]
  %s12 = inlined_call_operand.hbm [shape: bf16[1024,256], index: 12, kind: input, shape index: {}]
  %s13 = inlined_call_operand.vmem [shape: f32[1,256], index: 13, kind: input, shape index: {}]
  %s14 = inlined_call_operand.vmem [shape: f32[8,256], index: 14, kind: output, shape index: {}]
  %s15 = sld [smem:[#allocation0]]
  $region102: #{generator_forward.1} parent=0
    _
  %s17 = ssub.s32 1, %s15
  %s18 = scalar_select 0, %s17, %s15
  $region1: #{generator_forward.1} parent=0
    #allocation2 [shape = 'u8[4096]{0}', space=vmem, size = 0x1000, scoped, tag = 'input window, operand 0, single buffered']
    #allocation3 [shape = 's32[1]{0}', space=sflag, size = 0x4, scoped, tag = 'scoped memory for generator_forward.1']
    #allocation4 [shape = 'u8[8192]{0}', space=vmem, size = 0x2000, scoped, tag = 'input window, operand 1, single buffered']
    #allocation5 [shape = 's32[1]{0}', space=sflag, size = 0x4, scoped, tag = 'scoped memory for generator_forward.1']
    #allocation6 [shape = 'u8[512]{0}', space=vmem, size = 0x400, scoped, tag = 'input window, operand 2, single buffered']
    #allocation7 [shape = 'u8[65536]{0}', space=vmem, size = 0x10000, scoped, tag = 'input window, operand 3, single buffered']
    #allocation8 [shape = 's32[1]{0}', space=sflag, size = 0x4, scoped, tag = 'scoped memory for generator_forward.1']
    #allocation9 [shape = 'u8[1024]{0}', space=vmem, size = 0x400, scoped, tag = 'input window, operand 5, single buffered']
    #allocation10 [shape = 'u8[262144]{0}', space=vmem, size = 0x40000, scoped, tag = 'input window, operand 6, single buffered']
    #allocation11 [shape = 's32[1]{0}', space=sflag, size = 0x4, scoped, tag = 'scoped memory for generator_forward.1']
    #allocation12 [shape = 'u8[2048]{0}', space=vmem, size = 0x800, scoped, tag = 'input window, operand 8, single buffered']
    #allocation13 [shape = 'u8[1048576]{0}', space=vmem, size = 0x100000, scoped, tag = 'input window, operand 9, single buffered']
    #allocation14 [shape = 's32[1]{0}', space=sflag, size = 0x4, scoped, tag = 'scoped memory for generator_forward.1']
    #allocation15 [shape = 'u8[524288]{0}', space=vmem, size = 0x80000, scoped, tag = 'input window, operand 12, single buffered']
    %19 = vsyncpa [#allocation3], 0
    %20 = vsyncpa [#allocation5], 0
    %21 = vsyncpa [#allocation8], 0
    %22 = vsyncpa [#allocation11], 0
    %23 = vsyncpa [#allocation14], 0
    // Predicated region
    $region2: #{generator_forward.1} parent=1 // pred_check
      _
    $region3: #{generator_forward.1} parent=1 // pred_check_branch
      %25 = sbr.rel (0) target = $region5
    $region4: #{generator_forward.1} parent=1 // pred_region
      %s27 = ssub.s32 128, 128
      %28 = vsyncadd [#allocation3], %s27
      %s30 = sshll.u32 [#allocation2], 4
      %s31 = int_to_ptr.vmem [resolvable:$true] %s30
      %33 = dma.hbm_to_vmem [thread:$0]  %s0, 128, %s31, [#allocation3]
    $region5: #{generator_forward.1} parent=1 // pred_fallthru
      _
    // Predicated region
    $region6: #{generator_forward.1} parent=1 // pred_check
      _
    $region7: #{generator_forward.1} parent=1 // pred_check_branch
      %35 = sbr.rel (0) target = $region9
    $region8: #{generator_forward.1} parent=1 // pred_region
      %s37 = ssub.s32 256, 256
      %38 = vsyncadd [#allocation5], %s37
      %s39 = sshll.u32 [#allocation4], 4
      %s40 = int_to_ptr.vmem [resolvable:$true] %s39
      %45 = dma.hbm_to_vmem [thread:$0]  %s1, 256, %s40, [#allocation5], 64, 64, 4
    $region9: #{generator_forward.1} parent=1 // pred_fallthru
      _
    // Predicated region
    $region10: #{generator_forward.1} parent=1 // pred_check
      _
    $region11: #{generator_forward.1} parent=1 // pred_check_branch
      %47 = sbr.rel (0) target = $region13
    $region12: #{generator_forward.1} parent=1 // pred_region
      %s49 = ssub.s32 16, 16
      %50 = vsyncadd [#allocation5], %s49
      %s52 = sshll.u32 [#allocation6], 4
      %s53 = int_to_ptr.vmem [resolvable:$true] %s52
      %55 = dma.hbm_to_vmem [thread:$0]  %s2, 16, %s53, [#allocation5]
    $region13: #{generator_forward.1} parent=1 // pred_fallthru
      _
    // Predicated region
    $region14: #{generator_forward.1} parent=1 // pred_check
      _
    $region15: #{generator_forward.1} parent=1 // pred_check_branch
      %57 = sbr.rel (0) target = $region17
    $region16: #{generator_forward.1} parent=1 // pred_region
      %s59 = ssub.s32 2048, 2048
      %60 = vsyncadd [#allocation8], %s59
      %s61 = sshll.u32 [#allocation7], 4
      %s62 = int_to_ptr.vmem [resolvable:$true] %s61
      %67 = dma.hbm_to_vmem [thread:$0]  %s3, 2048, %s62, [#allocation8], 128, 128, 8
    $region17: #{generator_forward.1} parent=1 // pred_fallthru
      _
    // Predicated region
    $region18: #{generator_forward.1} parent=1 // pred_check
      _
    $region19: #{generator_forward.1} parent=1 // pred_check_branch
      %69 = sbr.rel (0) target = $region21
    $region20: #{generator_forward.1} parent=1 // pred_region
      _
    $region21: #{generator_forward.1} parent=1 // pred_fallthru
      _
    // Predicated region
    $region22: #{generator_forward.1} parent=1 // pred_check
      _
    $region23: #{generator_forward.1} parent=1 // pred_check_branch
      %71 = sbr.rel (0) target = $region25
    $region24: #{generator_forward.1} parent=1 // pred_region
      %s73 = ssub.s32 32, 32
      %74 = vsyncadd [#allocation8], %s73
      %s76 = sshll.u32 [#allocation9], 4
      %s77 = int_to_ptr.vmem [resolvable:$true] %s76
      %79 = dma.hbm_to_vmem [thread:$0]  %s5, 32, %s77, [#allocation8]
    $region25: #{generator_forward.1} parent=1 // pred_fallthru
      _
    // Predicated region
    $region26: #{generator_forward.1} parent=1 // pred_check
      _
    $region27: #{generator_forward.1} parent=1 // pred_check_branch
      %81 = sbr.rel (0) target = $region29
    $region28: #{generator_forward.1} parent=1 // pred_region
      %s83 = ssub.s32 8192, 8192
      %84 = vsyncadd [#allocation11], %s83
      %s85 = sshll.u32 [#allocation10], 4
      %s86 = int_to_ptr.vmem [resolvable:$true] %s85
      %91 = dma.hbm_to_vmem [thread:$0]  %s6, 8192, %s86, [#allocation11], 256, 256, 16
    $region29: #{generator_forward.1} parent=1 // pred_fallthru
      _
    // Predicated region
    $region30: #{generator_forward.1} parent=1 // pred_check
      _
    $region31: #{generator_forward.1} parent=1 // pred_check_branch
      %93 = sbr.rel (0) target = $region33
    $region32: #{generator_forward.1} parent=1 // pred_region
      _
    $region33: #{generator_forward.1} parent=1 // pred_fallthru
      _
    // Predicated region
    $region34: #{generator_forward.1} parent=1 // pred_check
      _
    $region35: #{generator_forward.1} parent=1 // pred_check_branch
      %95 = sbr.rel (0) target = $region37
    $region36: #{generator_forward.1} parent=1 // pred_region
      %s97 = ssub.s32 64, 64
      %98 = vsyncadd [#allocation11], %s97
      %s100 = sshll.u32 [#allocation12], 4
      %s101 = int_to_ptr.vmem [resolvable:$true] %s100
      %103 = dma.hbm_to_vmem [thread:$0]  %s8, 64, %s101, [#allocation11]
    $region37: #{generator_forward.1} parent=1 // pred_fallthru
      _
    // Predicated region
    $region38: #{generator_forward.1} parent=1 // pred_check
      _
    $region39: #{generator_forward.1} parent=1 // pred_check_branch
      %105 = sbr.rel (0) target = $region41
    $region40: #{generator_forward.1} parent=1 // pred_region
      %s107 = ssub.s32 32768, 32768
      %108 = vsyncadd [#allocation14], %s107
      %s109 = sshll.u32 [#allocation13], 4
      %s110 = int_to_ptr.vmem [resolvable:$true] %s109
      %115 = dma.hbm_to_vmem [thread:$0]  %s9, 32768, %s110, [#allocation14], 512, 512, 32
    $region41: #{generator_forward.1} parent=1 // pred_fallthru
      _
    // Predicated region
    $region42: #{generator_forward.1} parent=1 // pred_check
      _
    $region43: #{generator_forward.1} parent=1 // pred_check_branch
      %117 = sbr.rel (0) target = $region45
    $region44: #{generator_forward.1} parent=1 // pred_region
      _
    $region45: #{generator_forward.1} parent=1 // pred_fallthru
      _
    // Predicated region
    $region46: #{generator_forward.1} parent=1 // pred_check
      _
    $region47: #{generator_forward.1} parent=1 // pred_check_branch
      %119 = sbr.rel (0) target = $region49
    $region48: #{generator_forward.1} parent=1 // pred_region
      _
    $region49: #{generator_forward.1} parent=1 // pred_fallthru
      _
    // Predicated region
    $region50: #{generator_forward.1} parent=1 // pred_check
      _
    $region51: #{generator_forward.1} parent=1 // pred_check_branch
      %121 = sbr.rel (0) target = $region53
    $region52: #{generator_forward.1} parent=1 // pred_region
      %s123 = ssub.s32 16384, 16384
      %124 = vsyncadd [#allocation14], %s123
      %s125 = sshll.u32 [#allocation15], 4
      %s126 = int_to_ptr.vmem [resolvable:$true] %s125
      %131 = dma.hbm_to_vmem [thread:$0]  %s12, 16384, %s126, [#allocation14], 128, 128, 8
    $region53: #{generator_forward.1} parent=1 // pred_fallthru
      _
    // Predicated region
    $region54: #{generator_forward.1} parent=1 // pred_check
      _
    $region55: #{generator_forward.1} parent=1 // pred_check_branch
      %133 = sbr.rel (0) target = $region57
    $region56: #{generator_forward.1} parent=1 // pred_region
      _
    $region57: #{generator_forward.1} parent=1 // pred_fallthru
      _
    // Predicated region
    $region58: #{generator_forward.1} parent=1 // pred_check
      _
    $region59: #{generator_forward.1} parent=1 // pred_check_branch
      %135 = sbr.rel (0) target = $region61
    $region60: #{generator_forward.1} parent=1 // pred_region
      %136 = dma.done [#allocation3], 128
    $region61: #{generator_forward.1} parent=1 // pred_fallthru
      _
    // Predicated region
    $region62: #{generator_forward.1} parent=1 // pred_check
      _
    $region63: #{generator_forward.1} parent=1 // pred_check_branch
      %138 = sbr.rel (0) target = $region65
    $region64: #{generator_forward.1} parent=1 // pred_region
      %139 = dma.done [#allocation5], 256
    $region65: #{generator_forward.1} parent=1 // pred_fallthru
      _
    // Predicated region
    $region66: #{generator_forward.1} parent=1 // pred_check
      _
    $region67: #{generator_forward.1} parent=1 // pred_check_branch
      %141 = sbr.rel (0) target = $region69
    $region68: #{generator_forward.1} parent=1 // pred_region
      %142 = dma.done [#allocation5], 16
    $region69: #{generator_forward.1} parent=1 // pred_fallthru
      _
    // Predicated region
    $region70: #{generator_forward.1} parent=1 // pred_check
      _
    $region71: #{generator_forward.1} parent=1 // pred_check_branch
      %144 = sbr.rel (0) target = $region73
    $region72: #{generator_forward.1} parent=1 // pred_region
      %145 = dma.done [#allocation8], 2048
    $region73: #{generator_forward.1} parent=1 // pred_fallthru
      _
    // Predicated region
    $region74: #{generator_forward.1} parent=1 // pred_check
      _
    $region75: #{generator_forward.1} parent=1 // pred_check_branch
      %147 = sbr.rel (0) target = $region77
    $region76: #{generator_forward.1} parent=1 // pred_region
      %148 = dma.done [#allocation8], 32
    $region77: #{generator_forward.1} parent=1 // pred_fallthru
      _
    // Predicated region
    $region78: #{generator_forward.1} parent=1 // pred_check
      _
    $region79: #{generator_forward.1} parent=1 // pred_check_branch
      %150 = sbr.rel (0) target = $region81
    $region80: #{generator_forward.1} parent=1 // pred_region
      %151 = dma.done [#allocation11], 8192
    $region81: #{generator_forward.1} parent=1 // pred_fallthru
      _
    // Predicated region
    $region82: #{generator_forward.1} parent=1 // pred_check
      _
    $region83: #{generator_forward.1} parent=1 // pred_check_branch
      %153 = sbr.rel (0) target = $region85
    $region84: #{generator_forward.1} parent=1 // pred_region
      %154 = dma.done [#allocation11], 64
    $region85: #{generator_forward.1} parent=1 // pred_fallthru
      _
    // Predicated region
    $region86: #{generator_forward.1} parent=1 // pred_check
      _
    $region87: #{generator_forward.1} parent=1 // pred_check_branch
      %156 = sbr.rel (0) target = $region89
    $region88: #{generator_forward.1} parent=1 // pred_region
      %157 = dma.done [#allocation14], 32768
    $region89: #{generator_forward.1} parent=1 // pred_fallthru
      _
    // Predicated region
    $region90: #{generator_forward.1} parent=1 // pred_check
      _
    $region91: #{generator_forward.1} parent=1 // pred_check_branch
      %159 = sbr.rel (0) target = $region93
    $region92: #{generator_forward.1} parent=1 // pred_region
      %160 = dma.done [#allocation14], 16384
    $region93: #{generator_forward.1} parent=1 // pred_fallthru
      _
    %v162 = vld [vmem:[#allocation2] sm:$0xff]
    %v163 = vpack.c.bf16 %v162, %v162
    %v164 = vld [vmem:[#allocation4] sm:$0xf]
    %v165 = vld [vmem:[#allocation4 + $0x4] sm:$0xf]
    %v166 = vld [vmem:[#allocation4 + $0x8] sm:$0xf]
    %v167 = vld [vmem:[#allocation4 + $0xc] sm:$0xf]
    %v168 = vld [vmem:[#allocation6] sm:$0x1]
    %v170 = vlaneseq
    %v171 = vshrl.u32 %v170, 7
    %v172 = vsub.s32 0, %v171
    %v173 = vrot.slane %v168, %v172
    %v179 = vunpack.c.l.b16 %v164
    %v180 = vunpack.c.l.b16 %v165
    %v181 = vunpack.c.l.b16 %v166
    %v182 = vunpack.c.l.b16 %v167
    %v183 = vpack.c.b16 %v180, %v179
    %v184 = vpack.c.b16 %v182, %v181
    %vm187 = vcmask 261120
    %v189 = vsel %vm187, %v163, 0
    %191 = vmatprep.subr.bf16.mxu0 0
    %192 = vmatpush1.bf16.msra.mxu0 %v183
    %193 = vmatprep.subr.bf16.mxu0 0
    %194 = vmatpush1.bf16.msra.mxu0 %v184
    %195 = vmatprep.subr.bf16.mxu0 0
    %196 = vmatpush1.bf16.msra.mxu0 0
    %197 = vmatprep.subr.bf16.mxu0 0
    %198 = vmatpush1.bf16.msra.mxu0 0
    %199 = vmatprep.subr.bf16.mxu0 0
    %200 = vmatpush1.bf16.msra.mxu0 0
    %201 = vmatprep.subr.bf16.mxu0 0
    %202 = vmatpush1.bf16.msra.mxu0 0
    %203 = vmatprep.subr.bf16.mxu0 0
    %204 = vmatpush1.bf16.msra.mxu0 0
    %205 = vmatprep.subr.bf16.mxu0 0
    %206 = vmatpush1.bf16.msra.mxu0 0
    %207 = vmatprep.subr.bf16.mxu0 0
    %208 = vmatpush1.bf16.msra.mxu0 0
    %209 = vmatprep.subr.bf16.mxu0 0
    %210 = vmatpush1.bf16.msra.mxu0 0
    %211 = vmatprep.subr.bf16.mxu0 0
    %212 = vmatpush1.bf16.msra.mxu0 0
    %213 = vmatprep.subr.bf16.mxu0 0
    %214 = vmatpush1.bf16.msra.mxu0 0
    %215 = vmatprep.subr.bf16.mxu0 0
    %216 = vmatpush1.bf16.msra.mxu0 0
    %217 = vmatprep.subr.bf16.mxu0 0
    %218 = vmatpush1.bf16.msra.mxu0 0
    %219 = vmatprep.subr.bf16.mxu0 0
    %220 = vmatpush1.bf16.msra.mxu0 0
    %221 = vmatprep.subr.bf16.mxu0 0
    %222 = vmatpush1.bf16.msra.mxu0 0
    %223 = vmatprep.mubr.bf16.mxu0 0
    %224 = vmatmul.mubr.bf16.gmra.mrb[0].mxu0 %v189
    %v225 = vpop.f32.mrb[0].mxu0
    %v226 = vadd.f32 %v173, %v225
    %v227 = vpop.f32.mrb[0].mxu0
    %v228 = vpop.f32.mrb[0].mxu0
    %v229 = vpop.f32.mrb[0].mxu0
    %230 = vdwg.mxu0
    %v231 = vmul.f32 %v226, 0.2
    %v232 = vmax.f32 %v226, %v231
    %v233 = vpack.c.bf16 %v232, %v232
    %v234 = vld [vmem:[#allocation7] sm:$0xff]
    %v235 = vld [vmem:[#allocation7 + $0x8] sm:$0xff]
    %v236 = vld [vmem:[#allocation7 + $0x10] sm:$0xff]
    %v237 = vld [vmem:[#allocation7 + $0x18] sm:$0xff]
    %v238 = vld [vmem:[#allocation7 + $0x20] sm:$0xff]
    %v239 = vld [vmem:[#allocation7 + $0x28] sm:$0xff]
    %v240 = vld [vmem:[#allocation7 + $0x30] sm:$0xff]
    %v241 = vld [vmem:[#allocation7 + $0x38] sm:$0xff]
    %v242 = vld [vmem:[#allocation7 + $0x40] sm:$0xff]
    %v243 = vld [vmem:[#allocation7 + $0x48] sm:$0xff]
    %v244 = vld [vmem:[#allocation7 + $0x50] sm:$0xff]
    %v245 = vld [vmem:[#allocation7 + $0x58] sm:$0xff]
    %v246 = vld [vmem:[#allocation7 + $0x60] sm:$0xff]
    %v247 = vld [vmem:[#allocation7 + $0x68] sm:$0xff]
    %v248 = vld [vmem:[#allocation7 + $0x70] sm:$0xff]
    %v249 = vld [vmem:[#allocation7 + $0x78] sm:$0xff]
    %v266 = vunpack.c.l.b16 %v234
    %v267 = vunpack.c.h.b16 %v234
    %v268 = vunpack.c.l.b16 %v235
    %v269 = vunpack.c.h.b16 %v235
    %v270 = vunpack.c.l.b16 %v236
    %v271 = vunpack.c.h.b16 %v236
    %v272 = vunpack.c.l.b16 %v237
    %v273 = vunpack.c.h.b16 %v237
    %v274 = vunpack.c.l.b16 %v238
    %v275 = vunpack.c.h.b16 %v238
    %v276 = vunpack.c.l.b16 %v239
    %v277 = vunpack.c.h.b16 %v239
    %v278 = vunpack.c.l.b16 %v240
    %v279 = vunpack.c.h.b16 %v240
    %v280 = vunpack.c.l.b16 %v241
    %v281 = vunpack.c.h.b16 %v241
    %v282 = vunpack.c.l.b16 %v242
    %v283 = vunpack.c.h.b16 %v242
    %v284 = vunpack.c.l.b16 %v243
    %v285 = vunpack.c.h.b16 %v243
    %v286 = vunpack.c.l.b16 %v244
    %v287 = vunpack.c.h.b16 %v244
    %v288 = vunpack.c.l.b16 %v245
    %v289 = vunpack.c.h.b16 %v245
    %v290 = vunpack.c.l.b16 %v246
    %v291 = vunpack.c.h.b16 %v246
    %v292 = vunpack.c.l.b16 %v247
    %v293 = vunpack.c.h.b16 %v247
    %v294 = vunpack.c.l.b16 %v248
    %v295 = vunpack.c.h.b16 %v248
    %v296 = vunpack.c.l.b16 %v249
    %v297 = vunpack.c.h.b16 %v249
    %v298 = vpack.c.b16 %v268, %v266
    %v299 = vpack.c.b16 %v269, %v267
    %v300 = vpack.c.b16 %v272, %v270
    %v301 = vpack.c.b16 %v273, %v271
    %v302 = vpack.c.b16 %v276, %v274
    %v303 = vpack.c.b16 %v277, %v275
    %v304 = vpack.c.b16 %v280, %v278
    %v305 = vpack.c.b16 %v281, %v279
    %v306 = vpack.c.b16 %v284, %v282
    %v307 = vpack.c.b16 %v285, %v283
    %v308 = vpack.c.b16 %v288, %v286
    %v309 = vpack.c.b16 %v289, %v287
    %v310 = vpack.c.b16 %v292, %v290
    %v311 = vpack.c.b16 %v293, %v291
    %v312 = vpack.c.b16 %v296, %v294
    %v313 = vpack.c.b16 %v297, %v295
    %330 = vmatprep.subr.bf16.mxu0 %v299
    %331 = vmatpush1.bf16.msra.mxu0 %v298
    %332 = vmatprep.subr.bf16.mxu0 %v301
    %333 = vmatpush1.bf16.msra.mxu0 %v300
    %334 = vmatprep.subr.bf16.mxu0 %v303
    %335 = vmatpush1.bf16.msra.mxu0 %v302
    %336 = vmatprep.subr.bf16.mxu0 %v305
    %337 = vmatpush1.bf16.msra.mxu0 %v304
    %338 = vmatprep.subr.bf16.mxu0 %v307
    %339 = vmatpush1.bf16.msra.mxu0 %v306
    %340 = vmatprep.subr.bf16.mxu0 %v309
    %341 = vmatpush1.bf16.msra.mxu0 %v308
    %342 = vmatprep.subr.bf16.mxu0 %v311
    %343 = vmatpush1.bf16.msra.mxu0 %v310
    %344 = vmatprep.subr.bf16.mxu0 %v313
    %345 = vmatpush1.bf16.msra.mxu0 %v312
    %346 = vmatprep.subr.bf16.mxu0 0
    %347 = vmatpush1.bf16.msra.mxu0 0
    %348 = vmatprep.subr.bf16.mxu0 0
    %349 = vmatpush1.bf16.msra.mxu0 0
    %350 = vmatprep.subr.bf16.mxu0 0
    %351 = vmatpush1.bf16.msra.mxu0 0
    %352 = vmatprep.subr.bf16.mxu0 0
    %353 = vmatpush1.bf16.msra.mxu0 0
    %354 = vmatprep.subr.bf16.mxu0 0
    %355 = vmatpush1.bf16.msra.mxu0 0
    %356 = vmatprep.subr.bf16.mxu0 0
    %357 = vmatpush1.bf16.msra.mxu0 0
    %358 = vmatprep.subr.bf16.mxu0 0
    %359 = vmatpush1.bf16.msra.mxu0 0
    %360 = vmatprep.subr.bf16.mxu0 0
    %361 = vmatpush1.bf16.msra.mxu0 0
    %362 = vmatprep.mubr.bf16.mxu0 0
    %363 = vmatmul.mubr.bf16.gmra.mrb[0].mxu0 %v233
    %v364 = vpop.f32.mrb[0].mxu0
    %v365 = vadd.f32 0.0, %v364
    %v366 = vpop.f32.mrb[0].mxu0
    %v367 = vadd.f32 0.0, %v366
    %v368 = vpop.f32.mrb[0].mxu0
    %v369 = vpop.f32.mrb[0].mxu0
    %370 = vdwg.mxu0
    %v371 = vrot.slane %v365, 4
    %v372 = vadd.f32 %v365, %v371
    %v373 = vrot.slane %v372, 2
    %v374 = vadd.f32 %v372, %v373
    %v375 = vrot.slane %v374, 1
    %v376 = vadd.f32 %v374, %v375
    %v377 = vrot.slane %v367, 4
    %v378 = vadd.f32 %v367, %v377
    %v379 = vrot.slane %v378, 2
    %v380 = vadd.f32 %v378, %v379
    %v381 = vrot.slane %v380, 1
    %v382 = vadd.f32 %v380, %v381
    %v383 = vrcp.pop 8.0
    %v384 = vmul.f32 %v376, %v383
    %v385 = vmul.f32 %v382, %v383
    %v386 = vsub.f32 %v365, %v384
    %v387 = vsub.f32 %v367, %v385
    %v388 = vmul.f32 %v386, %v386
    %v389 = vmul.f32 %v387, %v387
    %v390 = vrot.slane %v388, 4
    %v391 = vadd.f32 %v388, %v390
    %v392 = vrot.slane %v391, 2
    %v393 = vadd.f32 %v391, %v392
    %v394 = vrot.slane %v393, 1
    %v395 = vadd.f32 %v393, %v394
    %v396 = vrot.slane %v389, 4
    %v397 = vadd.f32 %v389, %v396
    %v398 = vrot.slane %v397, 2
    %v399 = vadd.f32 %v397, %v398
    %v400 = vrot.slane %v399, 1
    %v401 = vadd.f32 %v399, %v400
    %v402 = vmul.f32 %v395, %v383
    %v403 = vmul.f32 %v401, %v383
    %v404 = vadd.f32 %v402, 0.8
    %v405 = vadd.f32 %v403, 0.8
    %v406 = vrsqrt.pop %v404
    %v407 = vrsqrt.pop %v405
    %v408 = vmul.f32 %v386, %v406
    %v409 = vmul.f32 %v387, %v407
    %v410 = vld [vmem:[%s4] sm:$0x3]
    %v412 = vlaneseq
    %v413 = vshrl.u32 %v412, 7
    %v414 = vsub.s32 0, %v413
    %v415 = vrot.slane %v410, %v414
    %v416 = vlaneseq
    %v417 = vshrl.u32 %v416, 7
    %v418 = vsub.s32 1, %v417
    %v419 = vrot.slane %v410, %v418
    %v422 = vmul.f32 %v408, %v415
    %v423 = vmul.f32 %v409, %v419
    %v424 = vld [vmem:[#allocation9] sm:$0x3]
    %v426 = vlaneseq
    %v427 = vshrl.u32 %v426, 7
    %v428 = vsub.s32 0, %v427
    %v429 = vrot.slane %v424, %v428
    %v430 = vlaneseq
    %v431 = vshrl.u32 %v430, 7
    %v432 = vsub.s32 1, %v431
    %v433 = vrot.slane %v424, %v432
    %v436 = vadd.f32 %v422, %v429
    %v437 = vadd.f32 %v423, %v433
    %v438 = vmul.f32 %v436, 0.2
    %v439 = vmul.f32 %v437, 0.2
    %v440 = vmax.f32 %v436, %v438
    %v441 = vmax.f32 %v437, %v439
    %v442 = vpack.c.bf16 %v440, %v440
    %v443 = vpack.c.bf16 %v441, %v441
    %v444 = vld [vmem:[#allocation10] sm:$0xff]
    %v445 = vld [vmem:[#allocation10 + $0x8] sm:$0xff]
    %v446 = vld [vmem:[#allocation10 + $0x10] sm:$0xff]
    %v447 = vld [vmem:[#allocation10 + $0x18] sm:$0xff]
    %v448 = vld [vmem:[#allocation10 + $0x20] sm:$0xff]
    %v449 = vld [vmem:[#allocation10 + $0x28] sm:$0xff]
    %v450 = vld [vmem:[#allocation10 + $0x30] sm:$0xff]
    %v451 = vld [vmem:[#allocation10 + $0x38] sm:$0xff]
    %v452 = vld [vmem:[#allocation10 + $0x40] sm:$0xff]
    %v453 = vld [vmem:[#allocation10 + $0x48] sm:$0xff]
    %v454 = vld [vmem:[#allocation10 + $0x50] sm:$0xff]
    %v455 = vld [vmem:[#allocation10 + $0x58] sm:$0xff]
    %v456 = vld [vmem:[#allocation10 + $0x60] sm:$0xff]
    %v457 = vld [vmem:[#allocation10 + $0x68] sm:$0xff]
    %v458 = vld [vmem:[#allocation10 + $0x70] sm:$0xff]
    %v459 = vld [vmem:[#allocation10 + $0x78] sm:$0xff]
    %v460 = vld [vmem:[#allocation10 + $0x80] sm:$0xff]
    %v461 = vld [vmem:[#allocation10 + $0x88] sm:$0xff]
    %v462 = vld [vmem:[#allocation10 + $0x90] sm:$0xff]
    %v463 = vld [vmem:[#allocation10 + $0x98] sm:$0xff]
    %v464 = vld [vmem:[#allocation10 + $0xa0] sm:$0xff]
    %v465 = vld [vmem:[#allocation10 + $0xa8] sm:$0xff]
    %v466 = vld [vmem:[#allocation10 + $0xb0] sm:$0xff]
    %v467 = vld [vmem:[#allocation10 + $0xb8] sm:$0xff]
    %v468 = vld [vmem:[#allocation10 + $0xc0] sm:$0xff]
    %v469 = vld [vmem:[#allocation10 + $0xc8] sm:$0xff]
    %v470 = vld [vmem:[#allocation10 + $0xd0] sm:$0xff]
    %v471 = vld [vmem:[#allocation10 + $0xd8] sm:$0xff]
    %v472 = vld [vmem:[#allocation10 + $0xe0] sm:$0xff]
    %v473 = vld [vmem:[#allocation10 + $0xe8] sm:$0xff]
    %v474 = vld [vmem:[#allocation10 + $0xf0] sm:$0xff]
    %v475 = vld [vmem:[#allocation10 + $0xf8] sm:$0xff]
    %v476 = vld [vmem:[#allocation10 + $0x100] sm:$0xff]
    %v477 = vld [vmem:[#allocation10 + $0x108] sm:$0xff]
    %v478 = vld [vmem:[#allocation10 + $0x110] sm:$0xff]
    %v479 = vld [vmem:[#allocation10 + $0x118] sm:$0xff]
    %v480 = vld [vmem:[#allocation10 + $0x120] sm:$0xff]
    %v481 = vld [vmem:[#allocation10 + $0x128] sm:$0xff]
    %v482 = vld [vmem:[#allocation10 + $0x130] sm:$0xff]
    %v483 = vld [vmem:[#allocation10 + $0x138] sm:$0xff]
    %v484 = vld [vmem:[#allocation10 + $0x140] sm:$0xff]
    %v485 = vld [vmem:[#allocation10 + $0x148] sm:$0xff]
    %v486 = vld [vmem:[#allocation10 + $0x150] sm:$0xff]
    %v487 = vld [vmem:[#allocation10 + $0x158] sm:$0xff]
    %v488 = vld [vmem:[#allocation10 + $0x160] sm:$0xff]
    %v489 = vld [vmem:[#allocation10 + $0x168] sm:$0xff]
    %v490 = vld [vmem:[#allocation10 + $0x170] sm:$0xff]
    %v491 = vld [vmem:[#allocation10 + $0x178] sm:$0xff]
    %v492 = vld [vmem:[#allocation10 + $0x180] sm:$0xff]
    %v493 = vld [vmem:[#allocation10 + $0x188] sm:$0xff]
    %v494 = vld [vmem:[#allocation10 + $0x190] sm:$0xff]
    %v495 = vld [vmem:[#allocation10 + $0x198] sm:$0xff]
    %v496 = vld [vmem:[#allocation10 + $0x1a0] sm:$0xff]
    %v497 = vld [vmem:[#allocation10 + $0x1a8] sm:$0xff]
    %v498 = vld [vmem:[#allocation10 + $0x1b0] sm:$0xff]
    %v499 = vld [vmem:[#allocation10 + $0x1b8] sm:$0xff]
    %v500 = vld [vmem:[#allocation10 + $0x1c0] sm:$0xff]
    %v501 = vld [vmem:[#allocation10 + $0x1c8] sm:$0xff]
    %v502 = vld [vmem:[#allocation10 + $0x1d0] sm:$0xff]
    %v503 = vld [vmem:[#allocation10 + $0x1d8] sm:$0xff]
    %v504 = vld [vmem:[#allocation10 + $0x1e0] sm:$0xff]
    %v505 = vld [vmem:[#allocation10 + $0x1e8] sm:$0xff]
    %v506 = vld [vmem:[#allocation10 + $0x1f0] sm:$0xff]
    %v507 = vld [vmem:[#allocation10 + $0x1f8] sm:$0xff]
    %v572 = vunpack.c.l.b16 %v444
    %v573 = vunpack.c.h.b16 %v444
    %v574 = vunpack.c.l.b16 %v445
    %v575 = vunpack.c.h.b16 %v445
    %v576 = vunpack.c.l.b16 %v446
    %v577 = vunpack.c.h.b16 %v446
    %v578 = vunpack.c.l.b16 %v447
    %v579 = vunpack.c.h.b16 %v447
    %v580 = vunpack.c.l.b16 %v448
    %v581 = vunpack.c.h.b16 %v448
    %v582 = vunpack.c.l.b16 %v449
    %v583 = vunpack.c.h.b16 %v449
    %v584 = vunpack.c.l.b16 %v450
    %v585 = vunpack.c.h.b16 %v450
    %v586 = vunpack.c.l.b16 %v451
    %v587 = vunpack.c.h.b16 %v451
    %v588 = vunpack.c.l.b16 %v452
    %v589 = vunpack.c.h.b16 %v452
    %v590 = vunpack.c.l.b16 %v453
    %v591 = vunpack.c.h.b16 %v453
    %v592 = vunpack.c.l.b16 %v454
    %v593 = vunpack.c.h.b16 %v454
    %v594 = vunpack.c.l.b16 %v455
    %v595 = vunpack.c.h.b16 %v455
    %v596 = vunpack.c.l.b16 %v456
    %v597 = vunpack.c.h.b16 %v456
    %v598 = vunpack.c.l.b16 %v457
    %v599 = vunpack.c.h.b16 %v457
    %v600 = vunpack.c.l.b16 %v458
    %v601 = vunpack.c.h.b16 %v458
    %v602 = vunpack.c.l.b16 %v459
    %v603 = vunpack.c.h.b16 %v459
    %v604 = vunpack.c.l.b16 %v460
    %v605 = vunpack.c.h.b16 %v460
    %v606 = vunpack.c.l.b16 %v461
    %v607 = vunpack.c.h.b16 %v461
    %v608 = vunpack.c.l.b16 %v462
    %v609 = vunpack.c.h.b16 %v462
    %v610 = vunpack.c.l.b16 %v463
    %v611 = vunpack.c.h.b16 %v463
    %v612 = vunpack.c.l.b16 %v464
    %v613 = vunpack.c.h.b16 %v464
    %v614 = vunpack.c.l.b16 %v465
    %v615 = vunpack.c.h.b16 %v465
    %v616 = vunpack.c.l.b16 %v466
    %v617 = vunpack.c.h.b16 %v466
    %v618 = vunpack.c.l.b16 %v467
    %v619 = vunpack.c.h.b16 %v467
    %v620 = vunpack.c.l.b16 %v468
    %v621 = vunpack.c.h.b16 %v468
    %v622 = vunpack.c.l.b16 %v469
    %v623 = vunpack.c.h.b16 %v469
    %v624 = vunpack.c.l.b16 %v470
    %v625 = vunpack.c.h.b16 %v470
    %v626 = vunpack.c.l.b16 %v471
    %v627 = vunpack.c.h.b16 %v471
    %v628 = vunpack.c.l.b16 %v472
    %v629 = vunpack.c.h.b16 %v472
    %v630 = vunpack.c.l.b16 %v473
    %v631 = vunpack.c.h.b16 %v473
    %v632 = vunpack.c.l.b16 %v474
    %v633 = vunpack.c.h.b16 %v474
    %v634 = vunpack.c.l.b16 %v475
    %v635 = vunpack.c.h.b16 %v475
    %v636 = vunpack.c.l.b16 %v476
    %v637 = vunpack.c.h.b16 %v476
    %v638 = vunpack.c.l.b16 %v477
    %v639 = vunpack.c.h.b16 %v477
    %v640 = vunpack.c.l.b16 %v478
    %v641 = vunpack.c.h.b16 %v478
    %v642 = vunpack.c.l.b16 %v479
    %v643 = vunpack.c.h.b16 %v479
    %v644 = vunpack.c.l.b16 %v480
    %v645 = vunpack.c.h.b16 %v480
    %v646 = vunpack.c.l.b16 %v481
    %v647 = vunpack.c.h.b16 %v481
    %v648 = vunpack.c.l.b16 %v482
    %v649 = vunpack.c.h.b16 %v482
    %v650 = vunpack.c.l.b16 %v483
    %v651 = vunpack.c.h.b16 %v483
    %v652 = vunpack.c.l.b16 %v484
    %v653 = vunpack.c.h.b16 %v484
    %v654 = vunpack.c.l.b16 %v485
    %v655 = vunpack.c.h.b16 %v485
    %v656 = vunpack.c.l.b16 %v486
    %v657 = vunpack.c.h.b16 %v486
    %v658 = vunpack.c.l.b16 %v487
    %v659 = vunpack.c.h.b16 %v487
    %v660 = vunpack.c.l.b16 %v488
    %v661 = vunpack.c.h.b16 %v488
    %v662 = vunpack.c.l.b16 %v489
    %v663 = vunpack.c.h.b16 %v489
    %v664 = vunpack.c.l.b16 %v490
    %v665 = vunpack.c.h.b16 %v490
    %v666 = vunpack.c.l.b16 %v491
    %v667 = vunpack.c.h.b16 %v491
    %v668 = vunpack.c.l.b16 %v492
    %v669 = vunpack.c.h.b16 %v492
    %v670 = vunpack.c.l.b16 %v493
    %v671 = vunpack.c.h.b16 %v493
    %v672 = vunpack.c.l.b16 %v494
    %v673 = vunpack.c.h.b16 %v494
    %v674 = vunpack.c.l.b16 %v495
    %v675 = vunpack.c.h.b16 %v495
    %v676 = vunpack.c.l.b16 %v496
    %v677 = vunpack.c.h.b16 %v496
    %v678 = vunpack.c.l.b16 %v497
    %v679 = vunpack.c.h.b16 %v497
    %v680 = vunpack.c.l.b16 %v498
    %v681 = vunpack.c.h.b16 %v498
    %v682 = vunpack.c.l.b16 %v499
    %v683 = vunpack.c.h.b16 %v499
    %v684 = vunpack.c.l.b16 %v500
    %v685 = vunpack.c.h.b16 %v500
    %v686 = vunpack.c.l.b16 %v501
    %v687 = vunpack.c.h.b16 %v501
    %v688 = vunpack.c.l.b16 %v502
    %v689 = vunpack.c.h.b16 %v502
    %v690 = vunpack.c.l.b16 %v503
    %v691 = vunpack.c.h.b16 %v503
    %v692 = vunpack.c.l.b16 %v504
    %v693 = vunpack.c.h.b16 %v504
    %v694 = vunpack.c.l.b16 %v505
    %v695 = vunpack.c.h.b16 %v505
    %v696 = vunpack.c.l.b16 %v506
    %v697 = vunpack.c.h.b16 %v506
    %v698 = vunpack.c.l.b16 %v507
    %v699 = vunpack.c.h.b16 %v507
    %v700 = vpack.c.b16 %v576, %v572
    %v701 = vpack.c.b16 %v577, %v573
    %v702 = vpack.c.b16 %v578, %v574
    %v703 = vpack.c.b16 %v579, %v575
    %v704 = vpack.c.b16 %v584, %v580
    %v705 = vpack.c.b16 %v585, %v581
    %v706 = vpack.c.b16 %v586, %v582
    %v707 = vpack.c.b16 %v587, %v583
    %v708 = vpack.c.b16 %v592, %v588
    %v709 = vpack.c.b16 %v593, %v589
    %v710 = vpack.c.b16 %v594, %v590
    %v711 = vpack.c.b16 %v595, %v591
    %v712 = vpack.c.b16 %v600, %v596
    %v713 = vpack.c.b16 %v601, %v597
    %v714 = vpack.c.b16 %v602, %v598
    %v715 = vpack.c.b16 %v603, %v599
    %v716 = vpack.c.b16 %v608, %v604
    %v717 = vpack.c.b16 %v609, %v605
    %v718 = vpack.c.b16 %v610, %v606
    %v719 = vpack.c.b16 %v611, %v607
    %v720 = vpack.c.b16 %v616, %v612
    %v721 = vpack.c.b16 %v617, %v613
    %v722 = vpack.c.b16 %v618, %v614
    %v723 = vpack.c.b16 %v619, %v615
    %v724 = vpack.c.b16 %v624, %v620
    %v725 = vpack.c.b16 %v625, %v621
    %v726 = vpack.c.b16 %v626, %v622
    %v727 = vpack.c.b16 %v627, %v623
    %v728 = vpack.c.b16 %v632, %v628
    %v729 = vpack.c.b16 %v633, %v629
    %v730 = vpack.c.b16 %v634, %v630
    %v731 = vpack.c.b16 %v635, %v631
    %v732 = vpack.c.b16 %v640, %v636
    %v733 = vpack.c.b16 %v641, %v637
    %v734 = vpack.c.b16 %v642, %v638
    %v735 = vpack.c.b16 %v643, %v639
    %v736 = vpack.c.b16 %v648, %v644
    %v737 = vpack.c.b16 %v649, %v645
    %v738 = vpack.c.b16 %v650, %v646
    %v739 = vpack.c.b16 %v651, %v647
    %v740 = vpack.c.b16 %v656, %v652
    %v741 = vpack.c.b16 %v657, %v653
    %v742 = vpack.c.b16 %v658, %v654
    %v743 = vpack.c.b16 %v659, %v655
    %v744 = vpack.c.b16 %v664, %v660
    %v745 = vpack.c.b16 %v665, %v661
    %v746 = vpack.c.b16 %v666, %v662
    %v747 = vpack.c.b16 %v667, %v663
    %v748 = vpack.c.b16 %v672, %v668
    %v749 = vpack.c.b16 %v673, %v669
    %v750 = vpack.c.b16 %v674, %v670
    %v751 = vpack.c.b16 %v675, %v671
    %v752 = vpack.c.b16 %v680, %v676
    %v753 = vpack.c.b16 %v681, %v677
    %v754 = vpack.c.b16 %v682, %v678
    %v755 = vpack.c.b16 %v683, %v679
    %v756 = vpack.c.b16 %v688, %v684
    %v757 = vpack.c.b16 %v689, %v685
    %v758 = vpack.c.b16 %v690, %v686
    %v759 = vpack.c.b16 %v691, %v687
    %v760 = vpack.c.b16 %v696, %v692
    %v761 = vpack.c.b16 %v697, %v693
    %v762 = vpack.c.b16 %v698, %v694
    %v763 = vpack.c.b16 %v699, %v695
    %828 = vmatprep.subr.bf16.mxu0 %v701
    %829 = vmatpush1.bf16.msra.mxu0 %v700
    %830 = vmatprep.subr.bf16.mxu0 %v705
    %831 = vmatpush1.bf16.msra.mxu0 %v704
    %832 = vmatprep.subr.bf16.mxu0 %v709
    %833 = vmatpush1.bf16.msra.mxu0 %v708
    %834 = vmatprep.subr.bf16.mxu0 %v713
    %835 = vmatpush1.bf16.msra.mxu0 %v712
    %836 = vmatprep.subr.bf16.mxu0 %v717
    %837 = vmatpush1.bf16.msra.mxu0 %v716
    %838 = vmatprep.subr.bf16.mxu0 %v721
    %839 = vmatpush1.bf16.msra.mxu0 %v720
    %840 = vmatprep.subr.bf16.mxu0 %v725
    %841 = vmatpush1.bf16.msra.mxu0 %v724
    %842 = vmatprep.subr.bf16.mxu0 %v729
    %843 = vmatpush1.bf16.msra.mxu0 %v728
    %844 = vmatprep.subr.bf16.mxu0 %v733
    %845 = vmatpush1.bf16.msra.mxu0 %v732
    %846 = vmatprep.subr.bf16.mxu0 %v737
    %847 = vmatpush1.bf16.msra.mxu0 %v736
    %848 = vmatprep.subr.bf16.mxu0 %v741
    %849 = vmatpush1.bf16.msra.mxu0 %v740
    %850 = vmatprep.subr.bf16.mxu0 %v745
    %851 = vmatpush1.bf16.msra.mxu0 %v744
    %852 = vmatprep.subr.bf16.mxu0 %v749
    %853 = vmatpush1.bf16.msra.mxu0 %v748
    %854 = vmatprep.subr.bf16.mxu0 %v753
    %855 = vmatpush1.bf16.msra.mxu0 %v752
    %856 = vmatprep.subr.bf16.mxu0 %v757
    %857 = vmatpush1.bf16.msra.mxu0 %v756
    %858 = vmatprep.subr.bf16.mxu0 %v761
    %859 = vmatpush1.bf16.msra.mxu0 %v760
    %860 = vmatprep.mubr.bf16.mxu0 %v443
    %861 = vmatmul.mubr.bf16.gmra.mrb[0].mxu0 %v442
    %v862 = vpop.f32.mrb[0].mxu0
    %v863 = vadd.f32 0.0, %v862
    %v864 = vpop.f32.mrb[0].mxu0
    %v865 = vadd.f32 0.0, %v864
    %v866 = vpop.f32.mrb[0].mxu0
    %v867 = vpop.f32.mrb[0].mxu0
    %868 = vdwg.mxu0
    %869 = vmatprep.subr.bf16.mxu0 %v703
    %870 = vmatpush1.bf16.msra.mxu0 %v702
    %871 = vmatprep.subr.bf16.mxu0 %v707
    %872 = vmatpush1.bf16.msra.mxu0 %v706
    %873 = vmatprep.subr.bf16.mxu0 %v711
    %874 = vmatpush1.bf16.msra.mxu0 %v710
    %875 = vmatprep.subr.bf16.mxu0 %v715
    %876 = vmatpush1.bf16.msra.mxu0 %v714
    %877 = vmatprep.subr.bf16.mxu0 %v719
    %878 = vmatpush1.bf16.msra.mxu0 %v718
    %879 = vmatprep.subr.bf16.mxu0 %v723
    %880 = vmatpush1.bf16.msra.mxu0 %v722
    %881 = vmatprep.subr.bf16.mxu0 %v727
    %882 = vmatpush1.bf16.msra.mxu0 %v726
    %883 = vmatprep.subr.bf16.mxu0 %v731
    %884 = vmatpush1.bf16.msra.mxu0 %v730
    %885 = vmatprep.subr.bf16.mxu0 %v735
    %886 = vmatpush1.bf16.msra.mxu0 %v734
    %887 = vmatprep.subr.bf16.mxu0 %v739
    %888 = vmatpush1.bf16.msra.mxu0 %v738
    %889 = vmatprep.subr.bf16.mxu0 %v743
    %890 = vmatpush1.bf16.msra.mxu0 %v742
    %891 = vmatprep.subr.bf16.mxu0 %v747
    %892 = vmatpush1.bf16.msra.mxu0 %v746
    %893 = vmatprep.subr.bf16.mxu0 %v751
    %894 = vmatpush1.bf16.msra.mxu0 %v750
    %895 = vmatprep.subr.bf16.mxu0 %v755
    %896 = vmatpush1.bf16.msra.mxu0 %v754
    %897 = vmatprep.subr.bf16.mxu0 %v759
    %898 = vmatpush1.bf16.msra.mxu0 %v758
    %899 = vmatprep.subr.bf16.mxu0 %v763
    %900 = vmatpush1.bf16.msra.mxu0 %v762
    %901 = vmatprep.mubr.bf16.mxu0 %v443
    %902 = vmatmul.mubr.bf16.gmra.mrb[0].mxu0 %v442
    %v903 = vpop.f32.mrb[0].mxu0
    %v904 = vadd.f32 0.0, %v903
    %v905 = vpop.f32.mrb[0].mxu0
    %v906 = vadd.f32 0.0, %v905
    %v907 = vpop.f32.mrb[0].mxu0
    %v908 = vpop.f32.mrb[0].mxu0
    %909 = vdwg.mxu0
    %v910 = vrot.slane %v863, 4
    %v911 = vadd.f32 %v863, %v910
    %v912 = vrot.slane %v911, 2
    %v913 = vadd.f32 %v911, %v912
    %v914 = vrot.slane %v913, 1
    %v915 = vadd.f32 %v913, %v914
    %v916 = vrot.slane %v865, 4
    %v917 = vadd.f32 %v865, %v916
    %v918 = vrot.slane %v917, 2
    %v919 = vadd.f32 %v917, %v918
    %v920 = vrot.slane %v919, 1
    %v921 = vadd.f32 %v919, %v920
    %v922 = vrot.slane %v904, 4
    %v923 = vadd.f32 %v904, %v922
    %v924 = vrot.slane %v923, 2
    %v925 = vadd.f32 %v923, %v924
    %v926 = vrot.slane %v925, 1
    %v927 = vadd.f32 %v925, %v926
    %v928 = vrot.slane %v906, 4
    %v929 = vadd.f32 %v906, %v928
    %v930 = vrot.slane %v929, 2
    %v931 = vadd.f32 %v929, %v930
    %v932 = vrot.slane %v931, 1
    %v933 = vadd.f32 %v931, %v932
    %v934 = vmul.f32 %v915, %v383
    %v935 = vmul.f32 %v921, %v383
    %v936 = vmul.f32 %v927, %v383
    %v937 = vmul.f32 %v933, %v383
    %v938 = vsub.f32 %v863, %v934
    %v939 = vsub.f32 %v865, %v935
    %v940 = vsub.f32 %v904, %v936
    %v941 = vsub.f32 %v906, %v937
    %v942 = vmul.f32 %v938, %v938
    %v943 = vmul.f32 %v939, %v939
    %v944 = vmul.f32 %v940, %v940
    %v945 = vmul.f32 %v941, %v941
    %v946 = vrot.slane %v942, 4
    %v947 = vadd.f32 %v942, %v946
    %v948 = vrot.slane %v947, 2
    %v949 = vadd.f32 %v947, %v948
    %v950 = vrot.slane %v949, 1
    %v951 = vadd.f32 %v949, %v950
    %v952 = vrot.slane %v943, 4
    %v953 = vadd.f32 %v943, %v952
    %v954 = vrot.slane %v953, 2
    %v955 = vadd.f32 %v953, %v954
    %v956 = vrot.slane %v955, 1
    %v957 = vadd.f32 %v955, %v956
    %v958 = vrot.slane %v944, 4
    %v959 = vadd.f32 %v944, %v958
    %v960 = vrot.slane %v959, 2
    %v961 = vadd.f32 %v959, %v960
    %v962 = vrot.slane %v961, 1
    %v963 = vadd.f32 %v961, %v962
    %v964 = vrot.slane %v945, 4
    %v965 = vadd.f32 %v945, %v964
    %v966 = vrot.slane %v965, 2
    %v967 = vadd.f32 %v965, %v966
    %v968 = vrot.slane %v967, 1
    %v969 = vadd.f32 %v967, %v968
    %v970 = vmul.f32 %v951, %v383
    %v971 = vmul.f32 %v957, %v383
    %v972 = vmul.f32 %v963, %v383
    %v973 = vmul.f32 %v969, %v383
    %v974 = vadd.f32 %v970, 0.8
    %v975 = vadd.f32 %v971, 0.8
    %v976 = vadd.f32 %v972, 0.8
    %v977 = vadd.f32 %v973, 0.8
    %v978 = vrsqrt.pop %v974
    %v979 = vrsqrt.pop %v975
    %v980 = vrsqrt.pop %v976
    %v981 = vrsqrt.pop %v977
    %v982 = vmul.f32 %v938, %v978
    %v983 = vmul.f32 %v939, %v979
    %v984 = vmul.f32 %v940, %v980
    %v985 = vmul.f32 %v941, %v981
    %v986 = vld [vmem:[%s7] sm:$0xf]
    %v988 = vlaneseq
    %v989 = vshrl.u32 %v988, 7
    %v990 = vsub.s32 0, %v989
    %v991 = vrot.slane %v986, %v990
    %v992 = vlaneseq
    %v993 = vshrl.u32 %v992, 7
    %v994 = vsub.s32 1, %v993
    %v995 = vrot.slane %v986, %v994
    %v996 = vlaneseq
    %v997 = vshrl.u32 %v996, 7
    %v998 = vsub.s32 2, %v997
    %v999 = vrot.slane %v986, %v998
    %v1000 = vlaneseq
    %v1001 = vshrl.u32 %v1000, 7
    %v1002 = vsub.s32 3, %v1001
    %v1003 = vrot.slane %v986, %v1002
    %v1008 = vmul.f32 %v982, %v991
    %v1009 = vmul.f32 %v983, %v995
    %v1010 = vmul.f32 %v984, %v999
    %v1011 = vmul.f32 %v985, %v1003
    %v1012 = vld [vmem:[#allocation12] sm:$0xf]
    %v1014 = vlaneseq
    %v1015 = vshrl.u32 %v1014, 7
    %v1016 = vsub.s32 0, %v1015
    %v1017 = vrot.slane %v1012, %v1016
    %v1018 = vlaneseq
    %v1019 = vshrl.u32 %v1018, 7
    %v1020 = vsub.s32 1, %v1019
    %v1021 = vrot.slane %v1012, %v1020
    %v1022 = vlaneseq
    %v1023 = vshrl.u32 %v1022, 7
    %v1024 = vsub.s32 2, %v1023
    %v1025 = vrot.slane %v1012, %v1024
    %v1026 = vlaneseq
    %v1027 = vshrl.u32 %v1026, 7
    %v1028 = vsub.s32 3, %v1027
    %v1029 = vrot.slane %v1012, %v1028
    %v1034 = vadd.f32 %v1008, %v1017
    %v1035 = vadd.f32 %v1009, %v1021
    %v1036 = vadd.f32 %v1010, %v1025
    %v1037 = vadd.f32 %v1011, %v1029
    %v1038 = vmul.f32 %v1034, 0.2
    %v1039 = vmul.f32 %v1035, 0.2
    %v1040 = vmul.f32 %v1036, 0.2
    %v1041 = vmul.f32 %v1037, 0.2
    %v1042 = vmax.f32 %v1034, %v1038
    %v1043 = vmax.f32 %v1035, %v1039
    %v1044 = vmax.f32 %v1036, %v1040
    %v1045 = vmax.f32 %v1037, %v1041
    %v1046 = vpack.c.bf16 %v1042, %v1042
    %v1047 = vpack.c.bf16 %v1043, %v1043
    %v1048 = vpack.c.bf16 %v1044, %v1044
    %v1049 = vpack.c.bf16 %v1045, %v1045
    %v1050 = vld [vmem:[#allocation13] sm:$0xff]
    %v1051 = vld [vmem:[#allocation13 + $0x8] sm:$0xff]
    %v1052 = vld [vmem:[#allocation13 + $0x10] sm:$0xff]
    %v1053 = vld [vmem:[#allocation13 + $0x18] sm:$0xff]
    %v1054 = vld [vmem:[#allocation13 + $0x20] sm:$0xff]
    %v1055 = vld [vmem:[#allocation13 + $0x28] sm:$0xff]
    %v1056 = vld [vmem:[#allocation13 + $0x30] sm:$0xff]
    %v1057 = vld [vmem:[#allocation13 + $0x38] sm:$0xff]
    %v1058 = vld [vmem:[#allocation13 + $0x40] sm:$0xff]
    %v1059 = vld [vmem:[#allocation13 + $0x48] sm:$0xff]
    %v1060 = vld [vmem:[#allocation13 + $0x50] sm:$0xff]
    %v1061 = vld [vmem:[#allocation13 + $0x58] sm:$0xff]
    %v1062 = vld [vmem:[#allocation13 + $0x60] sm:$0xff]
    %v1063 = vld [vmem:[#allocation13 + $0x68] sm:$0xff]
    %v1064 = vld [vmem:[#allocation13 + $0x70] sm:$0xff]
    %v1065 = vld [vmem:[#allocation13 + $0x78] sm:$0xff]
    %v1066 = vld [vmem:[#allocation13 + $0x80] sm:$0xff]
    %v1067 = vld [vmem:[#allocation13 + $0x88] sm:$0xff]
    %v1068 = vld [vmem:[#allocation13 + $0x90] sm:$0xff]
    %v1069 = vld [vmem:[#allocation13 + $0x98] sm:$0xff]
    %v1070 = vld [vmem:[#allocation13 + $0xa0] sm:$0xff]
    %v1071 = vld [vmem:[#allocation13 + $0xa8] sm:$0xff]
    %v1072 = vld [vmem:[#allocation13 + $0xb0] sm:$0xff]
    %v1073 = vld [vmem:[#allocation13 + $0xb8] sm:$0xff]
    %v1074 = vld [vmem:[#allocation13 + $0xc0] sm:$0xff]
    %v1075 = vld [vmem:[#allocation13 + $0xc8] sm:$0xff]
    %v1076 = vld [vmem:[#allocation13 + $0xd0] sm:$0xff]
    %v1077 = vld [vmem:[#allocation13 + $0xd8] sm:$0xff]
    %v1078 = vld [vmem:[#allocation13 + $0xe0] sm:$0xff]
    %v1079 = vld [vmem:[#allocation13 + $0xe8] sm:$0xff]
    %v1080 = vld [vmem:[#allocation13 + $0xf0] sm:$0xff]
    %v1081 = vld [vmem:[#allocation13 + $0xf8] sm:$0xff]
    %v1082 = vld [vmem:[#allocation13 + $0x100] sm:$0xff]
    %v1083 = vld [vmem:[#allocation13 + $0x108] sm:$0xff]
    %v1084 = vld [vmem:[#allocation13 + $0x110] sm:$0xff]
    %v1085 = vld [vmem:[#allocation13 + $0x118] sm:$0xff]
    %v1086 = vld [vmem:[#allocation13 + $0x120] sm:$0xff]
    %v1087 = vld [vmem:[#allocation13 + $0x128] sm:$0xff]
    %v1088 = vld [vmem:[#allocation13 + $0x130] sm:$0xff]
    %v1089 = vld [vmem:[#allocation13 + $0x138] sm:$0xff]
    %v1090 = vld [vmem:[#allocation13 + $0x140] sm:$0xff]
    %v1091 = vld [vmem:[#allocation13 + $0x148] sm:$0xff]
    %v1092 = vld [vmem:[#allocation13 + $0x150] sm:$0xff]
    %v1093 = vld [vmem:[#allocation13 + $0x158] sm:$0xff]
    %v1094 = vld [vmem:[#allocation13 + $0x160] sm:$0xff]
    %v1095 = vld [vmem:[#allocation13 + $0x168] sm:$0xff]
    %v1096 = vld [vmem:[#allocation13 + $0x170] sm:$0xff]
    %v1097 = vld [vmem:[#allocation13 + $0x178] sm:$0xff]
    %v1098 = vld [vmem:[#allocation13 + $0x180] sm:$0xff]
    %v1099 = vld [vmem:[#allocation13 + $0x188] sm:$0xff]
    %v1100 = vld [vmem:[#allocation13 + $0x190] sm:$0xff]
    %v1101 = vld [vmem:[#allocation13 + $0x198] sm:$0xff]
    %v1102 = vld [vmem:[#allocation13 + $0x1a0] sm:$0xff]
    %v1103 = vld [vmem:[#allocation13 + $0x1a8] sm:$0xff]
    %v1104 = vld [vmem:[#allocation13 + $0x1b0] sm:$0xff]
    %v1105 = vld [vmem:[#allocation13 + $0x1b8] sm:$0xff]
    %v1106 = vld [vmem:[#allocation13 + $0x1c0] sm:$0xff]
    %v1107 = vld [vmem:[#allocation13 + $0x1c8] sm:$0xff]
    %v1108 = vld [vmem:[#allocation13 + $0x1d0] sm:$0xff]
    %v1109 = vld [vmem:[#allocation13 + $0x1d8] sm:$0xff]
    %v1110 = vld [vmem:[#allocation13 + $0x1e0] sm:$0xff]
    %v1111 = vld [vmem:[#allocation13 + $0x1e8] sm:$0xff]
    %v1112 = vld [vmem:[#allocation13 + $0x1f0] sm:$0xff]
    %v1113 = vld [vmem:[#allocation13 + $0x1f8] sm:$0xff]
    %v1114 = vld [vmem:[#allocation13 + $0x200] sm:$0xff]
    %v1115 = vld [vmem:[#allocation13 + $0x208] sm:$0xff]
    %v1116 = vld [vmem:[#allocation13 + $0x210] sm:$0xff]
    %v1117 = vld [vmem:[#allocation13 + $0x218] sm:$0xff]
    %v1118 = vld [vmem:[#allocation13 + $0x220] sm:$0xff]
    %v1119 = vld [vmem:[#allocation13 + $0x228] sm:$0xff]
    %v1120 = vld [vmem:[#allocation13 + $0x230] sm:$0xff]
    %v1121 = vld [vmem:[#allocation13 + $0x238] sm:$0xff]
    %v1122 = vld [vmem:[#allocation13 + $0x240] sm:$0xff]
    %v1123 = vld [vmem:[#allocation13 + $0x248] sm:$0xff]
    %v1124 = vld [vmem:[#allocation13 + $0x250] sm:$0xff]
    %v1125 = vld [vmem:[#allocation13 + $0x258] sm:$0xff]
    %v1126 = vld [vmem:[#allocation13 + $0x260] sm:$0xff]
    %v1127 = vld [vmem:[#allocation13 + $0x268] sm:$0xff]
    %v1128 = vld [vmem:[#allocation13 + $0x270] sm:$0xff]
    %v1129 = vld [vmem:[#allocation13 + $0x278] sm:$0xff]
    %v1130 = vld [vmem:[#allocation13 + $0x280] sm:$0xff]
    %v1131 = vld [vmem:[#allocation13 + $0x288] sm:$0xff]
    %v1132 = vld [vmem:[#allocation13 + $0x290] sm:$0xff]
    %v1133 = vld [vmem:[#allocation13 + $0x298] sm:$0xff]
    %v1134 = vld [vmem:[#allocation13 + $0x2a0] sm:$0xff]
    %v1135 = vld [vmem:[#allocation13 + $0x2a8] sm:$0xff]
    %v1136 = vld [vmem:[#allocation13 + $0x2b0] sm:$0xff]
    %v1137 = vld [vmem:[#allocation13 + $0x2b8] sm:$0xff]
    %v1138 = vld [vmem:[#allocation13 + $0x2c0] sm:$0xff]
    %v1139 = vld [vmem:[#allocation13 + $0x2c8] sm:$0xff]
    %v1140 = vld [vmem:[#allocation13 + $0x2d0] sm:$0xff]
    %v1141 = vld [vmem:[#allocation13 + $0x2d8] sm:$0xff]
    %v1142 = vld [vmem:[#allocation13 + $0x2e0] sm:$0xff]
    %v1143 = vld [vmem:[#allocation13 + $0x2e8] sm:$0xff]
    %v1144 = vld [vmem:[#allocation13 + $0x2f0] sm:$0xff]
    %v1145 = vld [vmem:[#allocation13 + $0x2f8] sm:$0xff]
    %v1146 = vld [vmem:[#allocation13 + $0x300] sm:$0xff]
    %v1147 = vld [vmem:[#allocation13 + $0x308] sm:$0xff]
    %v1148 = vld [vmem:[#allocation13 + $0x310] sm:$0xff]
    %v1149 = vld [vmem:[#allocation13 + $0x318] sm:$0xff]
    %v1150 = vld [vmem:[#allocation13 + $0x320] sm:$0xff]
    %v1151 = vld [vmem:[#allocation13 + $0x328] sm:$0xff]
    %v1152 = vld [vmem:[#allocation13 + $0x330] sm:$0xff]
    %v1153 = vld [vmem:[#allocation13 + $0x338] sm:$0xff]
    %v1154 = vld [vmem:[#allocation13 + $0x340] sm:$0xff]
    %v1155 = vld [vmem:[#allocation13 + $0x348] sm:$0xff]
    %v1156 = vld [vmem:[#allocation13 + $0x350] sm:$0xff]
    %v1157 = vld [vmem:[#allocation13 + $0x358] sm:$0xff]
    %v1158 = vld [vmem:[#allocation13 + $0x360] sm:$0xff]
    %v1159 = vld [vmem:[#allocation13 + $0x368] sm:$0xff]
    %v1160 = vld [vmem:[#allocation13 + $0x370] sm:$0xff]
    %v1161 = vld [vmem:[#allocation13 + $0x378] sm:$0xff]
    %v1162 = vld [vmem:[#allocation13 + $0x380] sm:$0xff]
    %v1163 = vld [vmem:[#allocation13 + $0x388] sm:$0xff]
    %v1164 = vld [vmem:[#allocation13 + $0x390] sm:$0xff]
    %v1165 = vld [vmem:[#allocation13 + $0x398] sm:$0xff]
    %v1166 = vld [vmem:[#allocation13 + $0x3a0] sm:$0xff]
    %v1167 = vld [vmem:[#allocation13 + $0x3a8] sm:$0xff]
    %v1168 = vld [vmem:[#allocation13 + $0x3b0] sm:$0xff]
    %v1169 = vld [vmem:[#allocation13 + $0x3b8] sm:$0xff]
    %v1170 = vld [vmem:[#allocation13 + $0x3c0] sm:$0xff]
    %v1171 = vld [vmem:[#allocation13 + $0x3c8] sm:$0xff]
    %v1172 = vld [vmem:[#allocation13 + $0x3d0] sm:$0xff]
    %v1173 = vld [vmem:[#allocation13 + $0x3d8] sm:$0xff]
    %v1174 = vld [vmem:[#allocation13 + $0x3e0] sm:$0xff]
    %v1175 = vld [vmem:[#allocation13 + $0x3e8] sm:$0xff]
    %v1176 = vld [vmem:[#allocation13 + $0x3f0] sm:$0xff]
    %v1177 = vld [vmem:[#allocation13 + $0x3f8] sm:$0xff]
    %v1178 = vld [vmem:[#allocation13 + $0x400] sm:$0xff]
    %v1179 = vld [vmem:[#allocation13 + $0x408] sm:$0xff]
    %v1180 = vld [vmem:[#allocation13 + $0x410] sm:$0xff]
    %v1181 = vld [vmem:[#allocation13 + $0x418] sm:$0xff]
    %v1182 = vld [vmem:[#allocation13 + $0x420] sm:$0xff]
    %v1183 = vld [vmem:[#allocation13 + $0x428] sm:$0xff]
    %v1184 = vld [vmem:[#allocation13 + $0x430] sm:$0xff]
    %v1185 = vld [vmem:[#allocation13 + $0x438] sm:$0xff]
    %v1186 = vld [vmem:[#allocation13 + $0x440] sm:$0xff]
    %v1187 = vld [vmem:[#allocation13 + $0x448] sm:$0xff]
    %v1188 = vld [vmem:[#allocation13 + $0x450] sm:$0xff]
    %v1189 = vld [vmem:[#allocation13 + $0x458] sm:$0xff]
    %v1190 = vld [vmem:[#allocation13 + $0x460] sm:$0xff]
    %v1191 = vld [vmem:[#allocation13 + $0x468] sm:$0xff]
    %v1192 = vld [vmem:[#allocation13 + $0x470] sm:$0xff]
    %v1193 = vld [vmem:[#allocation13 + $0x478] sm:$0xff]
    %v1194 = vld [vmem:[#allocation13 + $0x480] sm:$0xff]
    %v1195 = vld [vmem:[#allocation13 + $0x488] sm:$0xff]
    %v1196 = vld [vmem:[#allocation13 + $0x490] sm:$0xff]
    %v1197 = vld [vmem:[#allocation13 + $0x498] sm:$0xff]
    %v1198 = vld [vmem:[#allocation13 + $0x4a0] sm:$0xff]
    %v1199 = vld [vmem:[#allocation13 + $0x4a8] sm:$0xff]
    %v1200 = vld [vmem:[#allocation13 + $0x4b0] sm:$0xff]
    %v1201 = vld [vmem:[#allocation13 + $0x4b8] sm:$0xff]
    %v1202 = vld [vmem:[#allocation13 + $0x4c0] sm:$0xff]
    %v1203 = vld [vmem:[#allocation13 + $0x4c8] sm:$0xff]
    %v1204 = vld [vmem:[#allocation13 + $0x4d0] sm:$0xff]
    %v1205 = vld [vmem:[#allocation13 + $0x4d8] sm:$0xff]
    %v1206 = vld [vmem:[#allocation13 + $0x4e0] sm:$0xff]
    %v1207 = vld [vmem:[#allocation13 + $0x4e8] sm:$0xff]
    %v1208 = vld [vmem:[#allocation13 + $0x4f0] sm:$0xff]
    %v1209 = vld [vmem:[#allocation13 + $0x4f8] sm:$0xff]
    %v1210 = vld [vmem:[#allocation13 + $0x500] sm:$0xff]
    %v1211 = vld [vmem:[#allocation13 + $0x508] sm:$0xff]
    %v1212 = vld [vmem:[#allocation13 + $0x510] sm:$0xff]
    %v1213 = vld [vmem:[#allocation13 + $0x518] sm:$0xff]
    %v1214 = vld [vmem:[#allocation13 + $0x520] sm:$0xff]
    %v1215 = vld [vmem:[#allocation13 + $0x528] sm:$0xff]
    %v1216 = vld [vmem:[#allocation13 + $0x530] sm:$0xff]
    %v1217 = vld [vmem:[#allocation13 + $0x538] sm:$0xff]
    %v1218 = vld [vmem:[#allocation13 + $0x540] sm:$0xff]
    %v1219 = vld [vmem:[#allocation13 + $0x548] sm:$0xff]
    %v1220 = vld [vmem:[#allocation13 + $0x550] sm:$0xff]
    %v1221 = vld [vmem:[#allocation13 + $0x558] sm:$0xff]
    %v1222 = vld [vmem:[#allocation13 + $0x560] sm:$0xff]
    %v1223 = vld [vmem:[#allocation13 + $0x568] sm:$0xff]
    %v1224 = vld [vmem:[#allocation13 + $0x570] sm:$0xff]
    %v1225 = vld [vmem:[#allocation13 + $0x578] sm:$0xff]
    %v1226 = vld [vmem:[#allocation13 + $0x580] sm:$0xff]
    %v1227 = vld [vmem:[#allocation13 + $0x588] sm:$0xff]
    %v1228 = vld [vmem:[#allocation13 + $0x590] sm:$0xff]
    %v1229 = vld [vmem:[#allocation13 + $0x598] sm:$0xff]
    %v1230 = vld [vmem:[#allocation13 + $0x5a0] sm:$0xff]
    %v1231 = vld [vmem:[#allocation13 + $0x5a8] sm:$0xff]
    %v1232 = vld [vmem:[#allocation13 + $0x5b0] sm:$0xff]
    %v1233 = vld [vmem:[#allocation13 + $0x5b8] sm:$0xff]
    %v1234 = vld [vmem:[#allocation13 + $0x5c0] sm:$0xff]
    %v1235 = vld [vmem:[#allocation13 + $0x5c8] sm:$0xff]
    %v1236 = vld [vmem:[#allocation13 + $0x5d0] sm:$0xff]
    %v1237 = vld [vmem:[#allocation13 + $0x5d8] sm:$0xff]
    %v1238 = vld [vmem:[#allocation13 + $0x5e0] sm:$0xff]
    %v1239 = vld [vmem:[#allocation13 + $0x5e8] sm:$0xff]
    %v1240 = vld [vmem:[#allocation13 + $0x5f0] sm:$0xff]
    %v1241 = vld [vmem:[#allocation13 + $0x5f8] sm:$0xff]
    %v1242 = vld [vmem:[#allocation13 + $0x600] sm:$0xff]
    %v1243 = vld [vmem:[#allocation13 + $0x608] sm:$0xff]
    %v1244 = vld [vmem:[#allocation13 + $0x610] sm:$0xff]
    %v1245 = vld [vmem:[#allocation13 + $0x618] sm:$0xff]
    %v1246 = vld [vmem:[#allocation13 + $0x620] sm:$0xff]
    %v1247 = vld [vmem:[#allocation13 + $0x628] sm:$0xff]
    %v1248 = vld [vmem:[#allocation13 + $0x630] sm:$0xff]
    %v1249 = vld [vmem:[#allocation13 + $0x638] sm:$0xff]
    %v1250 = vld [vmem:[#allocation13 + $0x640] sm:$0xff]
    %v1251 = vld [vmem:[#allocation13 + $0x648] sm:$0xff]
    %v1252 = vld [vmem:[#allocation13 + $0x650] sm:$0xff]
    %v1253 = vld [vmem:[#allocation13 + $0x658] sm:$0xff]
    %v1254 = vld [vmem:[#allocation13 + $0x660] sm:$0xff]
    %v1255 = vld [vmem:[#allocation13 + $0x668] sm:$0xff]
    %v1256 = vld [vmem:[#allocation13 + $0x670] sm:$0xff]
    %v1257 = vld [vmem:[#allocation13 + $0x678] sm:$0xff]
    %v1258 = vld [vmem:[#allocation13 + $0x680] sm:$0xff]
    %v1259 = vld [vmem:[#allocation13 + $0x688] sm:$0xff]
    %v1260 = vld [vmem:[#allocation13 + $0x690] sm:$0xff]
    %v1261 = vld [vmem:[#allocation13 + $0x698] sm:$0xff]
    %v1262 = vld [vmem:[#allocation13 + $0x6a0] sm:$0xff]
    %v1263 = vld [vmem:[#allocation13 + $0x6a8] sm:$0xff]
    %v1264 = vld [vmem:[#allocation13 + $0x6b0] sm:$0xff]
    %v1265 = vld [vmem:[#allocation13 + $0x6b8] sm:$0xff]
    %v1266 = vld [vmem:[#allocation13 + $0x6c0] sm:$0xff]
    %v1267 = vld [vmem:[#allocation13 + $0x6c8] sm:$0xff]
    %v1268 = vld [vmem:[#allocation13 + $0x6d0] sm:$0xff]
    %v1269 = vld [vmem:[#allocation13 + $0x6d8] sm:$0xff]
    %v1270 = vld [vmem:[#allocation13 + $0x6e0] sm:$0xff]
    %v1271 = vld [vmem:[#allocation13 + $0x6e8] sm:$0xff]
    %v1272 = vld [vmem:[#allocation13 + $0x6f0] sm:$0xff]
    %v1273 = vld [vmem:[#allocation13 + $0x6f8] sm:$0xff]
    %v1274 = vld [vmem:[#allocation13 + $0x700] sm:$0xff]
    %v1275 = vld [vmem:[#allocation13 + $0x708] sm:$0xff]
    %v1276 = vld [vmem:[#allocation13 + $0x710] sm:$0xff]
    %v1277 = vld [vmem:[#allocation13 + $0x718] sm:$0xff]
    %v1278 = vld [vmem:[#allocation13 + $0x720] sm:$0xff]
    %v1279 = vld [vmem:[#allocation13 + $0x728] sm:$0xff]
    %v1280 = vld [vmem:[#allocation13 + $0x730] sm:$0xff]
    %v1281 = vld [vmem:[#allocation13 + $0x738] sm:$0xff]
    %v1282 = vld [vmem:[#allocation13 + $0x740] sm:$0xff]
    %v1283 = vld [vmem:[#allocation13 + $0x748] sm:$0xff]
    %v1284 = vld [vmem:[#allocation13 + $0x750] sm:$0xff]
    %v1285 = vld [vmem:[#allocation13 + $0x758] sm:$0xff]
    %v1286 = vld [vmem:[#allocation13 + $0x760] sm:$0xff]
    %v1287 = vld [vmem:[#allocation13 + $0x768] sm:$0xff]
    %v1288 = vld [vmem:[#allocation13 + $0x770] sm:$0xff]
    %v1289 = vld [vmem:[#allocation13 + $0x778] sm:$0xff]
    %v1290 = vld [vmem:[#allocation13 + $0x780] sm:$0xff]
    %v1291 = vld [vmem:[#allocation13 + $0x788] sm:$0xff]
    %v1292 = vld [vmem:[#allocation13 + $0x790] sm:$0xff]
    %v1293 = vld [vmem:[#allocation13 + $0x798] sm:$0xff]
    %v1294 = vld [vmem:[#allocation13 + $0x7a0] sm:$0xff]
    %v1295 = vld [vmem:[#allocation13 + $0x7a8] sm:$0xff]
    %v1296 = vld [vmem:[#allocation13 + $0x7b0] sm:$0xff]
    %v1297 = vld [vmem:[#allocation13 + $0x7b8] sm:$0xff]
    %v1298 = vld [vmem:[#allocation13 + $0x7c0] sm:$0xff]
    %v1299 = vld [vmem:[#allocation13 + $0x7c8] sm:$0xff]
    %v1300 = vld [vmem:[#allocation13 + $0x7d0] sm:$0xff]
    %v1301 = vld [vmem:[#allocation13 + $0x7d8] sm:$0xff]
    %v1302 = vld [vmem:[#allocation13 + $0x7e0] sm:$0xff]
    %v1303 = vld [vmem:[#allocation13 + $0x7e8] sm:$0xff]
    %v1304 = vld [vmem:[#allocation13 + $0x7f0] sm:$0xff]
    %v1305 = vld [vmem:[#allocation13 + $0x7f8] sm:$0xff]
    %v1562 = vunpack.c.l.b16 %v1050
    %v1563 = vunpack.c.h.b16 %v1050
    %v1564 = vunpack.c.l.b16 %v1051
    %v1565 = vunpack.c.h.b16 %v1051
    %v1566 = vunpack.c.l.b16 %v1052
    %v1567 = vunpack.c.h.b16 %v1052
    %v1568 = vunpack.c.l.b16 %v1053
    %v1569 = vunpack.c.h.b16 %v1053
    %v1570 = vunpack.c.l.b16 %v1054
    %v1571 = vunpack.c.h.b16 %v1054
    %v1572 = vunpack.c.l.b16 %v1055
    %v1573 = vunpack.c.h.b16 %v1055
    %v1574 = vunpack.c.l.b16 %v1056
    %v1575 = vunpack.c.h.b16 %v1056
    %v1576 = vunpack.c.l.b16 %v1057
    %v1577 = vunpack.c.h.b16 %v1057
    %v1578 = vunpack.c.l.b16 %v1058
    %v1579 = vunpack.c.h.b16 %v1058
    %v1580 = vunpack.c.l.b16 %v1059
    %v1581 = vunpack.c.h.b16 %v1059
    %v1582 = vunpack.c.l.b16 %v1060
    %v1583 = vunpack.c.h.b16 %v1060
    %v1584 = vunpack.c.l.b16 %v1061
    %v1585 = vunpack.c.h.b16 %v1061
    %v1586 = vunpack.c.l.b16 %v1062
    %v1587 = vunpack.c.h.b16 %v1062
    %v1588 = vunpack.c.l.b16 %v1063
    %v1589 = vunpack.c.h.b16 %v1063
    %v1590 = vunpack.c.l.b16 %v1064
    %v1591 = vunpack.c.h.b16 %v1064
    %v1592 = vunpack.c.l.b16 %v1065
    %v1593 = vunpack.c.h.b16 %v1065
    %v1594 = vunpack.c.l.b16 %v1066
    %v1595 = vunpack.c.h.b16 %v1066
    %v1596 = vunpack.c.l.b16 %v1067
    %v1597 = vunpack.c.h.b16 %v1067
    %v1598 = vunpack.c.l.b16 %v1068
    %v1599 = vunpack.c.h.b16 %v1068
    %v1600 = vunpack.c.l.b16 %v1069
    %v1601 = vunpack.c.h.b16 %v1069
    %v1602 = vunpack.c.l.b16 %v1070
    %v1603 = vunpack.c.h.b16 %v1070
    %v1604 = vunpack.c.l.b16 %v1071
    %v1605 = vunpack.c.h.b16 %v1071
    %v1606 = vunpack.c.l.b16 %v1072
    %v1607 = vunpack.c.h.b16 %v1072
    %v1608 = vunpack.c.l.b16 %v1073
    %v1609 = vunpack.c.h.b16 %v1073
    %v1610 = vunpack.c.l.b16 %v1074
    %v1611 = vunpack.c.h.b16 %v1074
    %v1612 = vunpack.c.l.b16 %v1075
    %v1613 = vunpack.c.h.b16 %v1075
    %v1614 = vunpack.c.l.b16 %v1076
    %v1615 = vunpack.c.h.b16 %v1076
    %v1616 = vunpack.c.l.b16 %v1077
    %v1617 = vunpack.c.h.b16 %v1077
    %v1618 = vunpack.c.l.b16 %v1078
    %v1619 = vunpack.c.h.b16 %v1078
    %v1620 = vunpack.c.l.b16 %v1079
    %v1621 = vunpack.c.h.b16 %v1079
    %v1622 = vunpack.c.l.b16 %v1080
    %v1623 = vunpack.c.h.b16 %v1080
    %v1624 = vunpack.c.l.b16 %v1081
    %v1625 = vunpack.c.h.b16 %v1081
    %v1626 = vunpack.c.l.b16 %v1082
    %v1627 = vunpack.c.h.b16 %v1082
    %v1628 = vunpack.c.l.b16 %v1083
    %v1629 = vunpack.c.h.b16 %v1083
    %v1630 = vunpack.c.l.b16 %v1084
    %v1631 = vunpack.c.h.b16 %v1084
    %v1632 = vunpack.c.l.b16 %v1085
    %v1633 = vunpack.c.h.b16 %v1085
    %v1634 = vunpack.c.l.b16 %v1086
    %v1635 = vunpack.c.h.b16 %v1086
    %v1636 = vunpack.c.l.b16 %v1087
    %v1637 = vunpack.c.h.b16 %v1087
    %v1638 = vunpack.c.l.b16 %v1088
    %v1639 = vunpack.c.h.b16 %v1088
    %v1640 = vunpack.c.l.b16 %v1089
    %v1641 = vunpack.c.h.b16 %v1089
    %v1642 = vunpack.c.l.b16 %v1090
    %v1643 = vunpack.c.h.b16 %v1090
    %v1644 = vunpack.c.l.b16 %v1091
    %v1645 = vunpack.c.h.b16 %v1091
    %v1646 = vunpack.c.l.b16 %v1092
    %v1647 = vunpack.c.h.b16 %v1092
    %v1648 = vunpack.c.l.b16 %v1093
    %v1649 = vunpack.c.h.b16 %v1093
    %v1650 = vunpack.c.l.b16 %v1094
    %v1651 = vunpack.c.h.b16 %v1094
    %v1652 = vunpack.c.l.b16 %v1095
    %v1653 = vunpack.c.h.b16 %v1095
    %v1654 = vunpack.c.l.b16 %v1096
    %v1655 = vunpack.c.h.b16 %v1096
    %v1656 = vunpack.c.l.b16 %v1097
    %v1657 = vunpack.c.h.b16 %v1097
    %v1658 = vunpack.c.l.b16 %v1098
    %v1659 = vunpack.c.h.b16 %v1098
    %v1660 = vunpack.c.l.b16 %v1099
    %v1661 = vunpack.c.h.b16 %v1099
    %v1662 = vunpack.c.l.b16 %v1100
    %v1663 = vunpack.c.h.b16 %v1100
    %v1664 = vunpack.c.l.b16 %v1101
    %v1665 = vunpack.c.h.b16 %v1101
    %v1666 = vunpack.c.l.b16 %v1102
    %v1667 = vunpack.c.h.b16 %v1102
    %v1668 = vunpack.c.l.b16 %v1103
    %v1669 = vunpack.c.h.b16 %v1103
    %v1670 = vunpack.c.l.b16 %v1104
    %v1671 = vunpack.c.h.b16 %v1104
    %v1672 = vunpack.c.l.b16 %v1105
    %v1673 = vunpack.c.h.b16 %v1105
    %v1674 = vunpack.c.l.b16 %v1106
    %v1675 = vunpack.c.h.b16 %v1106
    %v1676 = vunpack.c.l.b16 %v1107
    %v1677 = vunpack.c.h.b16 %v1107
    %v1678 = vunpack.c.l.b16 %v1108
    %v1679 = vunpack.c.h.b16 %v1108
    %v1680 = vunpack.c.l.b16 %v1109
    %v1681 = vunpack.c.h.b16 %v1109
    %v1682 = vunpack.c.l.b16 %v1110
    %v1683 = vunpack.c.h.b16 %v1110
    %v1684 = vunpack.c.l.b16 %v1111
    %v1685 = vunpack.c.h.b16 %v1111
    %v1686 = vunpack.c.l.b16 %v1112
    %v1687 = vunpack.c.h.b16 %v1112
    %v1688 = vunpack.c.l.b16 %v1113
    %v1689 = vunpack.c.h.b16 %v1113
    %v1690 = vunpack.c.l.b16 %v1114
    %v1691 = vunpack.c.h.b16 %v1114
    %v1692 = vunpack.c.l.b16 %v1115
    %v1693 = vunpack.c.h.b16 %v1115
    %v1694 = vunpack.c.l.b16 %v1116
    %v1695 = vunpack.c.h.b16 %v1116
    %v1696 = vunpack.c.l.b16 %v1117
    %v1697 = vunpack.c.h.b16 %v1117
    %v1698 = vunpack.c.l.b16 %v1118
    %v1699 = vunpack.c.h.b16 %v1118
    %v1700 = vunpack.c.l.b16 %v1119
    %v1701 = vunpack.c.h.b16 %v1119
    %v1702 = vunpack.c.l.b16 %v1120
    %v1703 = vunpack.c.h.b16 %v1120
    %v1704 = vunpack.c.l.b16 %v1121
    %v1705 = vunpack.c.h.b16 %v1121
    %v1706 = vunpack.c.l.b16 %v1122
    %v1707 = vunpack.c.h.b16 %v1122
    %v1708 = vunpack.c.l.b16 %v1123
    %v1709 = vunpack.c.h.b16 %v1123
    %v1710 = vunpack.c.l.b16 %v1124
    %v1711 = vunpack.c.h.b16 %v1124
    %v1712 = vunpack.c.l.b16 %v1125
    %v1713 = vunpack.c.h.b16 %v1125
    %v1714 = vunpack.c.l.b16 %v1126
    %v1715 = vunpack.c.h.b16 %v1126
    %v1716 = vunpack.c.l.b16 %v1127
    %v1717 = vunpack.c.h.b16 %v1127
    %v1718 = vunpack.c.l.b16 %v1128
    %v1719 = vunpack.c.h.b16 %v1128
    %v1720 = vunpack.c.l.b16 %v1129
    %v1721 = vunpack.c.h.b16 %v1129
    %v1722 = vunpack.c.l.b16 %v1130
    %v1723 = vunpack.c.h.b16 %v1130
    %v1724 = vunpack.c.l.b16 %v1131
    %v1725 = vunpack.c.h.b16 %v1131
    %v1726 = vunpack.c.l.b16 %v1132
    %v1727 = vunpack.c.h.b16 %v1132
    %v1728 = vunpack.c.l.b16 %v1133
    %v1729 = vunpack.c.h.b16 %v1133
    %v1730 = vunpack.c.l.b16 %v1134
    %v1731 = vunpack.c.h.b16 %v1134
    %v1732 = vunpack.c.l.b16 %v1135
    %v1733 = vunpack.c.h.b16 %v1135
    %v1734 = vunpack.c.l.b16 %v1136
    %v1735 = vunpack.c.h.b16 %v1136
    %v1736 = vunpack.c.l.b16 %v1137
    %v1737 = vunpack.c.h.b16 %v1137
    %v1738 = vunpack.c.l.b16 %v1138
    %v1739 = vunpack.c.h.b16 %v1138
    %v1740 = vunpack.c.l.b16 %v1139
    %v1741 = vunpack.c.h.b16 %v1139
    %v1742 = vunpack.c.l.b16 %v1140
    %v1743 = vunpack.c.h.b16 %v1140
    %v1744 = vunpack.c.l.b16 %v1141
    %v1745 = vunpack.c.h.b16 %v1141
    %v1746 = vunpack.c.l.b16 %v1142
    %v1747 = vunpack.c.h.b16 %v1142
    %v1748 = vunpack.c.l.b16 %v1143
    %v1749 = vunpack.c.h.b16 %v1143
    %v1750 = vunpack.c.l.b16 %v1144
    %v1751 = vunpack.c.h.b16 %v1144
    %v1752 = vunpack.c.l.b16 %v1145
    %v1753 = vunpack.c.h.b16 %v1145
    %v1754 = vunpack.c.l.b16 %v1146
    %v1755 = vunpack.c.h.b16 %v1146
    %v1756 = vunpack.c.l.b16 %v1147
    %v1757 = vunpack.c.h.b16 %v1147
    %v1758 = vunpack.c.l.b16 %v1148
    %v1759 = vunpack.c.h.b16 %v1148
    %v1760 = vunpack.c.l.b16 %v1149
    %v1761 = vunpack.c.h.b16 %v1149
    %v1762 = vunpack.c.l.b16 %v1150
    %v1763 = vunpack.c.h.b16 %v1150
    %v1764 = vunpack.c.l.b16 %v1151
    %v1765 = vunpack.c.h.b16 %v1151
    %v1766 = vunpack.c.l.b16 %v1152
    %v1767 = vunpack.c.h.b16 %v1152
    %v1768 = vunpack.c.l.b16 %v1153
    %v1769 = vunpack.c.h.b16 %v1153
    %v1770 = vunpack.c.l.b16 %v1154
    %v1771 = vunpack.c.h.b16 %v1154
    %v1772 = vunpack.c.l.b16 %v1155
    %v1773 = vunpack.c.h.b16 %v1155
    %v1774 = vunpack.c.l.b16 %v1156
    %v1775 = vunpack.c.h.b16 %v1156
    %v1776 = vunpack.c.l.b16 %v1157
    %v1777 = vunpack.c.h.b16 %v1157
    %v1778 = vunpack.c.l.b16 %v1158
    %v1779 = vunpack.c.h.b16 %v1158
    %v1780 = vunpack.c.l.b16 %v1159
    %v1781 = vunpack.c.h.b16 %v1159
    %v1782 = vunpack.c.l.b16 %v1160
    %v1783 = vunpack.c.h.b16 %v1160
    %v1784 = vunpack.c.l.b16 %v1161
    %v1785 = vunpack.c.h.b16 %v1161
    %v1786 = vunpack.c.l.b16 %v1162
    %v1787 = vunpack.c.h.b16 %v1162
    %v1788 = vunpack.c.l.b16 %v1163
    %v1789 = vunpack.c.h.b16 %v1163
    %v1790 = vunpack.c.l.b16 %v1164
    %v1791 = vunpack.c.h.b16 %v1164
    %v1792 = vunpack.c.l.b16 %v1165
    %v1793 = vunpack.c.h.b16 %v1165
    %v1794 = vunpack.c.l.b16 %v1166
    %v1795 = vunpack.c.h.b16 %v1166
    %v1796 = vunpack.c.l.b16 %v1167
    %v1797 = vunpack.c.h.b16 %v1167
    %v1798 = vunpack.c.l.b16 %v1168
    %v1799 = vunpack.c.h.b16 %v1168
    %v1800 = vunpack.c.l.b16 %v1169
    %v1801 = vunpack.c.h.b16 %v1169
    %v1802 = vunpack.c.l.b16 %v1170
    %v1803 = vunpack.c.h.b16 %v1170
    %v1804 = vunpack.c.l.b16 %v1171
    %v1805 = vunpack.c.h.b16 %v1171
    %v1806 = vunpack.c.l.b16 %v1172
    %v1807 = vunpack.c.h.b16 %v1172
    %v1808 = vunpack.c.l.b16 %v1173
    %v1809 = vunpack.c.h.b16 %v1173
    %v1810 = vunpack.c.l.b16 %v1174
    %v1811 = vunpack.c.h.b16 %v1174
    %v1812 = vunpack.c.l.b16 %v1175
    %v1813 = vunpack.c.h.b16 %v1175
    %v1814 = vunpack.c.l.b16 %v1176
    %v1815 = vunpack.c.h.b16 %v1176
    %v1816 = vunpack.c.l.b16 %v1177
    %v1817 = vunpack.c.h.b16 %v1177
    %v1818 = vunpack.c.l.b16 %v1178
    %v1819 = vunpack.c.h.b16 %v1178
    %v1820 = vunpack.c.l.b16 %v1179
    %v1821 = vunpack.c.h.b16 %v1179
    %v1822 = vunpack.c.l.b16 %v1180
    %v1823 = vunpack.c.h.b16 %v1180
    %v1824 = vunpack.c.l.b16 %v1181
    %v1825 = vunpack.c.h.b16 %v1181
    %v1826 = vunpack.c.l.b16 %v1182
    %v1827 = vunpack.c.h.b16 %v1182
    %v1828 = vunpack.c.l.b16 %v1183
    %v1829 = vunpack.c.h.b16 %v1183
    %v1830 = vunpack.c.l.b16 %v1184
    %v1831 = vunpack.c.h.b16 %v1184
    %v1832 = vunpack.c.l.b16 %v1185
    %v1833 = vunpack.c.h.b16 %v1185
    %v1834 = vunpack.c.l.b16 %v1186
    %v1835 = vunpack.c.h.b16 %v1186
    %v1836 = vunpack.c.l.b16 %v1187
    %v1837 = vunpack.c.h.b16 %v1187
    %v1838 = vunpack.c.l.b16 %v1188
    %v1839 = vunpack.c.h.b16 %v1188
    %v1840 = vunpack.c.l.b16 %v1189
    %v1841 = vunpack.c.h.b16 %v1189
    %v1842 = vunpack.c.l.b16 %v1190
    %v1843 = vunpack.c.h.b16 %v1190
    %v1844 = vunpack.c.l.b16 %v1191
    %v1845 = vunpack.c.h.b16 %v1191
    %v1846 = vunpack.c.l.b16 %v1192
    %v1847 = vunpack.c.h.b16 %v1192
    %v1848 = vunpack.c.l.b16 %v1193
    %v1849 = vunpack.c.h.b16 %v1193
    %v1850 = vunpack.c.l.b16 %v1194
    %v1851 = vunpack.c.h.b16 %v1194
    %v1852 = vunpack.c.l.b16 %v1195
    %v1853 = vunpack.c.h.b16 %v1195
    %v1854 = vunpack.c.l.b16 %v1196
    %v1855 = vunpack.c.h.b16 %v1196
    %v1856 = vunpack.c.l.b16 %v1197
    %v1857 = vunpack.c.h.b16 %v1197
    %v1858 = vunpack.c.l.b16 %v1198
    %v1859 = vunpack.c.h.b16 %v1198
    %v1860 = vunpack.c.l.b16 %v1199
    %v1861 = vunpack.c.h.b16 %v1199
    %v1862 = vunpack.c.l.b16 %v1200
    %v1863 = vunpack.c.h.b16 %v1200
    %v1864 = vunpack.c.l.b16 %v1201
    %v1865 = vunpack.c.h.b16 %v1201
    %v1866 = vunpack.c.l.b16 %v1202
    %v1867 = vunpack.c.h.b16 %v1202
    %v1868 = vunpack.c.l.b16 %v1203
    %v1869 = vunpack.c.h.b16 %v1203
    %v1870 = vunpack.c.l.b16 %v1204
    %v1871 = vunpack.c.h.b16 %v1204
    %v1872 = vunpack.c.l.b16 %v1205
    %v1873 = vunpack.c.h.b16 %v1205
    %v1874 = vunpack.c.l.b16 %v1206
    %v1875 = vunpack.c.h.b16 %v1206
    %v1876 = vunpack.c.l.b16 %v1207
    %v1877 = vunpack.c.h.b16 %v1207
    %v1878 = vunpack.c.l.b16 %v1208
    %v1879 = vunpack.c.h.b16 %v1208
    %v1880 = vunpack.c.l.b16 %v1209
    %v1881 = vunpack.c.h.b16 %v1209
    %v1882 = vunpack.c.l.b16 %v1210
    %v1883 = vunpack.c.h.b16 %v1210
    %v1884 = vunpack.c.l.b16 %v1211
    %v1885 = vunpack.c.h.b16 %v1211
    %v1886 = vunpack.c.l.b16 %v1212
    %v1887 = vunpack.c.h.b16 %v1212
    %v1888 = vunpack.c.l.b16 %v1213
    %v1889 = vunpack.c.h.b16 %v1213
    %v1890 = vunpack.c.l.b16 %v1214
    %v1891 = vunpack.c.h.b16 %v1214
    %v1892 = vunpack.c.l.b16 %v1215
    %v1893 = vunpack.c.h.b16 %v1215
    %v1894 = vunpack.c.l.b16 %v1216
    %v1895 = vunpack.c.h.b16 %v1216
    %v1896 = vunpack.c.l.b16 %v1217
    %v1897 = vunpack.c.h.b16 %v1217
    %v1898 = vunpack.c.l.b16 %v1218
    %v1899 = vunpack.c.h.b16 %v1218
    %v1900 = vunpack.c.l.b16 %v1219
    %v1901 = vunpack.c.h.b16 %v1219
    %v1902 = vunpack.c.l.b16 %v1220
    %v1903 = vunpack.c.h.b16 %v1220
    %v1904 = vunpack.c.l.b16 %v1221
    %v1905 = vunpack.c.h.b16 %v1221
    %v1906 = vunpack.c.l.b16 %v1222
    %v1907 = vunpack.c.h.b16 %v1222
    %v1908 = vunpack.c.l.b16 %v1223
    %v1909 = vunpack.c.h.b16 %v1223
    %v1910 = vunpack.c.l.b16 %v1224
    %v1911 = vunpack.c.h.b16 %v1224
    %v1912 = vunpack.c.l.b16 %v1225
    %v1913 = vunpack.c.h.b16 %v1225
    %v1914 = vunpack.c.l.b16 %v1226
    %v1915 = vunpack.c.h.b16 %v1226
    %v1916 = vunpack.c.l.b16 %v1227
    %v1917 = vunpack.c.h.b16 %v1227
    %v1918 = vunpack.c.l.b16 %v1228
    %v1919 = vunpack.c.h.b16 %v1228
    %v1920 = vunpack.c.l.b16 %v1229
    %v1921 = vunpack.c.h.b16 %v1229
    %v1922 = vunpack.c.l.b16 %v1230
    %v1923 = vunpack.c.h.b16 %v1230
    %v1924 = vunpack.c.l.b16 %v1231
    %v1925 = vunpack.c.h.b16 %v1231
    %v1926 = vunpack.c.l.b16 %v1232
    %v1927 = vunpack.c.h.b16 %v1232
    %v1928 = vunpack.c.l.b16 %v1233
    %v1929 = vunpack.c.h.b16 %v1233
    %v1930 = vunpack.c.l.b16 %v1234
    %v1931 = vunpack.c.h.b16 %v1234
    %v1932 = vunpack.c.l.b16 %v1235
    %v1933 = vunpack.c.h.b16 %v1235
    %v1934 = vunpack.c.l.b16 %v1236
    %v1935 = vunpack.c.h.b16 %v1236
    %v1936 = vunpack.c.l.b16 %v1237
    %v1937 = vunpack.c.h.b16 %v1237
    %v1938 = vunpack.c.l.b16 %v1238
    %v1939 = vunpack.c.h.b16 %v1238
    %v1940 = vunpack.c.l.b16 %v1239
    %v1941 = vunpack.c.h.b16 %v1239
    %v1942 = vunpack.c.l.b16 %v1240
    %v1943 = vunpack.c.h.b16 %v1240
    %v1944 = vunpack.c.l.b16 %v1241
    %v1945 = vunpack.c.h.b16 %v1241
    %v1946 = vunpack.c.l.b16 %v1242
    %v1947 = vunpack.c.h.b16 %v1242
    %v1948 = vunpack.c.l.b16 %v1243
    %v1949 = vunpack.c.h.b16 %v1243
    %v1950 = vunpack.c.l.b16 %v1244
    %v1951 = vunpack.c.h.b16 %v1244
    %v1952 = vunpack.c.l.b16 %v1245
    %v1953 = vunpack.c.h.b16 %v1245
    %v1954 = vunpack.c.l.b16 %v1246
    %v1955 = vunpack.c.h.b16 %v1246
    %v1956 = vunpack.c.l.b16 %v1247
    %v1957 = vunpack.c.h.b16 %v1247
    %v1958 = vunpack.c.l.b16 %v1248
    %v1959 = vunpack.c.h.b16 %v1248
    %v1960 = vunpack.c.l.b16 %v1249
    %v1961 = vunpack.c.h.b16 %v1249
    %v1962 = vunpack.c.l.b16 %v1250
    %v1963 = vunpack.c.h.b16 %v1250
    %v1964 = vunpack.c.l.b16 %v1251
    %v1965 = vunpack.c.h.b16 %v1251
    %v1966 = vunpack.c.l.b16 %v1252
    %v1967 = vunpack.c.h.b16 %v1252
    %v1968 = vunpack.c.l.b16 %v1253
    %v1969 = vunpack.c.h.b16 %v1253
    %v1970 = vunpack.c.l.b16 %v1254
    %v1971 = vunpack.c.h.b16 %v1254
    %v1972 = vunpack.c.l.b16 %v1255
    %v1973 = vunpack.c.h.b16 %v1255
    %v1974 = vunpack.c.l.b16 %v1256
    %v1975 = vunpack.c.h.b16 %v1256
    %v1976 = vunpack.c.l.b16 %v1257
    %v1977 = vunpack.c.h.b16 %v1257
    %v1978 = vunpack.c.l.b16 %v1258
    %v1979 = vunpack.c.h.b16 %v1258
    %v1980 = vunpack.c.l.b16 %v1259
    %v1981 = vunpack.c.h.b16 %v1259
    %v1982 = vunpack.c.l.b16 %v1260
    %v1983 = vunpack.c.h.b16 %v1260
    %v1984 = vunpack.c.l.b16 %v1261
    %v1985 = vunpack.c.h.b16 %v1261
    %v1986 = vunpack.c.l.b16 %v1262
    %v1987 = vunpack.c.h.b16 %v1262
    %v1988 = vunpack.c.l.b16 %v1263
    %v1989 = vunpack.c.h.b16 %v1263
    %v1990 = vunpack.c.l.b16 %v1264
    %v1991 = vunpack.c.h.b16 %v1264
    %v1992 = vunpack.c.l.b16 %v1265
    %v1993 = vunpack.c.h.b16 %v1265
    %v1994 = vunpack.c.l.b16 %v1266
    %v1995 = vunpack.c.h.b16 %v1266
    %v1996 = vunpack.c.l.b16 %v1267
    %v1997 = vunpack.c.h.b16 %v1267
    %v1998 = vunpack.c.l.b16 %v1268
    %v1999 = vunpack.c.h.b16 %v1268
    %v2000 = vunpack.c.l.b16 %v1269
    %v2001 = vunpack.c.h.b16 %v1269
    %v2002 = vunpack.c.l.b16 %v1270
    %v2003 = vunpack.c.h.b16 %v1270
    %v2004 = vunpack.c.l.b16 %v1271
    %v2005 = vunpack.c.h.b16 %v1271
    %v2006 = vunpack.c.l.b16 %v1272
    %v2007 = vunpack.c.h.b16 %v1272
    %v2008 = vunpack.c.l.b16 %v1273
    %v2009 = vunpack.c.h.b16 %v1273
    %v2010 = vunpack.c.l.b16 %v1274
    %v2011 = vunpack.c.h.b16 %v1274
    %v2012 = vunpack.c.l.b16 %v1275
    %v2013 = vunpack.c.h.b16 %v1275
    %v2014 = vunpack.c.l.b16 %v1276
    %v2015 = vunpack.c.h.b16 %v1276
    %v2016 = vunpack.c.l.b16 %v1277
    %v2017 = vunpack.c.h.b16 %v1277
    %v2018 = vunpack.c.l.b16 %v1278
    %v2019 = vunpack.c.h.b16 %v1278
    %v2020 = vunpack.c.l.b16 %v1279
    %v2021 = vunpack.c.h.b16 %v1279
    %v2022 = vunpack.c.l.b16 %v1280
    %v2023 = vunpack.c.h.b16 %v1280
    %v2024 = vunpack.c.l.b16 %v1281
    %v2025 = vunpack.c.h.b16 %v1281
    %v2026 = vunpack.c.l.b16 %v1282
    %v2027 = vunpack.c.h.b16 %v1282
    %v2028 = vunpack.c.l.b16 %v1283
    %v2029 = vunpack.c.h.b16 %v1283
    %v2030 = vunpack.c.l.b16 %v1284
    %v2031 = vunpack.c.h.b16 %v1284
    %v2032 = vunpack.c.l.b16 %v1285
    %v2033 = vunpack.c.h.b16 %v1285
    %v2034 = vunpack.c.l.b16 %v1286
    %v2035 = vunpack.c.h.b16 %v1286
    %v2036 = vunpack.c.l.b16 %v1287
    %v2037 = vunpack.c.h.b16 %v1287
    %v2038 = vunpack.c.l.b16 %v1288
    %v2039 = vunpack.c.h.b16 %v1288
    %v2040 = vunpack.c.l.b16 %v1289
    %v2041 = vunpack.c.h.b16 %v1289
    %v2042 = vunpack.c.l.b16 %v1290
    %v2043 = vunpack.c.h.b16 %v1290
    %v2044 = vunpack.c.l.b16 %v1291
    %v2045 = vunpack.c.h.b16 %v1291
    %v2046 = vunpack.c.l.b16 %v1292
    %v2047 = vunpack.c.h.b16 %v1292
    %v2048 = vunpack.c.l.b16 %v1293
    %v2049 = vunpack.c.h.b16 %v1293
    %v2050 = vunpack.c.l.b16 %v1294
    %v2051 = vunpack.c.h.b16 %v1294
    %v2052 = vunpack.c.l.b16 %v1295
    %v2053 = vunpack.c.h.b16 %v1295
    %v2054 = vunpack.c.l.b16 %v1296
    %v2055 = vunpack.c.h.b16 %v1296
    %v2056 = vunpack.c.l.b16 %v1297
    %v2057 = vunpack.c.h.b16 %v1297
    %v2058 = vunpack.c.l.b16 %v1298
    %v2059 = vunpack.c.h.b16 %v1298
    %v2060 = vunpack.c.l.b16 %v1299
    %v2061 = vunpack.c.h.b16 %v1299
    %v2062 = vunpack.c.l.b16 %v1300
    %v2063 = vunpack.c.h.b16 %v1300
    %v2064 = vunpack.c.l.b16 %v1301
    %v2065 = vunpack.c.h.b16 %v1301
    %v2066 = vunpack.c.l.b16 %v1302
    %v2067 = vunpack.c.h.b16 %v1302
    %v2068 = vunpack.c.l.b16 %v1303
    %v2069 = vunpack.c.h.b16 %v1303
    %v2070 = vunpack.c.l.b16 %v1304
    %v2071 = vunpack.c.h.b16 %v1304
    %v2072 = vunpack.c.l.b16 %v1305
    %v2073 = vunpack.c.h.b16 %v1305
    %v2074 = vpack.c.b16 %v1570, %v1562
    %v2075 = vpack.c.b16 %v1571, %v1563
    %v2076 = vpack.c.b16 %v1572, %v1564
    %v2077 = vpack.c.b16 %v1573, %v1565
    %v2078 = vpack.c.b16 %v1574, %v1566
    %v2079 = vpack.c.b16 %v1575, %v1567
    %v2080 = vpack.c.b16 %v1576, %v1568
    %v2081 = vpack.c.b16 %v1577, %v1569
    %v2082 = vpack.c.b16 %v1586, %v1578
    %v2083 = vpack.c.b16 %v1587, %v1579
    %v2084 = vpack.c.b16 %v1588, %v1580
    %v2085 = vpack.c.b16 %v1589, %v1581
    %v2086 = vpack.c.b16 %v1590, %v1582
    %v2087 = vpack.c.b16 %v1591, %v1583
    %v2088 = vpack.c.b16 %v1592, %v1584
    %v2089 = vpack.c.b16 %v1593, %v1585
    %v2090 = vpack.c.b16 %v1602, %v1594
    %v2091 = vpack.c.b16 %v1603, %v1595
    %v2092 = vpack.c.b16 %v1604, %v1596
    %v2093 = vpack.c.b16 %v1605, %v1597
    %v2094 = vpack.c.b16 %v1606, %v1598
    %v2095 = vpack.c.b16 %v1607, %v1599
    %v2096 = vpack.c.b16 %v1608, %v1600
    %v2097 = vpack.c.b16 %v1609, %v1601
    %v2098 = vpack.c.b16 %v1618, %v1610
    %v2099 = vpack.c.b16 %v1619, %v1611
    %v2100 = vpack.c.b16 %v1620, %v1612
    %v2101 = vpack.c.b16 %v1621, %v1613
    %v2102 = vpack.c.b16 %v1622, %v1614
    %v2103 = vpack.c.b16 %v1623, %v1615
    %v2104 = vpack.c.b16 %v1624, %v1616
    %v2105 = vpack.c.b16 %v1625, %v1617
    %v2106 = vpack.c.b16 %v1634, %v1626
    %v2107 = vpack.c.b16 %v1635, %v1627
    %v2108 = vpack.c.b16 %v1636, %v1628
    %v2109 = vpack.c.b16 %v1637, %v1629
    %v2110 = vpack.c.b16 %v1638, %v1630
    %v2111 = vpack.c.b16 %v1639, %v1631
    %v2112 = vpack.c.b16 %v1640, %v1632
    %v2113 = vpack.c.b16 %v1641, %v1633
    %v2114 = vpack.c.b16 %v1650, %v1642
    %v2115 = vpack.c.b16 %v1651, %v1643
    %v2116 = vpack.c.b16 %v1652, %v1644
    %v2117 = vpack.c.b16 %v1653, %v1645
    %v2118 = vpack.c.b16 %v1654, %v1646
    %v2119 = vpack.c.b16 %v1655, %v1647
    %v2120 = vpack.c.b16 %v1656, %v1648
    %v2121 = vpack.c.b16 %v1657, %v1649
    %v2122 = vpack.c.b16 %v1666, %v1658
    %v2123 = vpack.c.b16 %v1667, %v1659
    %v2124 = vpack.c.b16 %v1668, %v1660
    %v2125 = vpack.c.b16 %v1669, %v1661
    %v2126 = vpack.c.b16 %v1670, %v1662
    %v2127 = vpack.c.b16 %v1671, %v1663
    %v2128 = vpack.c.b16 %v1672, %v1664
    %v2129 = vpack.c.b16 %v1673, %v1665
    %v2130 = vpack.c.b16 %v1682, %v1674
    %v2131 = vpack.c.b16 %v1683, %v1675
    %v2132 = vpack.c.b16 %v1684, %v1676
    %v2133 = vpack.c.b16 %v1685, %v1677
    %v2134 = vpack.c.b16 %v1686, %v1678
    %v2135 = vpack.c.b16 %v1687, %v1679
    %v2136 = vpack.c.b16 %v1688, %v1680
    %v2137 = vpack.c.b16 %v1689, %v1681
    %v2138 = vpack.c.b16 %v1698, %v1690
    %v2139 = vpack.c.b16 %v1699, %v1691
    %v2140 = vpack.c.b16 %v1700, %v1692
    %v2141 = vpack.c.b16 %v1701, %v1693
    %v2142 = vpack.c.b16 %v1702, %v1694
    %v2143 = vpack.c.b16 %v1703, %v1695
    %v2144 = vpack.c.b16 %v1704, %v1696
    %v2145 = vpack.c.b16 %v1705, %v1697
    %v2146 = vpack.c.b16 %v1714, %v1706
    %v2147 = vpack.c.b16 %v1715, %v1707
    %v2148 = vpack.c.b16 %v1716, %v1708
    %v2149 = vpack.c.b16 %v1717, %v1709
    %v2150 = vpack.c.b16 %v1718, %v1710
    %v2151 = vpack.c.b16 %v1719, %v1711
    %v2152 = vpack.c.b16 %v1720, %v1712
    %v2153 = vpack.c.b16 %v1721, %v1713
    %v2154 = vpack.c.b16 %v1730, %v1722
    %v2155 = vpack.c.b16 %v1731, %v1723
    %v2156 = vpack.c.b16 %v1732, %v1724
    %v2157 = vpack.c.b16 %v1733, %v1725
    %v2158 = vpack.c.b16 %v1734, %v1726
    %v2159 = vpack.c.b16 %v1735, %v1727
    %v2160 = vpack.c.b16 %v1736, %v1728
    %v2161 = vpack.c.b16 %v1737, %v1729
    %v2162 = vpack.c.b16 %v1746, %v1738
    %v2163 = vpack.c.b16 %v1747, %v1739
    %v2164 = vpack.c.b16 %v1748, %v1740
    %v2165 = vpack.c.b16 %v1749, %v1741
    %v2166 = vpack.c.b16 %v1750, %v1742
    %v2167 = vpack.c.b16 %v1751, %v1743
    %v2168 = vpack.c.b16 %v1752, %v1744
    %v2169 = vpack.c.b16 %v1753, %v1745
    %v2170 = vpack.c.b16 %v1762, %v1754
    %v2171 = vpack.c.b16 %v1763, %v1755
    %v2172 = vpack.c.b16 %v1764, %v1756
    %v2173 = vpack.c.b16 %v1765, %v1757
    %v2174 = vpack.c.b16 %v1766, %v1758
    %v2175 = vpack.c.b16 %v1767, %v1759
    %v2176 = vpack.c.b16 %v1768, %v1760
    %v2177 = vpack.c.b16 %v1769, %v1761
    %v2178 = vpack.c.b16 %v1778, %v1770
    %v2179 = vpack.c.b16 %v1779, %v1771
    %v2180 = vpack.c.b16 %v1780, %v1772
    %v2181 = vpack.c.b16 %v1781, %v1773
    %v2182 = vpack.c.b16 %v1782, %v1774
    %v2183 = vpack.c.b16 %v1783, %v1775
    %v2184 = vpack.c.b16 %v1784, %v1776
    %v2185 = vpack.c.b16 %v1785, %v1777
    %v2186 = vpack.c.b16 %v1794, %v1786
    %v2187 = vpack.c.b16 %v1795, %v1787
    %v2188 = vpack.c.b16 %v1796, %v1788
    %v2189 = vpack.c.b16 %v1797, %v1789
    %v2190 = vpack.c.b16 %v1798, %v1790
    %v2191 = vpack.c.b16 %v1799, %v1791
    %v2192 = vpack.c.b16 %v1800, %v1792
    %v2193 = vpack.c.b16 %v1801, %v1793
    %v2194 = vpack.c.b16 %v1810, %v1802
    %v2195 = vpack.c.b16 %v1811, %v1803
    %v2196 = vpack.c.b16 %v1812, %v1804
    %v2197 = vpack.c.b16 %v1813, %v1805
    %v2198 = vpack.c.b16 %v1814, %v1806
    %v2199 = vpack.c.b16 %v1815, %v1807
    %v2200 = vpack.c.b16 %v1816, %v1808
    %v2201 = vpack.c.b16 %v1817, %v1809
    %v2202 = vpack.c.b16 %v1826, %v1818
    %v2203 = vpack.c.b16 %v1827, %v1819
    %v2204 = vpack.c.b16 %v1828, %v1820
    %v2205 = vpack.c.b16 %v1829, %v1821
    %v2206 = vpack.c.b16 %v1830, %v1822
    %v2207 = vpack.c.b16 %v1831, %v1823
    %v2208 = vpack.c.b16 %v1832, %v1824
    %v2209 = vpack.c.b16 %v1833, %v1825
    %v2210 = vpack.c.b16 %v1842, %v1834
    %v2211 = vpack.c.b16 %v1843, %v1835
    %v2212 = vpack.c.b16 %v1844, %v1836
    %v2213 = vpack.c.b16 %v1845, %v1837
    %v2214 = vpack.c.b16 %v1846, %v1838
    %v2215 = vpack.c.b16 %v1847, %v1839
    %v2216 = vpack.c.b16 %v1848, %v1840
    %v2217 = vpack.c.b16 %v1849, %v1841
    %v2218 = vpack.c.b16 %v1858, %v1850
    %v2219 = vpack.c.b16 %v1859, %v1851
    %v2220 = vpack.c.b16 %v1860, %v1852
    %v2221 = vpack.c.b16 %v1861, %v1853
    %v2222 = vpack.c.b16 %v1862, %v1854
    %v2223 = vpack.c.b16 %v1863, %v1855
    %v2224 = vpack.c.b16 %v1864, %v1856
    %v2225 = vpack.c.b16 %v1865, %v1857
    %v2226 = vpack.c.b16 %v1874, %v1866
    %v2227 = vpack.c.b16 %v1875, %v1867
    %v2228 = vpack.c.b16 %v1876, %v1868
    %v2229 = vpack.c.b16 %v1877, %v1869
    %v2230 = vpack.c.b16 %v1878, %v1870
    %v2231 = vpack.c.b16 %v1879, %v1871
    %v2232 = vpack.c.b16 %v1880, %v1872
    %v2233 = vpack.c.b16 %v1881, %v1873
    %v2234 = vpack.c.b16 %v1890, %v1882
    %v2235 = vpack.c.b16 %v1891, %v1883
    %v2236 = vpack.c.b16 %v1892, %v1884
    %v2237 = vpack.c.b16 %v1893, %v1885
    %v2238 = vpack.c.b16 %v1894, %v1886
    %v2239 = vpack.c.b16 %v1895, %v1887
    %v2240 = vpack.c.b16 %v1896, %v1888
    %v2241 = vpack.c.b16 %v1897, %v1889
    %v2242 = vpack.c.b16 %v1906, %v1898
    %v2243 = vpack.c.b16 %v1907, %v1899
    %v2244 = vpack.c.b16 %v1908, %v1900
    %v2245 = vpack.c.b16 %v1909, %v1901
    %v2246 = vpack.c.b16 %v1910, %v1902
    %v2247 = vpack.c.b16 %v1911, %v1903
    %v2248 = vpack.c.b16 %v1912, %v1904
    %v2249 = vpack.c.b16 %v1913, %v1905
    %v2250 = vpack.c.b16 %v1922, %v1914
    %v2251 = vpack.c.b16 %v1923, %v1915
    %v2252 = vpack.c.b16 %v1924, %v1916
    %v2253 = vpack.c.b16 %v1925, %v1917
    %v2254 = vpack.c.b16 %v1926, %v1918
    %v2255 = vpack.c.b16 %v1927, %v1919
    %v2256 = vpack.c.b16 %v1928, %v1920
    %v2257 = vpack.c.b16 %v1929, %v1921
    %v2258 = vpack.c.b16 %v1938, %v1930
    %v2259 = vpack.c.b16 %v1939, %v1931
    %v2260 = vpack.c.b16 %v1940, %v1932
    %v2261 = vpack.c.b16 %v1941, %v1933
    %v2262 = vpack.c.b16 %v1942, %v1934
    %v2263 = vpack.c.b16 %v1943, %v1935
    %v2264 = vpack.c.b16 %v1944, %v1936
    %v2265 = vpack.c.b16 %v1945, %v1937
    %v2266 = vpack.c.b16 %v1954, %v1946
    %v2267 = vpack.c.b16 %v1955, %v1947
    %v2268 = vpack.c.b16 %v1956, %v1948
    %v2269 = vpack.c.b16 %v1957, %v1949
    %v2270 = vpack.c.b16 %v1958, %v1950
    %v2271 = vpack.c.b16 %v1959, %v1951
    %v2272 = vpack.c.b16 %v1960, %v1952
    %v2273 = vpack.c.b16 %v1961, %v1953
    %v2274 = vpack.c.b16 %v1970, %v1962
    %v2275 = vpack.c.b16 %v1971, %v1963
    %v2276 = vpack.c.b16 %v1972, %v1964
    %v2277 = vpack.c.b16 %v1973, %v1965
    %v2278 = vpack.c.b16 %v1974, %v1966
    %v2279 = vpack.c.b16 %v1975, %v1967
    %v2280 = vpack.c.b16 %v1976, %v1968
    %v2281 = vpack.c.b16 %v1977, %v1969
    %v2282 = vpack.c.b16 %v1986, %v1978
    %v2283 = vpack.c.b16 %v1987, %v1979
    %v2284 = vpack.c.b16 %v1988, %v1980
    %v2285 = vpack.c.b16 %v1989, %v1981
    %v2286 = vpack.c.b16 %v1990, %v1982
    %v2287 = vpack.c.b16 %v1991, %v1983
    %v2288 = vpack.c.b16 %v1992, %v1984
    %v2289 = vpack.c.b16 %v1993, %v1985
    %v2290 = vpack.c.b16 %v2002, %v1994
    %v2291 = vpack.c.b16 %v2003, %v1995
    %v2292 = vpack.c.b16 %v2004, %v1996
    %v2293 = vpack.c.b16 %v2005, %v1997
    %v2294 = vpack.c.b16 %v2006, %v1998
    %v2295 = vpack.c.b16 %v2007, %v1999
    %v2296 = vpack.c.b16 %v2008, %v2000
    %v2297 = vpack.c.b16 %v2009, %v2001
    %v2298 = vpack.c.b16 %v2018, %v2010
    %v2299 = vpack.c.b16 %v2019, %v2011
    %v2300 = vpack.c.b16 %v2020, %v2012
    %v2301 = vpack.c.b16 %v2021, %v2013
    %v2302 = vpack.c.b16 %v2022, %v2014
    %v2303 = vpack.c.b16 %v2023, %v2015
    %v2304 = vpack.c.b16 %v2024, %v2016
    %v2305 = vpack.c.b16 %v2025, %v2017
    %v2306 = vpack.c.b16 %v2034, %v2026
    %v2307 = vpack.c.b16 %v2035, %v2027
    %v2308 = vpack.c.b16 %v2036, %v2028
    %v2309 = vpack.c.b16 %v2037, %v2029
    %v2310 = vpack.c.b16 %v2038, %v2030
    %v2311 = vpack.c.b16 %v2039, %v2031
    %v2312 = vpack.c.b16 %v2040, %v2032
    %v2313 = vpack.c.b16 %v2041, %v2033
    %v2314 = vpack.c.b16 %v2050, %v2042
    %v2315 = vpack.c.b16 %v2051, %v2043
    %v2316 = vpack.c.b16 %v2052, %v2044
    %v2317 = vpack.c.b16 %v2053, %v2045
    %v2318 = vpack.c.b16 %v2054, %v2046
    %v2319 = vpack.c.b16 %v2055, %v2047
    %v2320 = vpack.c.b16 %v2056, %v2048
    %v2321 = vpack.c.b16 %v2057, %v2049
    %v2322 = vpack.c.b16 %v2066, %v2058
    %v2323 = vpack.c.b16 %v2067, %v2059
    %v2324 = vpack.c.b16 %v2068, %v2060
    %v2325 = vpack.c.b16 %v2069, %v2061
    %v2326 = vpack.c.b16 %v2070, %v2062
    %v2327 = vpack.c.b16 %v2071, %v2063
    %v2328 = vpack.c.b16 %v2072, %v2064
    %v2329 = vpack.c.b16 %v2073, %v2065
    %2586 = vmatprep.subr.bf16.mxu0 %v2075
    %2587 = vmatpush1.bf16.msra.mxu0 %v2074
    %2588 = vmatprep.subr.bf16.mxu0 %v2083
    %2589 = vmatpush1.bf16.msra.mxu0 %v2082
    %2590 = vmatprep.subr.bf16.mxu0 %v2091
    %2591 = vmatpush1.bf16.msra.mxu0 %v2090
    %2592 = vmatprep.subr.bf16.mxu0 %v2099
    %2593 = vmatpush1.bf16.msra.mxu0 %v2098
    %2594 = vmatprep.subr.bf16.mxu0 %v2107
    %2595 = vmatpush1.bf16.msra.mxu0 %v2106
    %2596 = vmatprep.subr.bf16.mxu0 %v2115
    %2597 = vmatpush1.bf16.msra.mxu0 %v2114
    %2598 = vmatprep.subr.bf16.mxu0 %v2123
    %2599 = vmatpush1.bf16.msra.mxu0 %v2122
    %2600 = vmatprep.subr.bf16.mxu0 %v2131
    %2601 = vmatpush1.bf16.msra.mxu0 %v2130
    %2602 = vmatprep.subr.bf16.mxu0 %v2139
    %2603 = vmatpush1.bf16.msra.mxu0 %v2138
    %2604 = vmatprep.subr.bf16.mxu0 %v2147
    %2605 = vmatpush1.bf16.msra.mxu0 %v2146
    %2606 = vmatprep.subr.bf16.mxu0 %v2155
    %2607 = vmatpush1.bf16.msra.mxu0 %v2154
    %2608 = vmatprep.subr.bf16.mxu0 %v2163
    %2609 = vmatpush1.bf16.msra.mxu0 %v2162
    %2610 = vmatprep.subr.bf16.mxu0 %v2171
    %2611 = vmatpush1.bf16.msra.mxu0 %v2170
    %2612 = vmatprep.subr.bf16.mxu0 %v2179
    %2613 = vmatpush1.bf16.msra.mxu0 %v2178
    %2614 = vmatprep.subr.bf16.mxu0 %v2187
    %2615 = vmatpush1.bf16.msra.mxu0 %v2186
    %2616 = vmatprep.subr.bf16.mxu0 %v2195
    %2617 = vmatpush1.bf16.msra.mxu0 %v2194
    %2618 = vmatprep.mubr.bf16.mxu0 %v1047
    %2619 = vmatmul.mubr.bf16.gmra.mrb[0].mxu0 %v1046
    %v2620 = vpop.f32.mrb[0].mxu0
    %v2621 = vadd.f32 0.0, %v2620
    %v2622 = vpop.f32.mrb[0].mxu0
    %v2623 = vadd.f32 0.0, %v2622
    %v2624 = vpop.f32.mrb[0].mxu0
    %v2625 = vpop.f32.mrb[0].mxu0
    %2626 = vdwg.mxu0
    %2627 = vmatprep.subr.bf16.mxu0 %v2203
    %2628 = vmatpush1.bf16.msra.mxu0 %v2202
    %2629 = vmatprep.subr.bf16.mxu0 %v2211
    %2630 = vmatpush1.bf16.msra.mxu0 %v2210
    %2631 = vmatprep.subr.bf16.mxu0 %v2219
    %2632 = vmatpush1.bf16.msra.mxu0 %v2218
    %2633 = vmatprep.subr.bf16.mxu0 %v2227
    %2634 = vmatpush1.bf16.msra.mxu0 %v2226
    %2635 = vmatprep.subr.bf16.mxu0 %v2235
    %2636 = vmatpush1.bf16.msra.mxu0 %v2234
    %2637 = vmatprep.subr.bf16.mxu0 %v2243
    %2638 = vmatpush1.bf16.msra.mxu0 %v2242
    %2639 = vmatprep.subr.bf16.mxu0 %v2251
    %2640 = vmatpush1.bf16.msra.mxu0 %v2250
    %2641 = vmatprep.subr.bf16.mxu0 %v2259
    %2642 = vmatpush1.bf16.msra.mxu0 %v2258
    %2643 = vmatprep.subr.bf16.mxu0 %v2267
    %2644 = vmatpush1.bf16.msra.mxu0 %v2266
    %2645 = vmatprep.subr.bf16.mxu0 %v2275
    %2646 = vmatpush1.bf16.msra.mxu0 %v2274
    %2647 = vmatprep.subr.bf16.mxu0 %v2283
    %2648 = vmatpush1.bf16.msra.mxu0 %v2282
    %2649 = vmatprep.subr.bf16.mxu0 %v2291
    %2650 = vmatpush1.bf16.msra.mxu0 %v2290
    %2651 = vmatprep.subr.bf16.mxu0 %v2299
    %2652 = vmatpush1.bf16.msra.mxu0 %v2298
    %2653 = vmatprep.subr.bf16.mxu0 %v2307
    %2654 = vmatpush1.bf16.msra.mxu0 %v2306
    %2655 = vmatprep.subr.bf16.mxu0 %v2315
    %2656 = vmatpush1.bf16.msra.mxu0 %v2314
    %2657 = vmatprep.subr.bf16.mxu0 %v2323
    %2658 = vmatpush1.bf16.msra.mxu0 %v2322
    %2659 = vmatprep.mubr.bf16.mxu0 %v1049
    %2660 = vmatmul.mubr.bf16.gmra.mrb[0].mxu0 %v1048
    %v2661 = vpop.f32.mrb[0].mxu0
    %v2662 = vadd.f32 %v2621, %v2661
    %v2663 = vpop.f32.mrb[0].mxu0
    %v2664 = vadd.f32 %v2623, %v2663
    %v2665 = vpop.f32.mrb[0].mxu0
    %v2666 = vpop.f32.mrb[0].mxu0
    %2667 = vdwg.mxu0
    %2668 = vmatprep.subr.bf16.mxu0 %v2077
    %2669 = vmatpush1.bf16.msra.mxu0 %v2076
    %2670 = vmatprep.subr.bf16.mxu0 %v2085
    %2671 = vmatpush1.bf16.msra.mxu0 %v2084
    %2672 = vmatprep.subr.bf16.mxu0 %v2093
    %2673 = vmatpush1.bf16.msra.mxu0 %v2092
    %2674 = vmatprep.subr.bf16.mxu0 %v2101
    %2675 = vmatpush1.bf16.msra.mxu0 %v2100
    %2676 = vmatprep.subr.bf16.mxu0 %v2109
    %2677 = vmatpush1.bf16.msra.mxu0 %v2108
    %2678 = vmatprep.subr.bf16.mxu0 %v2117
    %2679 = vmatpush1.bf16.msra.mxu0 %v2116
    %2680 = vmatprep.subr.bf16.mxu0 %v2125
    %2681 = vmatpush1.bf16.msra.mxu0 %v2124
    %2682 = vmatprep.subr.bf16.mxu0 %v2133
    %2683 = vmatpush1.bf16.msra.mxu0 %v2132
    %2684 = vmatprep.subr.bf16.mxu0 %v2141
    %2685 = vmatpush1.bf16.msra.mxu0 %v2140
    %2686 = vmatprep.subr.bf16.mxu0 %v2149
    %2687 = vmatpush1.bf16.msra.mxu0 %v2148
    %2688 = vmatprep.subr.bf16.mxu0 %v2157
    %2689 = vmatpush1.bf16.msra.mxu0 %v2156
    %2690 = vmatprep.subr.bf16.mxu0 %v2165
    %2691 = vmatpush1.bf16.msra.mxu0 %v2164
    %2692 = vmatprep.subr.bf16.mxu0 %v2173
    %2693 = vmatpush1.bf16.msra.mxu0 %v2172
    %2694 = vmatprep.subr.bf16.mxu0 %v2181
    %2695 = vmatpush1.bf16.msra.mxu0 %v2180
    %2696 = vmatprep.subr.bf16.mxu0 %v2189
    %2697 = vmatpush1.bf16.msra.mxu0 %v2188
    %2698 = vmatprep.subr.bf16.mxu0 %v2197
    %2699 = vmatpush1.bf16.msra.mxu0 %v2196
    %2700 = vmatprep.mubr.bf16.mxu0 %v1047
    %2701 = vmatmul.mubr.bf16.gmra.mrb[0].mxu0 %v1046
    %v2702 = vpop.f32.mrb[0].mxu0
    %v2703 = vadd.f32 0.0, %v2702
    %v2704 = vpop.f32.mrb[0].mxu0
    %v2705 = vadd.f32 0.0, %v2704
    %v2706 = vpop.f32.mrb[0].mxu0
    %v2707 = vpop.f32.mrb[0].mxu0
    %2708 = vdwg.mxu0
    %2709 = vmatprep.subr.bf16.mxu0 %v2205
    %2710 = vmatpush1.bf16.msra.mxu0 %v2204
    %2711 = vmatprep.subr.bf16.mxu0 %v2213
    %2712 = vmatpush1.bf16.msra.mxu0 %v2212
    %2713 = vmatprep.subr.bf16.mxu0 %v2221
    %2714 = vmatpush1.bf16.msra.mxu0 %v2220
    %2715 = vmatprep.subr.bf16.mxu0 %v2229
    %2716 = vmatpush1.bf16.msra.mxu0 %v2228
    %2717 = vmatprep.subr.bf16.mxu0 %v2237
    %2718 = vmatpush1.bf16.msra.mxu0 %v2236
    %2719 = vmatprep.subr.bf16.mxu0 %v2245
    %2720 = vmatpush1.bf16.msra.mxu0 %v2244
    %2721 = vmatprep.subr.bf16.mxu0 %v2253
    %2722 = vmatpush1.bf16.msra.mxu0 %v2252
    %2723 = vmatprep.subr.bf16.mxu0 %v2261
    %2724 = vmatpush1.bf16.msra.mxu0 %v2260
    %2725 = vmatprep.subr.bf16.mxu0 %v2269
    %2726 = vmatpush1.bf16.msra.mxu0 %v2268
    %2727 = vmatprep.subr.bf16.mxu0 %v2277
    %2728 = vmatpush1.bf16.msra.mxu0 %v2276
    %2729 = vmatprep.subr.bf16.mxu0 %v2285
    %2730 = vmatpush1.bf16.msra.mxu0 %v2284
    %2731 = vmatprep.subr.bf16.mxu0 %v2293
    %2732 = vmatpush1.bf16.msra.mxu0 %v2292
    %2733 = vmatprep.subr.bf16.mxu0 %v2301
    %2734 = vmatpush1.bf16.msra.mxu0 %v2300
    %2735 = vmatprep.subr.bf16.mxu0 %v2309
    %2736 = vmatpush1.bf16.msra.mxu0 %v2308
    %2737 = vmatprep.subr.bf16.mxu0 %v2317
    %2738 = vmatpush1.bf16.msra.mxu0 %v2316
    %2739 = vmatprep.subr.bf16.mxu0 %v2325
    %2740 = vmatpush1.bf16.msra.mxu0 %v2324
    %2741 = vmatprep.mubr.bf16.mxu0 %v1049
    %2742 = vmatmul.mubr.bf16.gmra.mrb[0].mxu0 %v1048
    %v2743 = vpop.f32.mrb[0].mxu0
    %v2744 = vadd.f32 %v2703, %v2743
    %v2745 = vpop.f32.mrb[0].mxu0
    %v2746 = vadd.f32 %v2705, %v2745
    %v2747 = vpop.f32.mrb[0].mxu0
    %v2748 = vpop.f32.mrb[0].mxu0
    %2749 = vdwg.mxu0
    %2750 = vmatprep.subr.bf16.mxu0 %v2079
    %2751 = vmatpush1.bf16.msra.mxu0 %v2078
    %2752 = vmatprep.subr.bf16.mxu0 %v2087
    %2753 = vmatpush1.bf16.msra.mxu0 %v2086
    %2754 = vmatprep.subr.bf16.mxu0 %v2095
    %2755 = vmatpush1.bf16.msra.mxu0 %v2094
    %2756 = vmatprep.subr.bf16.mxu0 %v2103
    %2757 = vmatpush1.bf16.msra.mxu0 %v2102
    %2758 = vmatprep.subr.bf16.mxu0 %v2111
    %2759 = vmatpush1.bf16.msra.mxu0 %v2110
    %2760 = vmatprep.subr.bf16.mxu0 %v2119
    %2761 = vmatpush1.bf16.msra.mxu0 %v2118
    %2762 = vmatprep.subr.bf16.mxu0 %v2127
    %2763 = vmatpush1.bf16.msra.mxu0 %v2126
    %2764 = vmatprep.subr.bf16.mxu0 %v2135
    %2765 = vmatpush1.bf16.msra.mxu0 %v2134
    %2766 = vmatprep.subr.bf16.mxu0 %v2143
    %2767 = vmatpush1.bf16.msra.mxu0 %v2142
    %2768 = vmatprep.subr.bf16.mxu0 %v2151
    %2769 = vmatpush1.bf16.msra.mxu0 %v2150
    %2770 = vmatprep.subr.bf16.mxu0 %v2159
    %2771 = vmatpush1.bf16.msra.mxu0 %v2158
    %2772 = vmatprep.subr.bf16.mxu0 %v2167
    %2773 = vmatpush1.bf16.msra.mxu0 %v2166
    %2774 = vmatprep.subr.bf16.mxu0 %v2175
    %2775 = vmatpush1.bf16.msra.mxu0 %v2174
    %2776 = vmatprep.subr.bf16.mxu0 %v2183
    %2777 = vmatpush1.bf16.msra.mxu0 %v2182
    %2778 = vmatprep.subr.bf16.mxu0 %v2191
    %2779 = vmatpush1.bf16.msra.mxu0 %v2190
    %2780 = vmatprep.subr.bf16.mxu0 %v2199
    %2781 = vmatpush1.bf16.msra.mxu0 %v2198
    %2782 = vmatprep.mubr.bf16.mxu0 %v1047
    %2783 = vmatmul.mubr.bf16.gmra.mrb[0].mxu0 %v1046
    %v2784 = vpop.f32.mrb[0].mxu0
    %v2785 = vadd.f32 0.0, %v2784
    %v2786 = vpop.f32.mrb[0].mxu0
    %v2787 = vadd.f32 0.0, %v2786
    %v2788 = vpop.f32.mrb[0].mxu0
    %v2789 = vpop.f32.mrb[0].mxu0
    %2790 = vdwg.mxu0
    %2791 = vmatprep.subr.bf16.mxu0 %v2207
    %2792 = vmatpush1.bf16.msra.mxu0 %v2206
    %2793 = vmatprep.subr.bf16.mxu0 %v2215
    %2794 = vmatpush1.bf16.msra.mxu0 %v2214
    %2795 = vmatprep.subr.bf16.mxu0 %v2223
    %2796 = vmatpush1.bf16.msra.mxu0 %v2222
    %2797 = vmatprep.subr.bf16.mxu0 %v2231
    %2798 = vmatpush1.bf16.msra.mxu0 %v2230
    %2799 = vmatprep.subr.bf16.mxu0 %v2239
    %2800 = vmatpush1.bf16.msra.mxu0 %v2238
    %2801 = vmatprep.subr.bf16.mxu0 %v2247
    %2802 = vmatpush1.bf16.msra.mxu0 %v2246
    %2803 = vmatprep.subr.bf16.mxu0 %v2255
    %2804 = vmatpush1.bf16.msra.mxu0 %v2254
    %2805 = vmatprep.subr.bf16.mxu0 %v2263
    %2806 = vmatpush1.bf16.msra.mxu0 %v2262
    %2807 = vmatprep.subr.bf16.mxu0 %v2271
    %2808 = vmatpush1.bf16.msra.mxu0 %v2270
    %2809 = vmatprep.subr.bf16.mxu0 %v2279
    %2810 = vmatpush1.bf16.msra.mxu0 %v2278
    %2811 = vmatprep.subr.bf16.mxu0 %v2287
    %2812 = vmatpush1.bf16.msra.mxu0 %v2286
    %2813 = vmatprep.subr.bf16.mxu0 %v2295
    %2814 = vmatpush1.bf16.msra.mxu0 %v2294
    %2815 = vmatprep.subr.bf16.mxu0 %v2303
    %2816 = vmatpush1.bf16.msra.mxu0 %v2302
    %2817 = vmatprep.subr.bf16.mxu0 %v2311
    %2818 = vmatpush1.bf16.msra.mxu0 %v2310
    %2819 = vmatprep.subr.bf16.mxu0 %v2319
    %2820 = vmatpush1.bf16.msra.mxu0 %v2318
    %2821 = vmatprep.subr.bf16.mxu0 %v2327
    %2822 = vmatpush1.bf16.msra.mxu0 %v2326
    %2823 = vmatprep.mubr.bf16.mxu0 %v1049
    %2824 = vmatmul.mubr.bf16.gmra.mrb[0].mxu0 %v1048
    %v2825 = vpop.f32.mrb[0].mxu0
    %v2826 = vadd.f32 %v2785, %v2825
    %v2827 = vpop.f32.mrb[0].mxu0
    %v2828 = vadd.f32 %v2787, %v2827
    %v2829 = vpop.f32.mrb[0].mxu0
    %v2830 = vpop.f32.mrb[0].mxu0
    %2831 = vdwg.mxu0
    %2832 = vmatprep.subr.bf16.mxu0 %v2081
    %2833 = vmatpush1.bf16.msra.mxu0 %v2080
    %2834 = vmatprep.subr.bf16.mxu0 %v2089
    %2835 = vmatpush1.bf16.msra.mxu0 %v2088
    %2836 = vmatprep.subr.bf16.mxu0 %v2097
    %2837 = vmatpush1.bf16.msra.mxu0 %v2096
    %2838 = vmatprep.subr.bf16.mxu0 %v2105
    %2839 = vmatpush1.bf16.msra.mxu0 %v2104
    %2840 = vmatprep.subr.bf16.mxu0 %v2113
    %2841 = vmatpush1.bf16.msra.mxu0 %v2112
    %2842 = vmatprep.subr.bf16.mxu0 %v2121
    %2843 = vmatpush1.bf16.msra.mxu0 %v2120
    %2844 = vmatprep.subr.bf16.mxu0 %v2129
    %2845 = vmatpush1.bf16.msra.mxu0 %v2128
    %2846 = vmatprep.subr.bf16.mxu0 %v2137
    %2847 = vmatpush1.bf16.msra.mxu0 %v2136
    %2848 = vmatprep.subr.bf16.mxu0 %v2145
    %2849 = vmatpush1.bf16.msra.mxu0 %v2144
    %2850 = vmatprep.subr.bf16.mxu0 %v2153
    %2851 = vmatpush1.bf16.msra.mxu0 %v2152
    %2852 = vmatprep.subr.bf16.mxu0 %v2161
    %2853 = vmatpush1.bf16.msra.mxu0 %v2160
    %2854 = vmatprep.subr.bf16.mxu0 %v2169
    %2855 = vmatpush1.bf16.msra.mxu0 %v2168
    %2856 = vmatprep.subr.bf16.mxu0 %v2177
    %2857 = vmatpush1.bf16.msra.mxu0 %v2176
    %2858 = vmatprep.subr.bf16.mxu0 %v2185
    %2859 = vmatpush1.bf16.msra.mxu0 %v2184
    %2860 = vmatprep.subr.bf16.mxu0 %v2193
    %2861 = vmatpush1.bf16.msra.mxu0 %v2192
    %2862 = vmatprep.subr.bf16.mxu0 %v2201
    %2863 = vmatpush1.bf16.msra.mxu0 %v2200
    %2864 = vmatprep.mubr.bf16.mxu0 %v1047
    %2865 = vmatmul.mubr.bf16.gmra.mrb[0].mxu0 %v1046
    %v2866 = vpop.f32.mrb[0].mxu0
    %v2867 = vadd.f32 0.0, %v2866
    %v2868 = vpop.f32.mrb[0].mxu0
    %v2869 = vadd.f32 0.0, %v2868
    %v2870 = vpop.f32.mrb[0].mxu0
    %v2871 = vpop.f32.mrb[0].mxu0
    %2872 = vdwg.mxu0
    %2873 = vmatprep.subr.bf16.mxu0 %v2209
    %2874 = vmatpush1.bf16.msra.mxu0 %v2208
    %2875 = vmatprep.subr.bf16.mxu0 %v2217
    %2876 = vmatpush1.bf16.msra.mxu0 %v2216
    %2877 = vmatprep.subr.bf16.mxu0 %v2225
    %2878 = vmatpush1.bf16.msra.mxu0 %v2224
    %2879 = vmatprep.subr.bf16.mxu0 %v2233
    %2880 = vmatpush1.bf16.msra.mxu0 %v2232
    %2881 = vmatprep.subr.bf16.mxu0 %v2241
    %2882 = vmatpush1.bf16.msra.mxu0 %v2240
    %2883 = vmatprep.subr.bf16.mxu0 %v2249
    %2884 = vmatpush1.bf16.msra.mxu0 %v2248
    %2885 = vmatprep.subr.bf16.mxu0 %v2257
    %2886 = vmatpush1.bf16.msra.mxu0 %v2256
    %2887 = vmatprep.subr.bf16.mxu0 %v2265
    %2888 = vmatpush1.bf16.msra.mxu0 %v2264
    %2889 = vmatprep.subr.bf16.mxu0 %v2273
    %2890 = vmatpush1.bf16.msra.mxu0 %v2272
    %2891 = vmatprep.subr.bf16.mxu0 %v2281
    %2892 = vmatpush1.bf16.msra.mxu0 %v2280
    %2893 = vmatprep.subr.bf16.mxu0 %v2289
    %2894 = vmatpush1.bf16.msra.mxu0 %v2288
    %2895 = vmatprep.subr.bf16.mxu0 %v2297
    %2896 = vmatpush1.bf16.msra.mxu0 %v2296
    %2897 = vmatprep.subr.bf16.mxu0 %v2305
    %2898 = vmatpush1.bf16.msra.mxu0 %v2304
    %2899 = vmatprep.subr.bf16.mxu0 %v2313
    %2900 = vmatpush1.bf16.msra.mxu0 %v2312
    %2901 = vmatprep.subr.bf16.mxu0 %v2321
    %2902 = vmatpush1.bf16.msra.mxu0 %v2320
    %2903 = vmatprep.subr.bf16.mxu0 %v2329
    %2904 = vmatpush1.bf16.msra.mxu0 %v2328
    %2905 = vmatprep.mubr.bf16.mxu0 %v1049
    %2906 = vmatmul.mubr.bf16.gmra.mrb[0].mxu0 %v1048
    %v2907 = vpop.f32.mrb[0].mxu0
    %v2908 = vadd.f32 %v2867, %v2907
    %v2909 = vpop.f32.mrb[0].mxu0
    %v2910 = vadd.f32 %v2869, %v2909
    %v2911 = vpop.f32.mrb[0].mxu0
    %v2912 = vpop.f32.mrb[0].mxu0
    %2913 = vdwg.mxu0
    %v2914 = vrot.slane %v2662, 4
    %v2915 = vadd.f32 %v2662, %v2914
    %v2916 = vrot.slane %v2915, 2
    %v2917 = vadd.f32 %v2915, %v2916
    %v2918 = vrot.slane %v2917, 1
    %v2919 = vadd.f32 %v2917, %v2918
    %v2920 = vrot.slane %v2664, 4
    %v2921 = vadd.f32 %v2664, %v2920
    %v2922 = vrot.slane %v2921, 2
    %v2923 = vadd.f32 %v2921, %v2922
    %v2924 = vrot.slane %v2923, 1
    %v2925 = vadd.f32 %v2923, %v2924
    %v2926 = vrot.slane %v2744, 4
    %v2927 = vadd.f32 %v2744, %v2926
    %v2928 = vrot.slane %v2927, 2
    %v2929 = vadd.f32 %v2927, %v2928
    %v2930 = vrot.slane %v2929, 1
    %v2931 = vadd.f32 %v2929, %v2930
    %v2932 = vrot.slane %v2746, 4
    %v2933 = vadd.f32 %v2746, %v2932
    %v2934 = vrot.slane %v2933, 2
    %v2935 = vadd.f32 %v2933, %v2934
    %v2936 = vrot.slane %v2935, 1
    %v2937 = vadd.f32 %v2935, %v2936
    %v2938 = vrot.slane %v2826, 4
    %v2939 = vadd.f32 %v2826, %v2938
    %v2940 = vrot.slane %v2939, 2
    %v2941 = vadd.f32 %v2939, %v2940
    %v2942 = vrot.slane %v2941, 1
    %v2943 = vadd.f32 %v2941, %v2942
    %v2944 = vrot.slane %v2828, 4
    %v2945 = vadd.f32 %v2828, %v2944
    %v2946 = vrot.slane %v2945, 2
    %v2947 = vadd.f32 %v2945, %v2946
    %v2948 = vrot.slane %v2947, 1
    %v2949 = vadd.f32 %v2947, %v2948
    %v2950 = vrot.slane %v2908, 4
    %v2951 = vadd.f32 %v2908, %v2950
    %v2952 = vrot.slane %v2951, 2
    %v2953 = vadd.f32 %v2951, %v2952
    %v2954 = vrot.slane %v2953, 1
    %v2955 = vadd.f32 %v2953, %v2954
    %v2956 = vrot.slane %v2910, 4
    %v2957 = vadd.f32 %v2910, %v2956
    %v2958 = vrot.slane %v2957, 2
    %v2959 = vadd.f32 %v2957, %v2958
    %v2960 = vrot.slane %v2959, 1
    %v2961 = vadd.f32 %v2959, %v2960
    %v2962 = vmul.f32 %v2919, %v383
    %v2963 = vmul.f32 %v2925, %v383
    %v2964 = vmul.f32 %v2931, %v383
    %v2965 = vmul.f32 %v2937, %v383
    %v2966 = vmul.f32 %v2943, %v383
    %v2967 = vmul.f32 %v2949, %v383
    %v2968 = vmul.f32 %v2955, %v383
    %v2969 = vmul.f32 %v2961, %v383
    %v2970 = vsub.f32 %v2662, %v2962
    %v2971 = vsub.f32 %v2664, %v2963
    %v2972 = vsub.f32 %v2744, %v2964
    %v2973 = vsub.f32 %v2746, %v2965
    %v2974 = vsub.f32 %v2826, %v2966
    %v2975 = vsub.f32 %v2828, %v2967
    %v2976 = vsub.f32 %v2908, %v2968
    %v2977 = vsub.f32 %v2910, %v2969
    %v2978 = vmul.f32 %v2970, %v2970
    %v2979 = vmul.f32 %v2971, %v2971
    %v2980 = vmul.f32 %v2972, %v2972
    %v2981 = vmul.f32 %v2973, %v2973
    %v2982 = vmul.f32 %v2974, %v2974
    %v2983 = vmul.f32 %v2975, %v2975
    %v2984 = vmul.f32 %v2976, %v2976
    %v2985 = vmul.f32 %v2977, %v2977
    %v2986 = vrot.slane %v2978, 4
    %v2987 = vadd.f32 %v2978, %v2986
    %v2988 = vrot.slane %v2987, 2
    %v2989 = vadd.f32 %v2987, %v2988
    %v2990 = vrot.slane %v2989, 1
    %v2991 = vadd.f32 %v2989, %v2990
    %v2992 = vrot.slane %v2979, 4
    %v2993 = vadd.f32 %v2979, %v2992
    %v2994 = vrot.slane %v2993, 2
    %v2995 = vadd.f32 %v2993, %v2994
    %v2996 = vrot.slane %v2995, 1
    %v2997 = vadd.f32 %v2995, %v2996
    %v2998 = vrot.slane %v2980, 4
    %v2999 = vadd.f32 %v2980, %v2998
    %v3000 = vrot.slane %v2999, 2
    %v3001 = vadd.f32 %v2999, %v3000
    %v3002 = vrot.slane %v3001, 1
    %v3003 = vadd.f32 %v3001, %v3002
    %v3004 = vrot.slane %v2981, 4
    %v3005 = vadd.f32 %v2981, %v3004
    %v3006 = vrot.slane %v3005, 2
    %v3007 = vadd.f32 %v3005, %v3006
    %v3008 = vrot.slane %v3007, 1
    %v3009 = vadd.f32 %v3007, %v3008
    %v3010 = vrot.slane %v2982, 4
    %v3011 = vadd.f32 %v2982, %v3010
    %v3012 = vrot.slane %v3011, 2
    %v3013 = vadd.f32 %v3011, %v3012
    %v3014 = vrot.slane %v3013, 1
    %v3015 = vadd.f32 %v3013, %v3014
    %v3016 = vrot.slane %v2983, 4
    %v3017 = vadd.f32 %v2983, %v3016
    %v3018 = vrot.slane %v3017, 2
    %v3019 = vadd.f32 %v3017, %v3018
    %v3020 = vrot.slane %v3019, 1
    %v3021 = vadd.f32 %v3019, %v3020
    %v3022 = vrot.slane %v2984, 4
    %v3023 = vadd.f32 %v2984, %v3022
    %v3024 = vrot.slane %v3023, 2
    %v3025 = vadd.f32 %v3023, %v3024
    %v3026 = vrot.slane %v3025, 1
    %v3027 = vadd.f32 %v3025, %v3026
    %v3028 = vrot.slane %v2985, 4
    %v3029 = vadd.f32 %v2985, %v3028
    %v3030 = vrot.slane %v3029, 2
    %v3031 = vadd.f32 %v3029, %v3030
    %v3032 = vrot.slane %v3031, 1
    %v3033 = vadd.f32 %v3031, %v3032
    %v3034 = vmul.f32 %v2991, %v383
    %v3035 = vmul.f32 %v2997, %v383
    %v3036 = vmul.f32 %v3003, %v383
    %v3037 = vmul.f32 %v3009, %v383
    %v3038 = vmul.f32 %v3015, %v383
    %v3039 = vmul.f32 %v3021, %v383
    %v3040 = vmul.f32 %v3027, %v383
    %v3041 = vmul.f32 %v3033, %v383
    %v3042 = vadd.f32 %v3034, 0.8
    %v3043 = vadd.f32 %v3035, 0.8
    %v3044 = vadd.f32 %v3036, 0.8
    %v3045 = vadd.f32 %v3037, 0.8
    %v3046 = vadd.f32 %v3038, 0.8
    %v3047 = vadd.f32 %v3039, 0.8
    %v3048 = vadd.f32 %v3040, 0.8
    %v3049 = vadd.f32 %v3041, 0.8
    %v3050 = vrsqrt.pop %v3042
    %v3051 = vrsqrt.pop %v3043
    %v3052 = vrsqrt.pop %v3044
    %v3053 = vrsqrt.pop %v3045
    %v3054 = vrsqrt.pop %v3046
    %v3055 = vrsqrt.pop %v3047
    %v3056 = vrsqrt.pop %v3048
    %v3057 = vrsqrt.pop %v3049
    %v3058 = vmul.f32 %v2970, %v3050
    %v3059 = vmul.f32 %v2971, %v3051
    %v3060 = vmul.f32 %v2972, %v3052
    %v3061 = vmul.f32 %v2973, %v3053
    %v3062 = vmul.f32 %v2974, %v3054
    %v3063 = vmul.f32 %v2975, %v3055
    %v3064 = vmul.f32 %v2976, %v3056
    %v3065 = vmul.f32 %v2977, %v3057
    %v3066 = vld [vmem:[%s10] sm:$0xff]
    %v3068 = vlaneseq
    %v3069 = vshrl.u32 %v3068, 7
    %v3070 = vsub.s32 0, %v3069
    %v3071 = vrot.slane %v3066, %v3070
    %v3072 = vlaneseq
    %v3073 = vshrl.u32 %v3072, 7
    %v3074 = vsub.s32 1, %v3073
    %v3075 = vrot.slane %v3066, %v3074
    %v3076 = vlaneseq
    %v3077 = vshrl.u32 %v3076, 7
    %v3078 = vsub.s32 2, %v3077
    %v3079 = vrot.slane %v3066, %v3078
    %v3080 = vlaneseq
    %v3081 = vshrl.u32 %v3080, 7
    %v3082 = vsub.s32 3, %v3081
    %v3083 = vrot.slane %v3066, %v3082
    %v3084 = vlaneseq
    %v3085 = vshrl.u32 %v3084, 7
    %v3086 = vsub.s32 4, %v3085
    %v3087 = vrot.slane %v3066, %v3086
    %v3088 = vlaneseq
    %v3089 = vshrl.u32 %v3088, 7
    %v3090 = vsub.s32 5, %v3089
    %v3091 = vrot.slane %v3066, %v3090
    %v3092 = vlaneseq
    %v3093 = vshrl.u32 %v3092, 7
    %v3094 = vsub.s32 6, %v3093
    %v3095 = vrot.slane %v3066, %v3094
    %v3096 = vlaneseq
    %v3097 = vshrl.u32 %v3096, 7
    %v3098 = vsub.s32 7, %v3097
    %v3099 = vrot.slane %v3066, %v3098
    %v3108 = vmul.f32 %v3058, %v3071
    %v3109 = vmul.f32 %v3059, %v3075
    %v3110 = vmul.f32 %v3060, %v3079
    %v3111 = vmul.f32 %v3061, %v3083
    %v3112 = vmul.f32 %v3062, %v3087
    %v3113 = vmul.f32 %v3063, %v3091
    %v3114 = vmul.f32 %v3064, %v3095
    %v3115 = vmul.f32 %v3065, %v3099
    %v3116 = vld [vmem:[%s11] sm:$0xff]
    %v3118 = vlaneseq
    %v3119 = vshrl.u32 %v3118, 7
    %v3120 = vsub.s32 0, %v3119
    %v3121 = vrot.slane %v3116, %v3120
    %v3122 = vlaneseq
    %v3123 = vshrl.u32 %v3122, 7
    %v3124 = vsub.s32 1, %v3123
    %v3125 = vrot.slane %v3116, %v3124
    %v3126 = vlaneseq
    %v3127 = vshrl.u32 %v3126, 7
    %v3128 = vsub.s32 2, %v3127
    %v3129 = vrot.slane %v3116, %v3128
    %v3130 = vlaneseq
    %v3131 = vshrl.u32 %v3130, 7
    %v3132 = vsub.s32 3, %v3131
    %v3133 = vrot.slane %v3116, %v3132
    %v3134 = vlaneseq
    %v3135 = vshrl.u32 %v3134, 7
    %v3136 = vsub.s32 4, %v3135
    %v3137 = vrot.slane %v3116, %v3136
    %v3138 = vlaneseq
    %v3139 = vshrl.u32 %v3138, 7
    %v3140 = vsub.s32 5, %v3139
    %v3141 = vrot.slane %v3116, %v3140
    %v3142 = vlaneseq
    %v3143 = vshrl.u32 %v3142, 7
    %v3144 = vsub.s32 6, %v3143
    %v3145 = vrot.slane %v3116, %v3144
    %v3146 = vlaneseq
    %v3147 = vshrl.u32 %v3146, 7
    %v3148 = vsub.s32 7, %v3147
    %v3149 = vrot.slane %v3116, %v3148
    %v3158 = vadd.f32 %v3108, %v3121
    %v3159 = vadd.f32 %v3109, %v3125
    %v3160 = vadd.f32 %v3110, %v3129
    %v3161 = vadd.f32 %v3111, %v3133
    %v3162 = vadd.f32 %v3112, %v3137
    %v3163 = vadd.f32 %v3113, %v3141
    %v3164 = vadd.f32 %v3114, %v3145
    %v3165 = vadd.f32 %v3115, %v3149
    %v3166 = vmul.f32 %v3158, 0.2
    %v3167 = vmul.f32 %v3159, 0.2
    %v3168 = vmul.f32 %v3160, 0.2
    %v3169 = vmul.f32 %v3161, 0.2
    %v3170 = vmul.f32 %v3162, 0.2
    %v3171 = vmul.f32 %v3163, 0.2
    %v3172 = vmul.f32 %v3164, 0.2
    %v3173 = vmul.f32 %v3165, 0.2
    %v3174 = vmax.f32 %v3158, %v3166
    %v3175 = vmax.f32 %v3159, %v3167
    %v3176 = vmax.f32 %v3160, %v3168
    %v3177 = vmax.f32 %v3161, %v3169
    %v3178 = vmax.f32 %v3162, %v3170
    %v3179 = vmax.f32 %v3163, %v3171
    %v3180 = vmax.f32 %v3164, %v3172
    %v3181 = vmax.f32 %v3165, %v3173
    %v3182 = vpack.c.bf16 %v3174, %v3174
    %v3183 = vpack.c.bf16 %v3175, %v3175
    %v3184 = vpack.c.bf16 %v3176, %v3176
    %v3185 = vpack.c.bf16 %v3177, %v3177
    %v3186 = vpack.c.bf16 %v3178, %v3178
    %v3187 = vpack.c.bf16 %v3179, %v3179
    %v3188 = vpack.c.bf16 %v3180, %v3180
    %v3189 = vpack.c.bf16 %v3181, %v3181
    %v3190 = vld [vmem:[#allocation15] sm:$0xff]
    %v3191 = vld [vmem:[#allocation15 + $0x8] sm:$0xff]
    %v3192 = vld [vmem:[#allocation15 + $0x10] sm:$0xff]
    %v3193 = vld [vmem:[#allocation15 + $0x18] sm:$0xff]
    %v3194 = vld [vmem:[#allocation15 + $0x20] sm:$0xff]
    %v3195 = vld [vmem:[#allocation15 + $0x28] sm:$0xff]
    %v3196 = vld [vmem:[#allocation15 + $0x30] sm:$0xff]
    %v3197 = vld [vmem:[#allocation15 + $0x38] sm:$0xff]
    %v3198 = vld [vmem:[#allocation15 + $0x40] sm:$0xff]
    %v3199 = vld [vmem:[#allocation15 + $0x48] sm:$0xff]
    %v3200 = vld [vmem:[#allocation15 + $0x50] sm:$0xff]
    %v3201 = vld [vmem:[#allocation15 + $0x58] sm:$0xff]
    %v3202 = vld [vmem:[#allocation15 + $0x60] sm:$0xff]
    %v3203 = vld [vmem:[#allocation15 + $0x68] sm:$0xff]
    %v3204 = vld [vmem:[#allocation15 + $0x70] sm:$0xff]
    %v3205 = vld [vmem:[#allocation15 + $0x78] sm:$0xff]
    %v3206 = vld [vmem:[#allocation15 + $0x80] sm:$0xff]
    %v3207 = vld [vmem:[#allocation15 + $0x88] sm:$0xff]
    %v3208 = vld [vmem:[#allocation15 + $0x90] sm:$0xff]
    %v3209 = vld [vmem:[#allocation15 + $0x98] sm:$0xff]
    %v3210 = vld [vmem:[#allocation15 + $0xa0] sm:$0xff]
    %v3211 = vld [vmem:[#allocation15 + $0xa8] sm:$0xff]
    %v3212 = vld [vmem:[#allocation15 + $0xb0] sm:$0xff]
    %v3213 = vld [vmem:[#allocation15 + $0xb8] sm:$0xff]
    %v3214 = vld [vmem:[#allocation15 + $0xc0] sm:$0xff]
    %v3215 = vld [vmem:[#allocation15 + $0xc8] sm:$0xff]
    %v3216 = vld [vmem:[#allocation15 + $0xd0] sm:$0xff]
    %v3217 = vld [vmem:[#allocation15 + $0xd8] sm:$0xff]
    %v3218 = vld [vmem:[#allocation15 + $0xe0] sm:$0xff]
    %v3219 = vld [vmem:[#allocation15 + $0xe8] sm:$0xff]
    %v3220 = vld [vmem:[#allocation15 + $0xf0] sm:$0xff]
    %v3221 = vld [vmem:[#allocation15 + $0xf8] sm:$0xff]
    %v3222 = vld [vmem:[#allocation15 + $0x100] sm:$0xff]
    %v3223 = vld [vmem:[#allocation15 + $0x108] sm:$0xff]
    %v3224 = vld [vmem:[#allocation15 + $0x110] sm:$0xff]
    %v3225 = vld [vmem:[#allocation15 + $0x118] sm:$0xff]
    %v3226 = vld [vmem:[#allocation15 + $0x120] sm:$0xff]
    %v3227 = vld [vmem:[#allocation15 + $0x128] sm:$0xff]
    %v3228 = vld [vmem:[#allocation15 + $0x130] sm:$0xff]
    %v3229 = vld [vmem:[#allocation15 + $0x138] sm:$0xff]
    %v3230 = vld [vmem:[#allocation15 + $0x140] sm:$0xff]
    %v3231 = vld [vmem:[#allocation15 + $0x148] sm:$0xff]
    %v3232 = vld [vmem:[#allocation15 + $0x150] sm:$0xff]
    %v3233 = vld [vmem:[#allocation15 + $0x158] sm:$0xff]
    %v3234 = vld [vmem:[#allocation15 + $0x160] sm:$0xff]
    %v3235 = vld [vmem:[#allocation15 + $0x168] sm:$0xff]
    %v3236 = vld [vmem:[#allocation15 + $0x170] sm:$0xff]
    %v3237 = vld [vmem:[#allocation15 + $0x178] sm:$0xff]
    %v3238 = vld [vmem:[#allocation15 + $0x180] sm:$0xff]
    %v3239 = vld [vmem:[#allocation15 + $0x188] sm:$0xff]
    %v3240 = vld [vmem:[#allocation15 + $0x190] sm:$0xff]
    %v3241 = vld [vmem:[#allocation15 + $0x198] sm:$0xff]
    %v3242 = vld [vmem:[#allocation15 + $0x1a0] sm:$0xff]
    %v3243 = vld [vmem:[#allocation15 + $0x1a8] sm:$0xff]
    %v3244 = vld [vmem:[#allocation15 + $0x1b0] sm:$0xff]
    %v3245 = vld [vmem:[#allocation15 + $0x1b8] sm:$0xff]
    %v3246 = vld [vmem:[#allocation15 + $0x1c0] sm:$0xff]
    %v3247 = vld [vmem:[#allocation15 + $0x1c8] sm:$0xff]
    %v3248 = vld [vmem:[#allocation15 + $0x1d0] sm:$0xff]
    %v3249 = vld [vmem:[#allocation15 + $0x1d8] sm:$0xff]
    %v3250 = vld [vmem:[#allocation15 + $0x1e0] sm:$0xff]
    %v3251 = vld [vmem:[#allocation15 + $0x1e8] sm:$0xff]
    %v3252 = vld [vmem:[#allocation15 + $0x1f0] sm:$0xff]
    %v3253 = vld [vmem:[#allocation15 + $0x1f8] sm:$0xff]
    %v3254 = vld [vmem:[#allocation15 + $0x200] sm:$0xff]
    %v3255 = vld [vmem:[#allocation15 + $0x208] sm:$0xff]
    %v3256 = vld [vmem:[#allocation15 + $0x210] sm:$0xff]
    %v3257 = vld [vmem:[#allocation15 + $0x218] sm:$0xff]
    %v3258 = vld [vmem:[#allocation15 + $0x220] sm:$0xff]
    %v3259 = vld [vmem:[#allocation15 + $0x228] sm:$0xff]
    %v3260 = vld [vmem:[#allocation15 + $0x230] sm:$0xff]
    %v3261 = vld [vmem:[#allocation15 + $0x238] sm:$0xff]
    %v3262 = vld [vmem:[#allocation15 + $0x240] sm:$0xff]
    %v3263 = vld [vmem:[#allocation15 + $0x248] sm:$0xff]
    %v3264 = vld [vmem:[#allocation15 + $0x250] sm:$0xff]
    %v3265 = vld [vmem:[#allocation15 + $0x258] sm:$0xff]
    %v3266 = vld [vmem:[#allocation15 + $0x260] sm:$0xff]
    %v3267 = vld [vmem:[#allocation15 + $0x268] sm:$0xff]
    %v3268 = vld [vmem:[#allocation15 + $0x270] sm:$0xff]
    %v3269 = vld [vmem:[#allocation15 + $0x278] sm:$0xff]
    %v3270 = vld [vmem:[#allocation15 + $0x280] sm:$0xff]
    %v3271 = vld [vmem:[#allocation15 + $0x288] sm:$0xff]
    %v3272 = vld [vmem:[#allocation15 + $0x290] sm:$0xff]
    %v3273 = vld [vmem:[#allocation15 + $0x298] sm:$0xff]
    %v3274 = vld [vmem:[#allocation15 + $0x2a0] sm:$0xff]
    %v3275 = vld [vmem:[#allocation15 + $0x2a8] sm:$0xff]
    %v3276 = vld [vmem:[#allocation15 + $0x2b0] sm:$0xff]
    %v3277 = vld [vmem:[#allocation15 + $0x2b8] sm:$0xff]
    %v3278 = vld [vmem:[#allocation15 + $0x2c0] sm:$0xff]
    %v3279 = vld [vmem:[#allocation15 + $0x2c8] sm:$0xff]
    %v3280 = vld [vmem:[#allocation15 + $0x2d0] sm:$0xff]
    %v3281 = vld [vmem:[#allocation15 + $0x2d8] sm:$0xff]
    %v3282 = vld [vmem:[#allocation15 + $0x2e0] sm:$0xff]
    %v3283 = vld [vmem:[#allocation15 + $0x2e8] sm:$0xff]
    %v3284 = vld [vmem:[#allocation15 + $0x2f0] sm:$0xff]
    %v3285 = vld [vmem:[#allocation15 + $0x2f8] sm:$0xff]
    %v3286 = vld [vmem:[#allocation15 + $0x300] sm:$0xff]
    %v3287 = vld [vmem:[#allocation15 + $0x308] sm:$0xff]
    %v3288 = vld [vmem:[#allocation15 + $0x310] sm:$0xff]
    %v3289 = vld [vmem:[#allocation15 + $0x318] sm:$0xff]
    %v3290 = vld [vmem:[#allocation15 + $0x320] sm:$0xff]
    %v3291 = vld [vmem:[#allocation15 + $0x328] sm:$0xff]
    %v3292 = vld [vmem:[#allocation15 + $0x330] sm:$0xff]
    %v3293 = vld [vmem:[#allocation15 + $0x338] sm:$0xff]
    %v3294 = vld [vmem:[#allocation15 + $0x340] sm:$0xff]
    %v3295 = vld [vmem:[#allocation15 + $0x348] sm:$0xff]
    %v3296 = vld [vmem:[#allocation15 + $0x350] sm:$0xff]
    %v3297 = vld [vmem:[#allocation15 + $0x358] sm:$0xff]
    %v3298 = vld [vmem:[#allocation15 + $0x360] sm:$0xff]
    %v3299 = vld [vmem:[#allocation15 + $0x368] sm:$0xff]
    %v3300 = vld [vmem:[#allocation15 + $0x370] sm:$0xff]
    %v3301 = vld [vmem:[#allocation15 + $0x378] sm:$0xff]
    %v3302 = vld [vmem:[#allocation15 + $0x380] sm:$0xff]
    %v3303 = vld [vmem:[#allocation15 + $0x388] sm:$0xff]
    %v3304 = vld [vmem:[#allocation15 + $0x390] sm:$0xff]
    %v3305 = vld [vmem:[#allocation15 + $0x398] sm:$0xff]
    %v3306 = vld [vmem:[#allocation15 + $0x3a0] sm:$0xff]
    %v3307 = vld [vmem:[#allocation15 + $0x3a8] sm:$0xff]
    %v3308 = vld [vmem:[#allocation15 + $0x3b0] sm:$0xff]
    %v3309 = vld [vmem:[#allocation15 + $0x3b8] sm:$0xff]
    %v3310 = vld [vmem:[#allocation15 + $0x3c0] sm:$0xff]
    %v3311 = vld [vmem:[#allocation15 + $0x3c8] sm:$0xff]
    %v3312 = vld [vmem:[#allocation15 + $0x3d0] sm:$0xff]
    %v3313 = vld [vmem:[#allocation15 + $0x3d8] sm:$0xff]
    %v3314 = vld [vmem:[#allocation15 + $0x3e0] sm:$0xff]
    %v3315 = vld [vmem:[#allocation15 + $0x3e8] sm:$0xff]
    %v3316 = vld [vmem:[#allocation15 + $0x3f0] sm:$0xff]
    %v3317 = vld [vmem:[#allocation15 + $0x3f8] sm:$0xff]
    %v3318 = vld [vmem:[%s13] sm:$0x3]
    %v3320 = vlaneseq
    %v3321 = vshrl.u32 %v3320, 7
    %v3322 = vsub.s32 0, %v3321
    %v3323 = vrot.slane %v3318, %v3322
    %v3324 = vlaneseq
    %v3325 = vshrl.u32 %v3324, 7
    %v3326 = vsub.s32 1, %v3325
    %v3327 = vrot.slane %v3318, %v3326
    %v3458 = vunpack.c.l.b16 %v3190
    %v3459 = vunpack.c.h.b16 %v3190
    %v3460 = vunpack.c.l.b16 %v3191
    %v3461 = vunpack.c.h.b16 %v3191
    %v3462 = vunpack.c.l.b16 %v3192
    %v3463 = vunpack.c.h.b16 %v3192
    %v3464 = vunpack.c.l.b16 %v3193
    %v3465 = vunpack.c.h.b16 %v3193
    %v3466 = vunpack.c.l.b16 %v3194
    %v3467 = vunpack.c.h.b16 %v3194
    %v3468 = vunpack.c.l.b16 %v3195
    %v3469 = vunpack.c.h.b16 %v3195
    %v3470 = vunpack.c.l.b16 %v3196
    %v3471 = vunpack.c.h.b16 %v3196
    %v3472 = vunpack.c.l.b16 %v3197
    %v3473 = vunpack.c.h.b16 %v3197
    %v3474 = vunpack.c.l.b16 %v3198
    %v3475 = vunpack.c.h.b16 %v3198
    %v3476 = vunpack.c.l.b16 %v3199
    %v3477 = vunpack.c.h.b16 %v3199
    %v3478 = vunpack.c.l.b16 %v3200
    %v3479 = vunpack.c.h.b16 %v3200
    %v3480 = vunpack.c.l.b16 %v3201
    %v3481 = vunpack.c.h.b16 %v3201
    %v3482 = vunpack.c.l.b16 %v3202
    %v3483 = vunpack.c.h.b16 %v3202
    %v3484 = vunpack.c.l.b16 %v3203
    %v3485 = vunpack.c.h.b16 %v3203
    %v3486 = vunpack.c.l.b16 %v3204
    %v3487 = vunpack.c.h.b16 %v3204
    %v3488 = vunpack.c.l.b16 %v3205
    %v3489 = vunpack.c.h.b16 %v3205
    %v3490 = vunpack.c.l.b16 %v3206
    %v3491 = vunpack.c.h.b16 %v3206
    %v3492 = vunpack.c.l.b16 %v3207
    %v3493 = vunpack.c.h.b16 %v3207
    %v3494 = vunpack.c.l.b16 %v3208
    %v3495 = vunpack.c.h.b16 %v3208
    %v3496 = vunpack.c.l.b16 %v3209
    %v3497 = vunpack.c.h.b16 %v3209
    %v3498 = vunpack.c.l.b16 %v3210
    %v3499 = vunpack.c.h.b16 %v3210
    %v3500 = vunpack.c.l.b16 %v3211
    %v3501 = vunpack.c.h.b16 %v3211
    %v3502 = vunpack.c.l.b16 %v3212
    %v3503 = vunpack.c.h.b16 %v3212
    %v3504 = vunpack.c.l.b16 %v3213
    %v3505 = vunpack.c.h.b16 %v3213
    %v3506 = vunpack.c.l.b16 %v3214
    %v3507 = vunpack.c.h.b16 %v3214
    %v3508 = vunpack.c.l.b16 %v3215
    %v3509 = vunpack.c.h.b16 %v3215
    %v3510 = vunpack.c.l.b16 %v3216
    %v3511 = vunpack.c.h.b16 %v3216
    %v3512 = vunpack.c.l.b16 %v3217
    %v3513 = vunpack.c.h.b16 %v3217
    %v3514 = vunpack.c.l.b16 %v3218
    %v3515 = vunpack.c.h.b16 %v3218
    %v3516 = vunpack.c.l.b16 %v3219
    %v3517 = vunpack.c.h.b16 %v3219
    %v3518 = vunpack.c.l.b16 %v3220
    %v3519 = vunpack.c.h.b16 %v3220
    %v3520 = vunpack.c.l.b16 %v3221
    %v3521 = vunpack.c.h.b16 %v3221
    %v3522 = vunpack.c.l.b16 %v3222
    %v3523 = vunpack.c.h.b16 %v3222
    %v3524 = vunpack.c.l.b16 %v3223
    %v3525 = vunpack.c.h.b16 %v3223
    %v3526 = vunpack.c.l.b16 %v3224
    %v3527 = vunpack.c.h.b16 %v3224
    %v3528 = vunpack.c.l.b16 %v3225
    %v3529 = vunpack.c.h.b16 %v3225
    %v3530 = vunpack.c.l.b16 %v3226
    %v3531 = vunpack.c.h.b16 %v3226
    %v3532 = vunpack.c.l.b16 %v3227
    %v3533 = vunpack.c.h.b16 %v3227
    %v3534 = vunpack.c.l.b16 %v3228
    %v3535 = vunpack.c.h.b16 %v3228
    %v3536 = vunpack.c.l.b16 %v3229
    %v3537 = vunpack.c.h.b16 %v3229
    %v3538 = vunpack.c.l.b16 %v3230
    %v3539 = vunpack.c.h.b16 %v3230
    %v3540 = vunpack.c.l.b16 %v3231
    %v3541 = vunpack.c.h.b16 %v3231
    %v3542 = vunpack.c.l.b16 %v3232
    %v3543 = vunpack.c.h.b16 %v3232
    %v3544 = vunpack.c.l.b16 %v3233
    %v3545 = vunpack.c.h.b16 %v3233
    %v3546 = vunpack.c.l.b16 %v3234
    %v3547 = vunpack.c.h.b16 %v3234
    %v3548 = vunpack.c.l.b16 %v3235
    %v3549 = vunpack.c.h.b16 %v3235
    %v3550 = vunpack.c.l.b16 %v3236
    %v3551 = vunpack.c.h.b16 %v3236
    %v3552 = vunpack.c.l.b16 %v3237
    %v3553 = vunpack.c.h.b16 %v3237
    %v3554 = vunpack.c.l.b16 %v3238
    %v3555 = vunpack.c.h.b16 %v3238
    %v3556 = vunpack.c.l.b16 %v3239
    %v3557 = vunpack.c.h.b16 %v3239
    %v3558 = vunpack.c.l.b16 %v3240
    %v3559 = vunpack.c.h.b16 %v3240
    %v3560 = vunpack.c.l.b16 %v3241
    %v3561 = vunpack.c.h.b16 %v3241
    %v3562 = vunpack.c.l.b16 %v3242
    %v3563 = vunpack.c.h.b16 %v3242
    %v3564 = vunpack.c.l.b16 %v3243
    %v3565 = vunpack.c.h.b16 %v3243
    %v3566 = vunpack.c.l.b16 %v3244
    %v3567 = vunpack.c.h.b16 %v3244
    %v3568 = vunpack.c.l.b16 %v3245
    %v3569 = vunpack.c.h.b16 %v3245
    %v3570 = vunpack.c.l.b16 %v3246
    %v3571 = vunpack.c.h.b16 %v3246
    %v3572 = vunpack.c.l.b16 %v3247
    %v3573 = vunpack.c.h.b16 %v3247
    %v3574 = vunpack.c.l.b16 %v3248
    %v3575 = vunpack.c.h.b16 %v3248
    %v3576 = vunpack.c.l.b16 %v3249
    %v3577 = vunpack.c.h.b16 %v3249
    %v3578 = vunpack.c.l.b16 %v3250
    %v3579 = vunpack.c.h.b16 %v3250
    %v3580 = vunpack.c.l.b16 %v3251
    %v3581 = vunpack.c.h.b16 %v3251
    %v3582 = vunpack.c.l.b16 %v3252
    %v3583 = vunpack.c.h.b16 %v3252
    %v3584 = vunpack.c.l.b16 %v3253
    %v3585 = vunpack.c.h.b16 %v3253
    %v3586 = vunpack.c.l.b16 %v3254
    %v3587 = vunpack.c.h.b16 %v3254
    %v3588 = vunpack.c.l.b16 %v3255
    %v3589 = vunpack.c.h.b16 %v3255
    %v3590 = vunpack.c.l.b16 %v3256
    %v3591 = vunpack.c.h.b16 %v3256
    %v3592 = vunpack.c.l.b16 %v3257
    %v3593 = vunpack.c.h.b16 %v3257
    %v3594 = vunpack.c.l.b16 %v3258
    %v3595 = vunpack.c.h.b16 %v3258
    %v3596 = vunpack.c.l.b16 %v3259
    %v3597 = vunpack.c.h.b16 %v3259
    %v3598 = vunpack.c.l.b16 %v3260
    %v3599 = vunpack.c.h.b16 %v3260
    %v3600 = vunpack.c.l.b16 %v3261
    %v3601 = vunpack.c.h.b16 %v3261
    %v3602 = vunpack.c.l.b16 %v3262
    %v3603 = vunpack.c.h.b16 %v3262
    %v3604 = vunpack.c.l.b16 %v3263
    %v3605 = vunpack.c.h.b16 %v3263
    %v3606 = vunpack.c.l.b16 %v3264
    %v3607 = vunpack.c.h.b16 %v3264
    %v3608 = vunpack.c.l.b16 %v3265
    %v3609 = vunpack.c.h.b16 %v3265
    %v3610 = vunpack.c.l.b16 %v3266
    %v3611 = vunpack.c.h.b16 %v3266
    %v3612 = vunpack.c.l.b16 %v3267
    %v3613 = vunpack.c.h.b16 %v3267
    %v3614 = vunpack.c.l.b16 %v3268
    %v3615 = vunpack.c.h.b16 %v3268
    %v3616 = vunpack.c.l.b16 %v3269
    %v3617 = vunpack.c.h.b16 %v3269
    %v3618 = vunpack.c.l.b16 %v3270
    %v3619 = vunpack.c.h.b16 %v3270
    %v3620 = vunpack.c.l.b16 %v3271
    %v3621 = vunpack.c.h.b16 %v3271
    %v3622 = vunpack.c.l.b16 %v3272
    %v3623 = vunpack.c.h.b16 %v3272
    %v3624 = vunpack.c.l.b16 %v3273
    %v3625 = vunpack.c.h.b16 %v3273
    %v3626 = vunpack.c.l.b16 %v3274
    %v3627 = vunpack.c.h.b16 %v3274
    %v3628 = vunpack.c.l.b16 %v3275
    %v3629 = vunpack.c.h.b16 %v3275
    %v3630 = vunpack.c.l.b16 %v3276
    %v3631 = vunpack.c.h.b16 %v3276
    %v3632 = vunpack.c.l.b16 %v3277
    %v3633 = vunpack.c.h.b16 %v3277
    %v3634 = vunpack.c.l.b16 %v3278
    %v3635 = vunpack.c.h.b16 %v3278
    %v3636 = vunpack.c.l.b16 %v3279
    %v3637 = vunpack.c.h.b16 %v3279
    %v3638 = vunpack.c.l.b16 %v3280
    %v3639 = vunpack.c.h.b16 %v3280
    %v3640 = vunpack.c.l.b16 %v3281
    %v3641 = vunpack.c.h.b16 %v3281
    %v3642 = vunpack.c.l.b16 %v3282
    %v3643 = vunpack.c.h.b16 %v3282
    %v3644 = vunpack.c.l.b16 %v3283
    %v3645 = vunpack.c.h.b16 %v3283
    %v3646 = vunpack.c.l.b16 %v3284
    %v3647 = vunpack.c.h.b16 %v3284
    %v3648 = vunpack.c.l.b16 %v3285
    %v3649 = vunpack.c.h.b16 %v3285
    %v3650 = vunpack.c.l.b16 %v3286
    %v3651 = vunpack.c.h.b16 %v3286
    %v3652 = vunpack.c.l.b16 %v3287
    %v3653 = vunpack.c.h.b16 %v3287
    %v3654 = vunpack.c.l.b16 %v3288
    %v3655 = vunpack.c.h.b16 %v3288
    %v3656 = vunpack.c.l.b16 %v3289
    %v3657 = vunpack.c.h.b16 %v3289
    %v3658 = vunpack.c.l.b16 %v3290
    %v3659 = vunpack.c.h.b16 %v3290
    %v3660 = vunpack.c.l.b16 %v3291
    %v3661 = vunpack.c.h.b16 %v3291
    %v3662 = vunpack.c.l.b16 %v3292
    %v3663 = vunpack.c.h.b16 %v3292
    %v3664 = vunpack.c.l.b16 %v3293
    %v3665 = vunpack.c.h.b16 %v3293
    %v3666 = vunpack.c.l.b16 %v3294
    %v3667 = vunpack.c.h.b16 %v3294
    %v3668 = vunpack.c.l.b16 %v3295
    %v3669 = vunpack.c.h.b16 %v3295
    %v3670 = vunpack.c.l.b16 %v3296
    %v3671 = vunpack.c.h.b16 %v3296
    %v3672 = vunpack.c.l.b16 %v3297
    %v3673 = vunpack.c.h.b16 %v3297
    %v3674 = vunpack.c.l.b16 %v3298
    %v3675 = vunpack.c.h.b16 %v3298
    %v3676 = vunpack.c.l.b16 %v3299
    %v3677 = vunpack.c.h.b16 %v3299
    %v3678 = vunpack.c.l.b16 %v3300
    %v3679 = vunpack.c.h.b16 %v3300
    %v3680 = vunpack.c.l.b16 %v3301
    %v3681 = vunpack.c.h.b16 %v3301
    %v3682 = vunpack.c.l.b16 %v3302
    %v3683 = vunpack.c.h.b16 %v3302
    %v3684 = vunpack.c.l.b16 %v3303
    %v3685 = vunpack.c.h.b16 %v3303
    %v3686 = vunpack.c.l.b16 %v3304
    %v3687 = vunpack.c.h.b16 %v3304
    %v3688 = vunpack.c.l.b16 %v3305
    %v3689 = vunpack.c.h.b16 %v3305
    %v3690 = vunpack.c.l.b16 %v3306
    %v3691 = vunpack.c.h.b16 %v3306
    %v3692 = vunpack.c.l.b16 %v3307
    %v3693 = vunpack.c.h.b16 %v3307
    %v3694 = vunpack.c.l.b16 %v3308
    %v3695 = vunpack.c.h.b16 %v3308
    %v3696 = vunpack.c.l.b16 %v3309
    %v3697 = vunpack.c.h.b16 %v3309
    %v3698 = vunpack.c.l.b16 %v3310
    %v3699 = vunpack.c.h.b16 %v3310
    %v3700 = vunpack.c.l.b16 %v3311
    %v3701 = vunpack.c.h.b16 %v3311
    %v3702 = vunpack.c.l.b16 %v3312
    %v3703 = vunpack.c.h.b16 %v3312
    %v3704 = vunpack.c.l.b16 %v3313
    %v3705 = vunpack.c.h.b16 %v3313
    %v3706 = vunpack.c.l.b16 %v3314
    %v3707 = vunpack.c.h.b16 %v3314
    %v3708 = vunpack.c.l.b16 %v3315
    %v3709 = vunpack.c.h.b16 %v3315
    %v3710 = vunpack.c.l.b16 %v3316
    %v3711 = vunpack.c.h.b16 %v3316
    %v3712 = vunpack.c.l.b16 %v3317
    %v3713 = vunpack.c.h.b16 %v3317
    %v3714 = vpack.c.b16 %v3460, %v3458
    %v3715 = vpack.c.b16 %v3461, %v3459
    %v3716 = vpack.c.b16 %v3464, %v3462
    %v3717 = vpack.c.b16 %v3465, %v3463
    %v3718 = vpack.c.b16 %v3468, %v3466
    %v3719 = vpack.c.b16 %v3469, %v3467
    %v3720 = vpack.c.b16 %v3472, %v3470
    %v3721 = vpack.c.b16 %v3473, %v3471
    %v3722 = vpack.c.b16 %v3476, %v3474
    %v3723 = vpack.c.b16 %v3477, %v3475
    %v3724 = vpack.c.b16 %v3480, %v3478
    %v3725 = vpack.c.b16 %v3481, %v3479
    %v3726 = vpack.c.b16 %v3484, %v3482
    %v3727 = vpack.c.b16 %v3485, %v3483
    %v3728 = vpack.c.b16 %v3488, %v3486
    %v3729 = vpack.c.b16 %v3489, %v3487
    %v3730 = vpack.c.b16 %v3492, %v3490
    %v3731 = vpack.c.b16 %v3493, %v3491
    %v3732 = vpack.c.b16 %v3496, %v3494
    %v3733 = vpack.c.b16 %v3497, %v3495
    %v3734 = vpack.c.b16 %v3500, %v3498
    %v3735 = vpack.c.b16 %v3501, %v3499
    %v3736 = vpack.c.b16 %v3504, %v3502
    %v3737 = vpack.c.b16 %v3505, %v3503
    %v3738 = vpack.c.b16 %v3508, %v3506
    %v3739 = vpack.c.b16 %v3509, %v3507
    %v3740 = vpack.c.b16 %v3512, %v3510
    %v3741 = vpack.c.b16 %v3513, %v3511
    %v3742 = vpack.c.b16 %v3516, %v3514
    %v3743 = vpack.c.b16 %v3517, %v3515
    %v3744 = vpack.c.b16 %v3520, %v3518
    %v3745 = vpack.c.b16 %v3521, %v3519
    %v3746 = vpack.c.b16 %v3524, %v3522
    %v3747 = vpack.c.b16 %v3525, %v3523
    %v3748 = vpack.c.b16 %v3528, %v3526
    %v3749 = vpack.c.b16 %v3529, %v3527
    %v3750 = vpack.c.b16 %v3532, %v3530
    %v3751 = vpack.c.b16 %v3533, %v3531
    %v3752 = vpack.c.b16 %v3536, %v3534
    %v3753 = vpack.c.b16 %v3537, %v3535
    %v3754 = vpack.c.b16 %v3540, %v3538
    %v3755 = vpack.c.b16 %v3541, %v3539
    %v3756 = vpack.c.b16 %v3544, %v3542
    %v3757 = vpack.c.b16 %v3545, %v3543
    %v3758 = vpack.c.b16 %v3548, %v3546
    %v3759 = vpack.c.b16 %v3549, %v3547
    %v3760 = vpack.c.b16 %v3552, %v3550
    %v3761 = vpack.c.b16 %v3553, %v3551
    %v3762 = vpack.c.b16 %v3556, %v3554
    %v3763 = vpack.c.b16 %v3557, %v3555
    %v3764 = vpack.c.b16 %v3560, %v3558
    %v3765 = vpack.c.b16 %v3561, %v3559
    %v3766 = vpack.c.b16 %v3564, %v3562
    %v3767 = vpack.c.b16 %v3565, %v3563
    %v3768 = vpack.c.b16 %v3568, %v3566
    %v3769 = vpack.c.b16 %v3569, %v3567
    %v3770 = vpack.c.b16 %v3572, %v3570
    %v3771 = vpack.c.b16 %v3573, %v3571
    %v3772 = vpack.c.b16 %v3576, %v3574
    %v3773 = vpack.c.b16 %v3577, %v3575
    %v3774 = vpack.c.b16 %v3580, %v3578
    %v3775 = vpack.c.b16 %v3581, %v3579
    %v3776 = vpack.c.b16 %v3584, %v3582
    %v3777 = vpack.c.b16 %v3585, %v3583
    %v3778 = vpack.c.b16 %v3588, %v3586
    %v3779 = vpack.c.b16 %v3589, %v3587
    %v3780 = vpack.c.b16 %v3592, %v3590
    %v3781 = vpack.c.b16 %v3593, %v3591
    %v3782 = vpack.c.b16 %v3596, %v3594
    %v3783 = vpack.c.b16 %v3597, %v3595
    %v3784 = vpack.c.b16 %v3600, %v3598
    %v3785 = vpack.c.b16 %v3601, %v3599
    %v3786 = vpack.c.b16 %v3604, %v3602
    %v3787 = vpack.c.b16 %v3605, %v3603
    %v3788 = vpack.c.b16 %v3608, %v3606
    %v3789 = vpack.c.b16 %v3609, %v3607
    %v3790 = vpack.c.b16 %v3612, %v3610
    %v3791 = vpack.c.b16 %v3613, %v3611
    %v3792 = vpack.c.b16 %v3616, %v3614
    %v3793 = vpack.c.b16 %v3617, %v3615
    %v3794 = vpack.c.b16 %v3620, %v3618
    %v3795 = vpack.c.b16 %v3621, %v3619
    %v3796 = vpack.c.b16 %v3624, %v3622
    %v3797 = vpack.c.b16 %v3625, %v3623
    %v3798 = vpack.c.b16 %v3628, %v3626
    %v3799 = vpack.c.b16 %v3629, %v3627
    %v3800 = vpack.c.b16 %v3632, %v3630
    %v3801 = vpack.c.b16 %v3633, %v3631
    %v3802 = vpack.c.b16 %v3636, %v3634
    %v3803 = vpack.c.b16 %v3637, %v3635
    %v3804 = vpack.c.b16 %v3640, %v3638
    %v3805 = vpack.c.b16 %v3641, %v3639
    %v3806 = vpack.c.b16 %v3644, %v3642
    %v3807 = vpack.c.b16 %v3645, %v3643
    %v3808 = vpack.c.b16 %v3648, %v3646
    %v3809 = vpack.c.b16 %v3649, %v3647
    %v3810 = vpack.c.b16 %v3652, %v3650
    %v3811 = vpack.c.b16 %v3653, %v3651
    %v3812 = vpack.c.b16 %v3656, %v3654
    %v3813 = vpack.c.b16 %v3657, %v3655
    %v3814 = vpack.c.b16 %v3660, %v3658
    %v3815 = vpack.c.b16 %v3661, %v3659
    %v3816 = vpack.c.b16 %v3664, %v3662
    %v3817 = vpack.c.b16 %v3665, %v3663
    %v3818 = vpack.c.b16 %v3668, %v3666
    %v3819 = vpack.c.b16 %v3669, %v3667
    %v3820 = vpack.c.b16 %v3672, %v3670
    %v3821 = vpack.c.b16 %v3673, %v3671
    %v3822 = vpack.c.b16 %v3676, %v3674
    %v3823 = vpack.c.b16 %v3677, %v3675
    %v3824 = vpack.c.b16 %v3680, %v3678
    %v3825 = vpack.c.b16 %v3681, %v3679
    %v3826 = vpack.c.b16 %v3684, %v3682
    %v3827 = vpack.c.b16 %v3685, %v3683
    %v3828 = vpack.c.b16 %v3688, %v3686
    %v3829 = vpack.c.b16 %v3689, %v3687
    %v3830 = vpack.c.b16 %v3692, %v3690
    %v3831 = vpack.c.b16 %v3693, %v3691
    %v3832 = vpack.c.b16 %v3696, %v3694
    %v3833 = vpack.c.b16 %v3697, %v3695
    %v3834 = vpack.c.b16 %v3700, %v3698
    %v3835 = vpack.c.b16 %v3701, %v3699
    %v3836 = vpack.c.b16 %v3704, %v3702
    %v3837 = vpack.c.b16 %v3705, %v3703
    %v3838 = vpack.c.b16 %v3708, %v3706
    %v3839 = vpack.c.b16 %v3709, %v3707
    %v3840 = vpack.c.b16 %v3712, %v3710
    %v3841 = vpack.c.b16 %v3713, %v3711
    %3970 = vmatprep.subr.bf16.mxu0 %v3715
    %3971 = vmatpush1.bf16.msra.mxu0 %v3714
    %3972 = vmatprep.subr.bf16.mxu0 %v3717
    %3973 = vmatpush1.bf16.msra.mxu0 %v3716
    %3974 = vmatprep.subr.bf16.mxu0 %v3719
    %3975 = vmatpush1.bf16.msra.mxu0 %v3718
    %3976 = vmatprep.subr.bf16.mxu0 %v3721
    %3977 = vmatpush1.bf16.msra.mxu0 %v3720
    %3978 = vmatprep.subr.bf16.mxu0 %v3723
    %3979 = vmatpush1.bf16.msra.mxu0 %v3722
    %3980 = vmatprep.subr.bf16.mxu0 %v3725
    %3981 = vmatpush1.bf16.msra.mxu0 %v3724
    %3982 = vmatprep.subr.bf16.mxu0 %v3727
    %3983 = vmatpush1.bf16.msra.mxu0 %v3726
    %3984 = vmatprep.subr.bf16.mxu0 %v3729
    %3985 = vmatpush1.bf16.msra.mxu0 %v3728
    %3986 = vmatprep.subr.bf16.mxu0 %v3731
    %3987 = vmatpush1.bf16.msra.mxu0 %v3730
    %3988 = vmatprep.subr.bf16.mxu0 %v3733
    %3989 = vmatpush1.bf16.msra.mxu0 %v3732
    %3990 = vmatprep.subr.bf16.mxu0 %v3735
    %3991 = vmatpush1.bf16.msra.mxu0 %v3734
    %3992 = vmatprep.subr.bf16.mxu0 %v3737
    %3993 = vmatpush1.bf16.msra.mxu0 %v3736
    %3994 = vmatprep.subr.bf16.mxu0 %v3739
    %3995 = vmatpush1.bf16.msra.mxu0 %v3738
    %3996 = vmatprep.subr.bf16.mxu0 %v3741
    %3997 = vmatpush1.bf16.msra.mxu0 %v3740
    %3998 = vmatprep.subr.bf16.mxu0 %v3743
    %3999 = vmatpush1.bf16.msra.mxu0 %v3742
    %4000 = vmatprep.subr.bf16.mxu0 %v3745
    %4001 = vmatpush1.bf16.msra.mxu0 %v3744
    %4002 = vmatprep.mubr.bf16.mxu0 %v3183
    %4003 = vmatmul.mubr.bf16.gmra.mrb[0].mxu0 %v3182
    %v4004 = vpop.f32.mrb[0].mxu0
    %v4005 = vadd.f32 %v3323, %v4004
    %v4006 = vpop.f32.mrb[0].mxu0
    %v4007 = vadd.f32 %v3327, %v4006
    %v4008 = vpop.f32.mrb[0].mxu0
    %v4009 = vpop.f32.mrb[0].mxu0
    %4010 = vdwg.mxu0
    %4011 = vmatprep.subr.bf16.mxu0 %v3747
    %4012 = vmatpush1.bf16.msra.mxu0 %v3746
    %4013 = vmatprep.subr.bf16.mxu0 %v3749
    %4014 = vmatpush1.bf16.msra.mxu0 %v3748
    %4015 = vmatprep.subr.bf16.mxu0 %v3751
    %4016 = vmatpush1.bf16.msra.mxu0 %v3750
    %4017 = vmatprep.subr.bf16.mxu0 %v3753
    %4018 = vmatpush1.bf16.msra.mxu0 %v3752
    %4019 = vmatprep.subr.bf16.mxu0 %v3755
    %4020 = vmatpush1.bf16.msra.mxu0 %v3754
    %4021 = vmatprep.subr.bf16.mxu0 %v3757
    %4022 = vmatpush1.bf16.msra.mxu0 %v3756
    %4023 = vmatprep.subr.bf16.mxu0 %v3759
    %4024 = vmatpush1.bf16.msra.mxu0 %v3758
    %4025 = vmatprep.subr.bf16.mxu0 %v3761
    %4026 = vmatpush1.bf16.msra.mxu0 %v3760
    %4027 = vmatprep.subr.bf16.mxu0 %v3763
    %4028 = vmatpush1.bf16.msra.mxu0 %v3762
    %4029 = vmatprep.subr.bf16.mxu0 %v3765
    %4030 = vmatpush1.bf16.msra.mxu0 %v3764
    %4031 = vmatprep.subr.bf16.mxu0 %v3767
    %4032 = vmatpush1.bf16.msra.mxu0 %v3766
    %4033 = vmatprep.subr.bf16.mxu0 %v3769
    %4034 = vmatpush1.bf16.msra.mxu0 %v3768
    %4035 = vmatprep.subr.bf16.mxu0 %v3771
    %4036 = vmatpush1.bf16.msra.mxu0 %v3770
    %4037 = vmatprep.subr.bf16.mxu0 %v3773
    %4038 = vmatpush1.bf16.msra.mxu0 %v3772
    %4039 = vmatprep.subr.bf16.mxu0 %v3775
    %4040 = vmatpush1.bf16.msra.mxu0 %v3774
    %4041 = vmatprep.subr.bf16.mxu0 %v3777
    %4042 = vmatpush1.bf16.msra.mxu0 %v3776
    %4043 = vmatprep.mubr.bf16.mxu0 %v3185
    %4044 = vmatmul.mubr.bf16.gmra.mrb[0].mxu0 %v3184
    %v4045 = vpop.f32.mrb[0].mxu0
    %v4046 = vadd.f32 %v4005, %v4045
    %v4047 = vpop.f32.mrb[0].mxu0
    %v4048 = vadd.f32 %v4007, %v4047
    %v4049 = vpop.f32.mrb[0].mxu0
    %v4050 = vpop.f32.mrb[0].mxu0
    %4051 = vdwg.mxu0
    %4052 = vmatprep.subr.bf16.mxu0 %v3779
    %4053 = vmatpush1.bf16.msra.mxu0 %v3778
    %4054 = vmatprep.subr.bf16.mxu0 %v3781
    %4055 = vmatpush1.bf16.msra.mxu0 %v3780
    %4056 = vmatprep.subr.bf16.mxu0 %v3783
    %4057 = vmatpush1.bf16.msra.mxu0 %v3782
    %4058 = vmatprep.subr.bf16.mxu0 %v3785
    %4059 = vmatpush1.bf16.msra.mxu0 %v3784
    %4060 = vmatprep.subr.bf16.mxu0 %v3787
    %4061 = vmatpush1.bf16.msra.mxu0 %v3786
    %4062 = vmatprep.subr.bf16.mxu0 %v3789
    %4063 = vmatpush1.bf16.msra.mxu0 %v3788
    %4064 = vmatprep.subr.bf16.mxu0 %v3791
    %4065 = vmatpush1.bf16.msra.mxu0 %v3790
    %4066 = vmatprep.subr.bf16.mxu0 %v3793
    %4067 = vmatpush1.bf16.msra.mxu0 %v3792
    %4068 = vmatprep.subr.bf16.mxu0 %v3795
    %4069 = vmatpush1.bf16.msra.mxu0 %v3794
    %4070 = vmatprep.subr.bf16.mxu0 %v3797
    %4071 = vmatpush1.bf16.msra.mxu0 %v3796
    %4072 = vmatprep.subr.bf16.mxu0 %v3799
    %4073 = vmatpush1.bf16.msra.mxu0 %v3798
    %4074 = vmatprep.subr.bf16.mxu0 %v3801
    %4075 = vmatpush1.bf16.msra.mxu0 %v3800
    %4076 = vmatprep.subr.bf16.mxu0 %v3803
    %4077 = vmatpush1.bf16.msra.mxu0 %v3802
    %4078 = vmatprep.subr.bf16.mxu0 %v3805
    %4079 = vmatpush1.bf16.msra.mxu0 %v3804
    %4080 = vmatprep.subr.bf16.mxu0 %v3807
    %4081 = vmatpush1.bf16.msra.mxu0 %v3806
    %4082 = vmatprep.subr.bf16.mxu0 %v3809
    %4083 = vmatpush1.bf16.msra.mxu0 %v3808
    %4084 = vmatprep.mubr.bf16.mxu0 %v3187
    %4085 = vmatmul.mubr.bf16.gmra.mrb[0].mxu0 %v3186
    %v4086 = vpop.f32.mrb[0].mxu0
    %v4087 = vadd.f32 %v4046, %v4086
    %v4088 = vpop.f32.mrb[0].mxu0
    %v4089 = vadd.f32 %v4048, %v4088
    %v4090 = vpop.f32.mrb[0].mxu0
    %v4091 = vpop.f32.mrb[0].mxu0
    %4092 = vdwg.mxu0
    %4093 = vmatprep.subr.bf16.mxu0 %v3811
    %4094 = vmatpush1.bf16.msra.mxu0 %v3810
    %4095 = vmatprep.subr.bf16.mxu0 %v3813
    %4096 = vmatpush1.bf16.msra.mxu0 %v3812
    %4097 = vmatprep.subr.bf16.mxu0 %v3815
    %4098 = vmatpush1.bf16.msra.mxu0 %v3814
    %4099 = vmatprep.subr.bf16.mxu0 %v3817
    %4100 = vmatpush1.bf16.msra.mxu0 %v3816
    %4101 = vmatprep.subr.bf16.mxu0 %v3819
    %4102 = vmatpush1.bf16.msra.mxu0 %v3818
    %4103 = vmatprep.subr.bf16.mxu0 %v3821
    %4104 = vmatpush1.bf16.msra.mxu0 %v3820
    %4105 = vmatprep.subr.bf16.mxu0 %v3823
    %4106 = vmatpush1.bf16.msra.mxu0 %v3822
    %4107 = vmatprep.subr.bf16.mxu0 %v3825
    %4108 = vmatpush1.bf16.msra.mxu0 %v3824
    %4109 = vmatprep.subr.bf16.mxu0 %v3827
    %4110 = vmatpush1.bf16.msra.mxu0 %v3826
    %4111 = vmatprep.subr.bf16.mxu0 %v3829
    %4112 = vmatpush1.bf16.msra.mxu0 %v3828
    %4113 = vmatprep.subr.bf16.mxu0 %v3831
    %4114 = vmatpush1.bf16.msra.mxu0 %v3830
    %4115 = vmatprep.subr.bf16.mxu0 %v3833
    %4116 = vmatpush1.bf16.msra.mxu0 %v3832
    %4117 = vmatprep.subr.bf16.mxu0 %v3835
    %4118 = vmatpush1.bf16.msra.mxu0 %v3834
    %4119 = vmatprep.subr.bf16.mxu0 %v3837
    %4120 = vmatpush1.bf16.msra.mxu0 %v3836
    %4121 = vmatprep.subr.bf16.mxu0 %v3839
    %4122 = vmatpush1.bf16.msra.mxu0 %v3838
    %4123 = vmatprep.subr.bf16.mxu0 %v3841
    %4124 = vmatpush1.bf16.msra.mxu0 %v3840
    %4125 = vmatprep.mubr.bf16.mxu0 %v3189
    %4126 = vmatmul.mubr.bf16.gmra.mrb[0].mxu0 %v3188
    %v4127 = vpop.f32.mrb[0].mxu0
    %v4128 = vadd.f32 %v4087, %v4127
    %v4129 = vpop.f32.mrb[0].mxu0
    %v4130 = vadd.f32 %v4089, %v4129
    %v4131 = vpop.f32.mrb[0].mxu0
    %v4132 = vpop.f32.mrb[0].mxu0
    %4133 = vdwg.mxu0
    %v4134 = vtanh.pop %v4128
    %v4135 = vtanh.pop %v4130
    %4136 = vst [vmem:[%s14] sm:$0xff] %v4134
    %4137 = vst [vmem:[%s14 + $0x8] sm:$0xff] %v4135
    // Predicated region
    $region94: #{generator_forward.1} parent=1 // pred_check
      _
    $region95: #{generator_forward.1} parent=1 // pred_check_branch
      %4139 = sbr.rel (0) target = $region97
    $region96: #{generator_forward.1} parent=1 // pred_region
      _
    $region97: #{generator_forward.1} parent=1 // pred_fallthru
      _
    // Predicated region
    $region98: #{generator_forward.1} parent=1 // pred_check
      _
    $region99: #{generator_forward.1} parent=1 // pred_check_branch
      %4141 = sbr.rel (0) target = $region101
    $region100: #{generator_forward.1} parent=1 // pred_region
      _
    $region101: #{generator_forward.1} parent=1 // pred_fallthru
      _
    %4142 = vsyncpa [#allocation3], 1
    %4143 = vsyncpa [#allocation5], 1
    %4144 = vsyncpa [#allocation8], 1
    %4145 = vsyncpa [#allocation11], 1
    %4146 = vsyncpa [#allocation14], 1

</llo_original>
